<compile_context>
chip_gen: v6e
topology: v6e:2x2x1
jax: 0.10.0
libtpu: 0.0.40
codegen_flags: <defaults>
</compile_context>

<pallas_src>
import jax
import jax.numpy as jnp
from jax import lax
from jax.experimental import pallas as pl
from jax.experimental.pallas import tpu as pltpu


_MASK_VALUE = -1e30  # large finite negative: robust even for fully-masked rows


def _mha_rope_kernel(x_ref, wqkv_ref, bqkv_ref, wo_ref, bo_ref, cos_ref, sin_ref,
                     out_ref):
    bb, T, D = x_ref.shape
    hd = cos_ref.shape[1]
    half = hd // 2
    n_heads = D // hd
    rows = bb * T

    # Fused Q/K/V projection for all heads of this batch tile:
    # bf16 MXU inputs, f32 accumulation, M = bb*T rows.
    x = x_ref[...].reshape(rows, D)                                     # bf16
    qkv = jnp.dot(x, wqkv_ref[...],
                  preferred_element_type=jnp.float32) + bqkv_ref[...]   # (rows, 3D) f32

    # RoPE tables broadcast over the batch tile (hoisted out of the head loop).
    cosb = jnp.broadcast_to(cos_ref[...][None], (bb, T, hd)).reshape(rows, hd)
    sinb = jnp.broadcast_to(sin_ref[...][None], (bb, T, hd)).reshape(rows, hd)

    # Causal mask (every row keeps its diagonal; -1e30 instead of -inf so
    # padded / fully-masked rows cannot NaN).
    row_id = lax.broadcasted_iota(jnp.int32, (T, T), 0)
    col_id = lax.broadcasted_iota(jnp.int32, (T, T), 1)
    causal = col_id <= row_id                                           # (T, T)

    ctx_parts = []
    for h in range(n_heads):                                            # static loop
        # Lane-aligned static slices (hd is a multiple of 128 here): cheap views.
        q = qkv[:, h * hd:(h + 1) * hd]
        k = qkv[:, D + h * hd:D + (h + 1) * hd]
        v = qkv[:, 2 * D + h * hd:2 * D + (h + 1) * hd]

        # Rotary embedding on the full head width (no half slices):
        #   rot(t) = t * [cos|cos] + roll(t, half) * [-sin|sin]
        q = q * cosb + pltpu.roll(q, shift=half, axis=1) * sinb
        k = k * cosb + pltpu.roll(k, shift=half, axis=1) * sinb

        q3 = q.reshape(bb, T, hd).astype(jnp.bfloat16)
        k3 = k.reshape(bb, T, hd).astype(jnp.bfloat16)
        v3 = v.reshape(bb, T, hd).astype(jnp.bfloat16)

        # Causal attention; 1/sqrt(head_dim) is already folded into W_q/b_q.
        s = jnp.einsum('bqd,bkd->bqk', q3, k3,
                       preferred_element_type=jnp.float32)              # (bb, T, T) f32
        s = jnp.where(causal, s, _MASK_VALUE)
        m = jnp.max(s, axis=-1, keepdims=True)
        p = jnp.exp(s - m)
        att = p * pl.reciprocal(jnp.sum(p, axis=-1, keepdims=True), approx=True)
        # TODO(synk): attention-probability dropout is identity (eval-mode).

        ctx = jnp.einsum('bqk,bkd->bqd', att.astype(jnp.bfloat16), v3,
                         preferred_element_type=jnp.float32)            # (bb, T, hd)
        ctx_parts.append(ctx.reshape(rows, hd).astype(jnp.bfloat16))

    # Single K = D output matmul (better MXU use than H separate K = hd
    # matmuls); the concat just lays 128-lane-aligned bf16 chunks side by side.
    ctx_all = jnp.concatenate(ctx_parts, axis=-1)                       # (rows, D) bf16
    out = jnp.dot(ctx_all, wo_ref[...],
                  preferred_element_type=jnp.float32) + bo_ref[...]     # (rows, D) f32
    out_ref[...] = out.reshape(bb, T, D).astype(out_ref.dtype)


def prepare_mha_params(params, n_heads, seq_len):
    """Repack torch-style MHA weights for the Pallas kernel.

    Pure function of the weights / sequence length: call ONCE per model and
    cache the result (deliberately kept out of mha_rotary_pallas so it is not
    re-executed on every forward call).

    params = (wq, bq, wk, bk, wv, bv, wo, bo) with weights stored as
    (D_in, D_out) (i.e. nn.Linear.weight.T) so y = x @ W + b.
    """
    wq, bq, wk, bk, wv, bv, wo, bo = params
    D = wq.shape[0]
    hd = D // n_heads
    half = hd // 2
    scale = 1.0 / (hd ** 0.5)

    # Rotary tables in lane-dense duplicated-half layout (T, hd).
    theta = 1.0 / (10000.0 ** (jnp.arange(half, dtype=jnp.float32) / half))
    angle = jnp.arange(seq_len, dtype=jnp.float32)[:, None] * theta[None, :]
    cosf = jnp.concatenate([jnp.cos(angle), jnp.cos(angle)], axis=-1)   # (T, hd)
    sinf = jnp.concatenate([-jnp.sin(angle), jnp.sin(angle)], axis=-1)  # (T, hd)

    # Per-head even-first column permutation so in-kernel RoPE is a roll of
    # contiguous halves; fold the 1/sqrt(head_dim) softmax scale into W_q/b_q.
    idx = jnp.concatenate([jnp.arange(0, hd, 2), jnp.arange(1, hd, 2)])
    perm = (jnp.arange(n_heads)[:, None] * hd + idx[None, :]).reshape(-1)
    wq_p, bq_p = wq[:, perm] * scale, bq[perm] * scale
    wk_p, bk_p = wk[:, perm], bk[perm]

    wqkv = jnp.concatenate([wq_p, wk_p, wv], axis=-1).astype(jnp.bfloat16)  # (D, 3D)
    bqkv = jnp.concatenate([bq_p, bk_p, bv]).reshape(1, 3 * D)              # (1, 3D) f32
    wo_bf = wo.astype(jnp.bfloat16)                                          # (D, D)
    bo2 = bo.reshape(1, D)                                                   # (1, D) f32
    return wqkv, bqkv, wo_bf, bo2, cosf, sinf


def mha_rotary_pallas(x, packed, n_heads, *, out_dtype=jnp.float32, block_b=None):
    """x: (B, T, D) f32.  packed = prepare_mha_params(...) output."""
    wqkv, bqkv, wo_bf, bo2, cosf, sinf = packed
    B, T, D = x.shape
    hd = D // n_heads
    assert cosf.shape == (T, hd), "prepare_mha_params seq_len must match T"

    if block_b is None:
        # Target >=128 MXU rows per step (v5e granularity; v6e/v7x prefer 256)
        # while keeping >=2 steps on the "parallel" batch axis when B allows
        # it, so both v7x TensorCores get work.
        block_b = max(1, min(B, 128 // max(T, 1)))
        if B >= 2 and B // block_b < 2:
            block_b = B // 2
    block_b = max(1, min(block_b, B))
    while B % block_b:
        block_b -= 1
    grid_b = B // block_b

    x_bf = x.astype(jnp.bfloat16)
    return pl.pallas_call(
        _mha_rope_kernel,
        grid=(grid_b,),
        in_specs=[
            pl.BlockSpec((block_b, T, D), lambda b: (b, 0, 0)),     # x (bf16)
            # Constant index_maps: weights / tables are DMA'd once and stay
            # VMEM-resident across every grid step.
            pl.BlockSpec((D, 3 * D), lambda b: (0, 0)),             # fused QKV weights
            pl.BlockSpec((1, 3 * D), lambda b: (0, 0)),             # fused QKV bias
            pl.BlockSpec((D, D), lambda b: (0, 0)),                 # W_o
            pl.BlockSpec((1, D), lambda b: (0, 0)),                 # b_o
            pl.BlockSpec((T, hd), lambda b: (0, 0)),                # cos table
            pl.BlockSpec((T, hd), lambda b: (0, 0)),                # signed sin table
        ],
        out_specs=pl.BlockSpec((block_b, T, D), lambda b: (b, 0, 0)),
        out_shape=jax.ShapeDtypeStruct((B, T, D), out_dtype),
        compiler_params=pltpu.CompilerParams(
            dimension_semantics=("parallel",),
            # Demo working set is a few MiB; 32 MiB is safe on every generation
            # (v5e scoped default is only 16 MiB).  Raise toward 64-100 MiB on
            # v6e (128 MiB physical) when T/D grow; keep <=64 MiB on v7x.
            vmem_limit_bytes=32 * 1024 * 1024),
    )(x_bf, wqkv, bqkv, wo_bf, bo2, cosf, sinf)


def reference(x, params, n_heads):
    """Pure-JAX f32 mirror of the PyTorch forward (eval mode)."""
    wq, bq, wk, bk, wv, bv, wo, bo = params
    B, T, D = x.shape
    hd = D // n_heads

    def rot(t):  # t: (B, H, T, hd)
        half = hd // 2
        theta = 1.0 / (10000.0 ** (jnp.arange(half, dtype=jnp.float32) / half))
        angle = jnp.arange(T, dtype=jnp.float32)[:, None] * theta[None, :]
        s = jnp.sin(angle)[None, None]
        c = jnp.cos(angle)[None, None]
        x1 = t[..., 0::2]
        x2 = t[..., 1::2]
        return jnp.concatenate([x1 * c - x2 * s, x1 * s + x2 * c], axis=-1)

    q = (x @ wq + bq).reshape(B, T, n_heads, hd).transpose(0, 2, 1, 3)
    k = (x @ wk + bk).reshape(B, T, n_heads, hd).transpose(0, 2, 1, 3)
    v = (x @ wv + bv).reshape(B, T, n_heads, hd).transpose(0, 2, 1, 3)
    q, k = rot(q), rot(k)
    scores = jnp.einsum('bhqd,bhkd->bhqk', q, k)
    mask = jnp.where(jnp.tril(jnp.ones((T, T), bool)), 0.0, -jnp.inf)
    scores = (scores + mask) / (hd ** 0.5)
    att = jax.nn.softmax(scores, axis=-1)
    out = jnp.einsum('bhqk,bhkd->bhqd', att, v)
    out = out.transpose(0, 2, 1, 3).reshape(B, T, D)
    return out @ wo + bo


if __name__ == "__main__":
    # Lane-friendly small demo: head_dim = 128 (one vreg lane width), D = 512.
    B, T, D, H = 2, 16, 512, 4

    key = jax.random.PRNGKey(0)
    ks = jax.random.split(key, 9)
    wscale = 1.0 / (D ** 0.5)
    wq = jax.random.normal(ks[0], (D, D), jnp.float32) * wscale
    wk = jax.random.normal(ks[1], (D, D), jnp.float32) * wscale
    wv = jax.random.normal(ks[2], (D, D), jnp.float32) * wscale
    wo = jax.random.normal(ks[3], (D, D), jnp.float32) * wscale
    bq = jax.random.normal(ks[4], (D,), jnp.float32) * 0.01
    bk = jax.random.normal(ks[5], (D,), jnp.float32) * 0.01
    bv = jax.random.normal(ks[6], (D,), jnp.float32) * 0.01
    bo = jax.random.normal(ks[7], (D,), jnp.float32) * 0.01
    params = (wq, bq, wk, bk, wv, bv, wo, bo)

    x = jax.random.normal(ks[8], (B, T, D), jnp.float32)

    # Weight repacking happens once per model (cache this), not per call.
    packed = prepare_mha_params(params, H, T)

    out = mha_rotary_pallas(x, packed, H)
    out = jax.block_until_ready(out)

    ref = reference(x, params, H)
    assert out.shape == (B, T, D)
    max_diff = float(jnp.max(jnp.abs(out - ref)))
    # bf16 MXU inputs vs. f32 reference -> slightly looser tolerance.
    assert jnp.allclose(out, ref, atol=5e-2, rtol=2e-2), f"max diff {max_diff}"
    print("KERNEL_OK")
</pallas_src>

<mosaic_0001>
module attributes {stable_mosaic.version = 11 : i64} {
  func.func @_mha_rope_kernel(%arg0: i32, %arg1: memref<1x16x512xbf16, #tpu.memory_space<vmem>>, %arg2: memref<512x1536xbf16, #tpu.memory_space<vmem>>, %arg3: memref<1x1536xf32, #tpu.memory_space<vmem>>, %arg4: memref<512x512xbf16, #tpu.memory_space<vmem>>, %arg5: memref<1x512xf32, #tpu.memory_space<vmem>>, %arg6: memref<16x128xf32, #tpu.memory_space<vmem>>, %arg7: memref<16x128xf32, #tpu.memory_space<vmem>>, %arg8: memref<1x16x512xf32, #tpu.memory_space<vmem>>) attributes {dimension_semantics = [#tpu.dimension_semantics<parallel>], iteration_bounds = array<i64: 2>, scalar_prefetch = 0 : i64, scratch_operands = 0 : i64, tpu.core_type = #tpu.core_type<tc>, window_params = [{transform_indices = @transform_0, window_bounds = array<i64: 1, 16, 512>}, {pipeline_mode = #tpu.pipeline_mode<synchronous>, transform_indices = @transform_1, window_bounds = array<i64: 512, 1536>}, {pipeline_mode = #tpu.pipeline_mode<synchronous>, transform_indices = @transform_2, window_bounds = array<i64: 1, 1536>}, {pipeline_mode = #tpu.pipeline_mode<synchronous>, transform_indices = @transform_3, window_bounds = array<i64: 512, 512>}, {pipeline_mode = #tpu.pipeline_mode<synchronous>, transform_indices = @transform_4, window_bounds = array<i64: 1, 512>}, {pipeline_mode = #tpu.pipeline_mode<synchronous>, transform_indices = @transform_5, window_bounds = array<i64: 16, 128>}, {pipeline_mode = #tpu.pipeline_mode<synchronous>, transform_indices = @transform_6, window_bounds = array<i64: 16, 128>}, {transform_indices = @transform_7, window_bounds = array<i64: 1, 16, 512>}]} {
    %c0 = arith.constant 0 : index
    %c0_0 = arith.constant 0 : index
    %c0_1 = arith.constant 0 : index
    %0 = vector.load %arg1[%c0, %c0_0, %c0_1] : memref<1x16x512xbf16, #tpu.memory_space<vmem>>, vector<1x16x512xbf16>
    %1 = vector.shape_cast %0 : vector<1x16x512xbf16> to vector<16x512xbf16>
    %c0_2 = arith.constant 0 : index
    %c0_3 = arith.constant 0 : index
    %2 = vector.load %arg2[%c0_2, %c0_3] : memref<512x1536xbf16, #tpu.memory_space<vmem>>, vector<512x1536xbf16>
    %cst = arith.constant dense<0.000000e+00> : vector<16x1536xf32>
    %3 = tpu.matmul %1, %2, %cst {dimension_numbers = #tpu.dot_dimension_numbers<[1], [0], [0], [1], [0, 0, 1, 1], [], []>} : vector<16x512xbf16>, vector<512x1536xbf16>, vector<16x1536xf32> -> vector<16x1536xf32>
    %c0_4 = arith.constant 0 : index
    %c0_5 = arith.constant 0 : index
    %4 = vector.load %arg3[%c0_4, %c0_5] : memref<1x1536xf32, #tpu.memory_space<vmem>>, vector<1x1536xf32>
    %5 = vector.broadcast %4 : vector<1x1536xf32> to vector<16x1536xf32>
    %6 = arith.addf %3, %5 : vector<16x1536xf32>
    %c0_6 = arith.constant 0 : index
    %c0_7 = arith.constant 0 : index
    %7 = vector.load %arg6[%c0_6, %c0_7] : memref<16x128xf32, #tpu.memory_space<vmem>>, vector<16x128xf32>
    %8 = vector.shape_cast %7 : vector<16x128xf32> to vector<1x16x128xf32>
    %9 = vector.shape_cast %8 : vector<1x16x128xf32> to vector<16x128xf32>
    %c0_8 = arith.constant 0 : index
    %c0_9 = arith.constant 0 : index
    %10 = vector.load %arg7[%c0_8, %c0_9] : memref<16x128xf32, #tpu.memory_space<vmem>>, vector<16x128xf32>
    %11 = vector.shape_cast %10 : vector<16x128xf32> to vector<1x16x128xf32>
    %12 = vector.shape_cast %11 : vector<1x16x128xf32> to vector<16x128xf32>
    %13 = tpu.iota {dimensions = array<i32: 0>} : vector<16x16xi32>
    %14 = tpu.iota {dimensions = array<i32: 1>} : vector<16x16xi32>
    %15 = arith.cmpi sle, %14, %13 : vector<16x16xi32>
    %16 = vector.extract_strided_slice %6 {offsets = [0, 0], sizes = [16, 128], strides = [1, 1]} : vector<16x1536xf32> to vector<16x128xf32>
    %17 = vector.extract_strided_slice %6 {offsets = [0, 512], sizes = [16, 128], strides = [1, 1]} : vector<16x1536xf32> to vector<16x128xf32>
    %18 = vector.extract_strided_slice %6 {offsets = [0, 1024], sizes = [16, 128], strides = [1, 1]} : vector<16x1536xf32> to vector<16x128xf32>
    %19 = arith.mulf %16, %9 : vector<16x128xf32>
    %c64_i32 = arith.constant 64 : i32
    %20 = tpu.dynamic_rotate %16 by %c64_i32 dim 1 : vector<16x128xf32>, i32 -> vector<16x128xf32>
    %21 = arith.mulf %20, %12 : vector<16x128xf32>
    %22 = arith.addf %19, %21 : vector<16x128xf32>
    %23 = arith.mulf %17, %9 : vector<16x128xf32>
    %c64_i32_10 = arith.constant 64 : i32
    %24 = tpu.dynamic_rotate %17 by %c64_i32_10 dim 1 : vector<16x128xf32>, i32 -> vector<16x128xf32>
    %25 = arith.mulf %24, %12 : vector<16x128xf32>
    %26 = arith.addf %23, %25 : vector<16x128xf32>
    %27 = vector.shape_cast %22 : vector<16x128xf32> to vector<1x16x128xf32>
    %28 = arith.truncf %27 : vector<1x16x128xf32> to vector<1x16x128xbf16>
    %29 = vector.shape_cast %26 : vector<16x128xf32> to vector<1x16x128xf32>
    %30 = arith.truncf %29 : vector<1x16x128xf32> to vector<1x16x128xbf16>
    %31 = vector.shape_cast %18 : vector<16x128xf32> to vector<1x16x128xf32>
    %32 = arith.truncf %31 : vector<1x16x128xf32> to vector<1x16x128xbf16>
    "tpu.trace_start"() <{level = 10 : i32, message = "bqd,bkd->bqk"}> : () -> ()
    %cst_11 = arith.constant dense<0.000000e+00> : vector<1x16x16xf32>
    %33 = tpu.matmul %28, %30, %cst_11 {dimension_numbers = #tpu.dot_dimension_numbers<[2], [2], [1], [1], [0, 0, 0, 1, 1, 1], [0], [0]>} : vector<1x16x128xbf16>, vector<1x16x128xbf16>, vector<1x16x16xf32> -> vector<1x16x16xf32>
    %cst_12 = arith.constant -1.000000e+30 : f32
    "tpu.trace_stop"() : () -> ()
    %34 = vector.shape_cast %15 : vector<16x16xi1> to vector<1x16x16xi1>
    %35 = vector.broadcast %cst_12 : f32 to vector<1x16x16xf32>
    %36 = arith.select %34, %33, %35 : vector<1x16x16xi1>, vector<1x16x16xf32>
    %cst_13 = arith.constant dense<0xFF800000> : vector<1x16xf32>
    %37 = vector.multi_reduction <maximumf>, %36, %cst_13 [2] : vector<1x16x16xf32> to vector<1x16xf32>
    %38 = vector.shape_cast %37 : vector<1x16xf32> to vector<1x16x1xf32>
    %39 = vector.broadcast %38 : vector<1x16x1xf32> to vector<1x16x16xf32>
    %40 = arith.subf %36, %39 : vector<1x16x16xf32>
    %41 = math.exp %40 : vector<1x16x16xf32>
    %cst_14 = arith.constant dense<0.000000e+00> : vector<1x16xf32>
    %42 = vector.multi_reduction <add>, %41, %cst_14 [2] : vector<1x16x16xf32> to vector<1x16xf32>
    %43 = vector.shape_cast %42 : vector<1x16xf32> to vector<1x16x1xf32>
    %44 = tpu.reciprocal %43 {approx = true} : vector<1x16x1xf32> -> vector<1x16x1xf32>
    %45 = vector.broadcast %44 : vector<1x16x1xf32> to vector<1x16x16xf32>
    %46 = arith.mulf %41, %45 : vector<1x16x16xf32>
    %47 = arith.truncf %46 : vector<1x16x16xf32> to vector<1x16x16xbf16>
    "tpu.trace_start"() <{level = 10 : i32, message = "bqk,bkd->bqd"}> : () -> ()
    %cst_15 = arith.constant dense<0.000000e+00> : vector<1x16x128xf32>
    %48 = tpu.matmul %47, %32, %cst_15 {dimension_numbers = #tpu.dot_dimension_numbers<[2], [1], [1], [2], [0, 0, 0, 1, 1, 2], [0], [0]>} : vector<1x16x16xbf16>, vector<1x16x128xbf16>, vector<1x16x128xf32> -> vector<1x16x128xf32>
    "tpu.trace_stop"() : () -> ()
    %49 = vector.shape_cast %48 : vector<1x16x128xf32> to vector<16x128xf32>
    %50 = arith.truncf %49 : vector<16x128xf32> to vector<16x128xbf16>
    %51 = vector.extract_strided_slice %6 {offsets = [0, 128], sizes = [16, 128], strides = [1, 1]} : vector<16x1536xf32> to vector<16x128xf32>
    %52 = vector.extract_strided_slice %6 {offsets = [0, 640], sizes = [16, 128], strides = [1, 1]} : vector<16x1536xf32> to vector<16x128xf32>
    %53 = vector.extract_strided_slice %6 {offsets = [0, 1152], sizes = [16, 128], strides = [1, 1]} : vector<16x1536xf32> to vector<16x128xf32>
    %54 = arith.mulf %51, %9 : vector<16x128xf32>
    %c64_i32_16 = arith.constant 64 : i32
    %55 = tpu.dynamic_rotate %51 by %c64_i32_16 dim 1 : vector<16x128xf32>, i32 -> vector<16x128xf32>
    %56 = arith.mulf %55, %12 : vector<16x128xf32>
    %57 = arith.addf %54, %56 : vector<16x128xf32>
    %58 = arith.mulf %52, %9 : vector<16x128xf32>
    %c64_i32_17 = arith.constant 64 : i32
    %59 = tpu.dynamic_rotate %52 by %c64_i32_17 dim 1 : vector<16x128xf32>, i32 -> vector<16x128xf32>
    %60 = arith.mulf %59, %12 : vector<16x128xf32>
    %61 = arith.addf %58, %60 : vector<16x128xf32>
    %62 = vector.shape_cast %57 : vector<16x128xf32> to vector<1x16x128xf32>
    %63 = arith.truncf %62 : vector<1x16x128xf32> to vector<1x16x128xbf16>
    %64 = vector.shape_cast %61 : vector<16x128xf32> to vector<1x16x128xf32>
    %65 = arith.truncf %64 : vector<1x16x128xf32> to vector<1x16x128xbf16>
    %66 = vector.shape_cast %53 : vector<16x128xf32> to vector<1x16x128xf32>
    %67 = arith.truncf %66 : vector<1x16x128xf32> to vector<1x16x128xbf16>
    "tpu.trace_start"() <{level = 10 : i32, message = "bqd,bkd->bqk"}> : () -> ()
    %cst_18 = arith.constant dense<0.000000e+00> : vector<1x16x16xf32>
    %68 = tpu.matmul %63, %65, %cst_18 {dimension_numbers = #tpu.dot_dimension_numbers<[2], [2], [1], [1], [0, 0, 0, 1, 1, 1], [0], [0]>} : vector<1x16x128xbf16>, vector<1x16x128xbf16>, vector<1x16x16xf32> -> vector<1x16x16xf32>
    %cst_19 = arith.constant -1.000000e+30 : f32
    "tpu.trace_stop"() : () -> ()
    %69 = vector.shape_cast %15 : vector<16x16xi1> to vector<1x16x16xi1>
    %70 = vector.broadcast %cst_19 : f32 to vector<1x16x16xf32>
    %71 = arith.select %69, %68, %70 : vector<1x16x16xi1>, vector<1x16x16xf32>
    %cst_20 = arith.constant dense<0xFF800000> : vector<1x16xf32>
    %72 = vector.multi_reduction <maximumf>, %71, %cst_20 [2] : vector<1x16x16xf32> to vector<1x16xf32>
    %73 = vector.shape_cast %72 : vector<1x16xf32> to vector<1x16x1xf32>
    %74 = vector.broadcast %73 : vector<1x16x1xf32> to vector<1x16x16xf32>
    %75 = arith.subf %71, %74 : vector<1x16x16xf32>
    %76 = math.exp %75 : vector<1x16x16xf32>
    %cst_21 = arith.constant dense<0.000000e+00> : vector<1x16xf32>
    %77 = vector.multi_reduction <add>, %76, %cst_21 [2] : vector<1x16x16xf32> to vector<1x16xf32>
    %78 = vector.shape_cast %77 : vector<1x16xf32> to vector<1x16x1xf32>
    %79 = tpu.reciprocal %78 {approx = true} : vector<1x16x1xf32> -> vector<1x16x1xf32>
    %80 = vector.broadcast %79 : vector<1x16x1xf32> to vector<1x16x16xf32>
    %81 = arith.mulf %76, %80 : vector<1x16x16xf32>
    %82 = arith.truncf %81 : vector<1x16x16xf32> to vector<1x16x16xbf16>
    "tpu.trace_start"() <{level = 10 : i32, message = "bqk,bkd->bqd"}> : () -> ()
    %cst_22 = arith.constant dense<0.000000e+00> : vector<1x16x128xf32>
    %83 = tpu.matmul %82, %67, %cst_22 {dimension_numbers = #tpu.dot_dimension_numbers<[2], [1], [1], [2], [0, 0, 0, 1, 1, 2], [0], [0]>} : vector<1x16x16xbf16>, vector<1x16x128xbf16>, vector<1x16x128xf32> -> vector<1x16x128xf32>
    "tpu.trace_stop"() : () -> ()
    %84 = vector.shape_cast %83 : vector<1x16x128xf32> to vector<16x128xf32>
    %85 = arith.truncf %84 : vector<16x128xf32> to vector<16x128xbf16>
    %86 = vector.extract_strided_slice %6 {offsets = [0, 256], sizes = [16, 128], strides = [1, 1]} : vector<16x1536xf32> to vector<16x128xf32>
    %87 = vector.extract_strided_slice %6 {offsets = [0, 768], sizes = [16, 128], strides = [1, 1]} : vector<16x1536xf32> to vector<16x128xf32>
    %88 = vector.extract_strided_slice %6 {offsets = [0, 1280], sizes = [16, 128], strides = [1, 1]} : vector<16x1536xf32> to vector<16x128xf32>
    %89 = arith.mulf %86, %9 : vector<16x128xf32>
    %c64_i32_23 = arith.constant 64 : i32
    %90 = tpu.dynamic_rotate %86 by %c64_i32_23 dim 1 : vector<16x128xf32>, i32 -> vector<16x128xf32>
    %91 = arith.mulf %90, %12 : vector<16x128xf32>
    %92 = arith.addf %89, %91 : vector<16x128xf32>
    %93 = arith.mulf %87, %9 : vector<16x128xf32>
    %c64_i32_24 = arith.constant 64 : i32
    %94 = tpu.dynamic_rotate %87 by %c64_i32_24 dim 1 : vector<16x128xf32>, i32 -> vector<16x128xf32>
    %95 = arith.mulf %94, %12 : vector<16x128xf32>
    %96 = arith.addf %93, %95 : vector<16x128xf32>
    %97 = vector.shape_cast %92 : vector<16x128xf32> to vector<1x16x128xf32>
    %98 = arith.truncf %97 : vector<1x16x128xf32> to vector<1x16x128xbf16>
    %99 = vector.shape_cast %96 : vector<16x128xf32> to vector<1x16x128xf32>
    %100 = arith.truncf %99 : vector<1x16x128xf32> to vector<1x16x128xbf16>
    %101 = vector.shape_cast %88 : vector<16x128xf32> to vector<1x16x128xf32>
    %102 = arith.truncf %101 : vector<1x16x128xf32> to vector<1x16x128xbf16>
    "tpu.trace_start"() <{level = 10 : i32, message = "bqd,bkd->bqk"}> : () -> ()
    %cst_25 = arith.constant dense<0.000000e+00> : vector<1x16x16xf32>
    %103 = tpu.matmul %98, %100, %cst_25 {dimension_numbers = #tpu.dot_dimension_numbers<[2], [2], [1], [1], [0, 0, 0, 1, 1, 1], [0], [0]>} : vector<1x16x128xbf16>, vector<1x16x128xbf16>, vector<1x16x16xf32> -> vector<1x16x16xf32>
    %cst_26 = arith.constant -1.000000e+30 : f32
    "tpu.trace_stop"() : () -> ()
    %104 = vector.shape_cast %15 : vector<16x16xi1> to vector<1x16x16xi1>
    %105 = vector.broadcast %cst_26 : f32 to vector<1x16x16xf32>
    %106 = arith.select %104, %103, %105 : vector<1x16x16xi1>, vector<1x16x16xf32>
    %cst_27 = arith.constant dense<0xFF800000> : vector<1x16xf32>
    %107 = vector.multi_reduction <maximumf>, %106, %cst_27 [2] : vector<1x16x16xf32> to vector<1x16xf32>
    %108 = vector.shape_cast %107 : vector<1x16xf32> to vector<1x16x1xf32>
    %109 = vector.broadcast %108 : vector<1x16x1xf32> to vector<1x16x16xf32>
    %110 = arith.subf %106, %109 : vector<1x16x16xf32>
    %111 = math.exp %110 : vector<1x16x16xf32>
    %cst_28 = arith.constant dense<0.000000e+00> : vector<1x16xf32>
    %112 = vector.multi_reduction <add>, %111, %cst_28 [2] : vector<1x16x16xf32> to vector<1x16xf32>
    %113 = vector.shape_cast %112 : vector<1x16xf32> to vector<1x16x1xf32>
    %114 = tpu.reciprocal %113 {approx = true} : vector<1x16x1xf32> -> vector<1x16x1xf32>
    %115 = vector.broadcast %114 : vector<1x16x1xf32> to vector<1x16x16xf32>
    %116 = arith.mulf %111, %115 : vector<1x16x16xf32>
    %117 = arith.truncf %116 : vector<1x16x16xf32> to vector<1x16x16xbf16>
    "tpu.trace_start"() <{level = 10 : i32, message = "bqk,bkd->bqd"}> : () -> ()
    %cst_29 = arith.constant dense<0.000000e+00> : vector<1x16x128xf32>
    %118 = tpu.matmul %117, %102, %cst_29 {dimension_numbers = #tpu.dot_dimension_numbers<[2], [1], [1], [2], [0, 0, 0, 1, 1, 2], [0], [0]>} : vector<1x16x16xbf16>, vector<1x16x128xbf16>, vector<1x16x128xf32> -> vector<1x16x128xf32>
    "tpu.trace_stop"() : () -> ()
    %119 = vector.shape_cast %118 : vector<1x16x128xf32> to vector<16x128xf32>
    %120 = arith.truncf %119 : vector<16x128xf32> to vector<16x128xbf16>
    %121 = vector.extract_strided_slice %6 {offsets = [0, 384], sizes = [16, 128], strides = [1, 1]} : vector<16x1536xf32> to vector<16x128xf32>
    %122 = vector.extract_strided_slice %6 {offsets = [0, 896], sizes = [16, 128], strides = [1, 1]} : vector<16x1536xf32> to vector<16x128xf32>
    %123 = vector.extract_strided_slice %6 {offsets = [0, 1408], sizes = [16, 128], strides = [1, 1]} : vector<16x1536xf32> to vector<16x128xf32>
    %124 = arith.mulf %121, %9 : vector<16x128xf32>
    %c64_i32_30 = arith.constant 64 : i32
    %125 = tpu.dynamic_rotate %121 by %c64_i32_30 dim 1 : vector<16x128xf32>, i32 -> vector<16x128xf32>
    %126 = arith.mulf %125, %12 : vector<16x128xf32>
    %127 = arith.addf %124, %126 : vector<16x128xf32>
    %128 = arith.mulf %122, %9 : vector<16x128xf32>
    %c64_i32_31 = arith.constant 64 : i32
    %129 = tpu.dynamic_rotate %122 by %c64_i32_31 dim 1 : vector<16x128xf32>, i32 -> vector<16x128xf32>
    %130 = arith.mulf %129, %12 : vector<16x128xf32>
    %131 = arith.addf %128, %130 : vector<16x128xf32>
    %132 = vector.shape_cast %127 : vector<16x128xf32> to vector<1x16x128xf32>
    %133 = arith.truncf %132 : vector<1x16x128xf32> to vector<1x16x128xbf16>
    %134 = vector.shape_cast %131 : vector<16x128xf32> to vector<1x16x128xf32>
    %135 = arith.truncf %134 : vector<1x16x128xf32> to vector<1x16x128xbf16>
    %136 = vector.shape_cast %123 : vector<16x128xf32> to vector<1x16x128xf32>
    %137 = arith.truncf %136 : vector<1x16x128xf32> to vector<1x16x128xbf16>
    "tpu.trace_start"() <{level = 10 : i32, message = "bqd,bkd->bqk"}> : () -> ()
    %cst_32 = arith.constant dense<0.000000e+00> : vector<1x16x16xf32>
    %138 = tpu.matmul %133, %135, %cst_32 {dimension_numbers = #tpu.dot_dimension_numbers<[2], [2], [1], [1], [0, 0, 0, 1, 1, 1], [0], [0]>} : vector<1x16x128xbf16>, vector<1x16x128xbf16>, vector<1x16x16xf32> -> vector<1x16x16xf32>
    %cst_33 = arith.constant -1.000000e+30 : f32
    "tpu.trace_stop"() : () -> ()
    %139 = vector.shape_cast %15 : vector<16x16xi1> to vector<1x16x16xi1>
    %140 = vector.broadcast %cst_33 : f32 to vector<1x16x16xf32>
    %141 = arith.select %139, %138, %140 : vector<1x16x16xi1>, vector<1x16x16xf32>
    %cst_34 = arith.constant dense<0xFF800000> : vector<1x16xf32>
    %142 = vector.multi_reduction <maximumf>, %141, %cst_34 [2] : vector<1x16x16xf32> to vector<1x16xf32>
    %143 = vector.shape_cast %142 : vector<1x16xf32> to vector<1x16x1xf32>
    %144 = vector.broadcast %143 : vector<1x16x1xf32> to vector<1x16x16xf32>
    %145 = arith.subf %141, %144 : vector<1x16x16xf32>
    %146 = math.exp %145 : vector<1x16x16xf32>
    %cst_35 = arith.constant dense<0.000000e+00> : vector<1x16xf32>
    %147 = vector.multi_reduction <add>, %146, %cst_35 [2] : vector<1x16x16xf32> to vector<1x16xf32>
    %148 = vector.shape_cast %147 : vector<1x16xf32> to vector<1x16x1xf32>
    %149 = tpu.reciprocal %148 {approx = true} : vector<1x16x1xf32> -> vector<1x16x1xf32>
    %150 = vector.broadcast %149 : vector<1x16x1xf32> to vector<1x16x16xf32>
    %151 = arith.mulf %146, %150 : vector<1x16x16xf32>
    %152 = arith.truncf %151 : vector<1x16x16xf32> to vector<1x16x16xbf16>
    "tpu.trace_start"() <{level = 10 : i32, message = "bqk,bkd->bqd"}> : () -> ()
    %cst_36 = arith.constant dense<0.000000e+00> : vector<1x16x128xf32>
    %153 = tpu.matmul %152, %137, %cst_36 {dimension_numbers = #tpu.dot_dimension_numbers<[2], [1], [1], [2], [0, 0, 0, 1, 1, 2], [0], [0]>} : vector<1x16x16xbf16>, vector<1x16x128xbf16>, vector<1x16x128xf32> -> vector<1x16x128xf32>
    "tpu.trace_stop"() : () -> ()
    %154 = vector.shape_cast %153 : vector<1x16x128xf32> to vector<16x128xf32>
    %155 = arith.truncf %154 : vector<16x128xf32> to vector<16x128xbf16>
    %156 = tpu.concatenate %50, %85, %120, %155 in 1 : vector<16x128xbf16>, vector<16x128xbf16>, vector<16x128xbf16>, vector<16x128xbf16> -> vector<16x512xbf16>
    %c0_37 = arith.constant 0 : index
    %c0_38 = arith.constant 0 : index
    %157 = vector.load %arg4[%c0_37, %c0_38] : memref<512x512xbf16, #tpu.memory_space<vmem>>, vector<512x512xbf16>
    %cst_39 = arith.constant dense<0.000000e+00> : vector<16x512xf32>
    %158 = tpu.matmul %156, %157, %cst_39 {dimension_numbers = #tpu.dot_dimension_numbers<[1], [0], [0], [1], [0, 0, 1, 1], [], []>} : vector<16x512xbf16>, vector<512x512xbf16>, vector<16x512xf32> -> vector<16x512xf32>
    %c0_40 = arith.constant 0 : index
    %c0_41 = arith.constant 0 : index
    %159 = vector.load %arg5[%c0_40, %c0_41] : memref<1x512xf32, #tpu.memory_space<vmem>>, vector<1x512xf32>
    %160 = vector.broadcast %159 : vector<1x512xf32> to vector<16x512xf32>
    %161 = arith.addf %158, %160 : vector<16x512xf32>
    %162 = vector.shape_cast %161 : vector<16x512xf32> to vector<1x16x512xf32>
    %c0_42 = arith.constant 0 : index
    %c0_43 = arith.constant 0 : index
    %c0_44 = arith.constant 0 : index
    %163 = vector.load %arg8[%c0_42, %c0_43, %c0_44] : memref<1x16x512xf32, #tpu.memory_space<vmem>>, vector<1x16x512xf32>
    tpu.vector_store %arg8[%c0_42, %c0_43, %c0_44], %162 {strides = array<i32>} : memref<1x16x512xf32, #tpu.memory_space<vmem>>, vector<1x16x512xf32>,
    return
  }
  func.func @transform_0(%arg0: i32) -> (i32, i32, i32) {
    %c0_i32 = arith.constant 0 : i32
    %c0_i32_0 = arith.constant 0 : i32
    %c0_i32_1 = arith.constant 0 : i32
    return %arg0, %c0_i32, %c0_i32_0 : i32, i32, i32
  }
  func.func @transform_1(%arg0: i32) -> (i32, i32) {
    %c0_i32 = arith.constant 0 : i32
    %c0_i32_0 = arith.constant 0 : i32
    %c0_i32_1 = arith.constant 0 : i32
    return %c0_i32, %c0_i32_0 : i32, i32
  }
  func.func @transform_2(%arg0: i32) -> (i32, i32) {
    %c0_i32 = arith.constant 0 : i32
    %c0_i32_0 = arith.constant 0 : i32
    %c0_i32_1 = arith.constant 0 : i32
    return %c0_i32, %c0_i32_0 : i32, i32
  }
  func.func @transform_3(%arg0: i32) -> (i32, i32) {
    %c0_i32 = arith.constant 0 : i32
    %c0_i32_0 = arith.constant 0 : i32
    %c0_i32_1 = arith.constant 0 : i32
    return %c0_i32, %c0_i32_0 : i32, i32
  }
  func.func @transform_4(%arg0: i32) -> (i32, i32) {
    %c0_i32 = arith.constant 0 : i32
    %c0_i32_0 = arith.constant 0 : i32
    %c0_i32_1 = arith.constant 0 : i32
    return %c0_i32, %c0_i32_0 : i32, i32
  }
  func.func @transform_5(%arg0: i32) -> (i32, i32) {
    %c0_i32 = arith.constant 0 : i32
    %c0_i32_0 = arith.constant 0 : i32
    %c0_i32_1 = arith.constant 0 : i32
    return %c0_i32, %c0_i32_0 : i32, i32
  }
  func.func @transform_6(%arg0: i32) -> (i32, i32) {
    %c0_i32 = arith.constant 0 : i32
    %c0_i32_0 = arith.constant 0 : i32
    %c0_i32_1 = arith.constant 0 : i32
    return %c0_i32, %c0_i32_0 : i32, i32
  }
  func.func @transform_7(%arg0: i32) -> (i32, i32, i32) {
    %c0_i32 = arith.constant 0 : i32
    %c0_i32_0 = arith.constant 0 : i32
    %c0_i32_1 = arith.constant 0 : i32
    return %arg0, %c0_i32, %c0_i32_0 : i32, i32, i32
  }
}

</mosaic_0001>

<llo_original>
// kernel: tpu_custom_call.1
$region0: #{tpu_custom_call.1}
  #allocation0 [shape = 'u32[]', space=smem, size = 0x4, offset = 0x4, fixed_abs, tag = 'smem constant byte address 0x4 - core index']
  #allocation1 [shape = 'u32[144,128]{1,0:T(1,128)}', space=vmem, size = 0x12000, scoped, tag = 'internal scratch']
  %s0 = inlined_call_operand.hbm [shape: bf16[2,16,512], index: 0, kind: input, shape index: {}]
  %s1 = inlined_call_operand.hbm [shape: bf16[512,1536], index: 1, kind: input, shape index: {}]
  %s2 = inlined_call_operand.hbm [shape: f32[1,1536], index: 2, kind: input, shape index: {}]
  %s3 = inlined_call_operand.hbm [shape: bf16[512,512], index: 3, kind: input, shape index: {}]
  %s4 = inlined_call_operand.hbm [shape: f32[1,512], index: 4, kind: input, shape index: {}]
  %s5 = inlined_call_operand.hbm [shape: f32[16,128], index: 5, kind: input, shape index: {}]
  %s6 = inlined_call_operand.hbm [shape: f32[16,128], index: 6, kind: input, shape index: {}]
  %s7 = inlined_call_operand.hbm [shape: f32[2,16,512], index: 7, kind: output, shape index: {}]
  %s8 = sld [smem:[#allocation0]]
  $region89: #{tpu_custom_call.1} parent=0
    _
  %s10 = ssub.s32 1, %s8
  %s11 = scalar_select 0, %s10, %s8
  $region1: #{tpu_custom_call.1} parent=0
    #allocation2 [shape = 'u8[32768]{0}', space=vmem, size = 0x8000, scoped, tag = 'input window, operand 0']
    #allocation3 [shape = 's32[2]{0}', space=sflag, size = 0x8, scoped, tag = 'scoped memory for tpu_custom_call.1']
    #allocation4 [shape = 's32[2]{0}', space=sflag, size = 0x8, scoped, tag = 'scoped memory for tpu_custom_call.1']
    #allocation5 [shape = 'u8[1572864]{0}', space=vmem, size = 0x180000, scoped, tag = 'input window, operand 1, single buffered']
    #allocation6 [shape = 's32[1]{0}', space=sflag, size = 0x4, scoped, tag = 'scoped memory for tpu_custom_call.1']
    #allocation7 [shape = 'u8[6144]{0}', space=vmem, size = 0x1800, scoped, tag = 'input window, operand 2, single buffered']
    #allocation8 [shape = 'u8[524288]{0}', space=vmem, size = 0x80000, scoped, tag = 'input window, operand 3, single buffered']
    #allocation9 [shape = 's32[1]{0}', space=sflag, size = 0x4, scoped, tag = 'scoped memory for tpu_custom_call.1']
    #allocation10 [shape = 'u8[2048]{0}', space=vmem, size = 0x800, scoped, tag = 'input window, operand 4, single buffered']
    #allocation11 [shape = 'u8[8192]{0}', space=vmem, size = 0x2000, scoped, tag = 'input window, operand 5, single buffered']
    #allocation12 [shape = 's32[1]{0}', space=sflag, size = 0x4, scoped, tag = 'scoped memory for tpu_custom_call.1']
    #allocation13 [shape = 'u8[8192]{0}', space=vmem, size = 0x2000, scoped, tag = 'input window, operand 6, single buffered']
    #allocation14 [shape = 'u8[65536]{0}', space=vmem, size = 0x10000, scoped, tag = 'output window, operand 0']
    %12 = vsyncpa [#allocation3], 0
    %s13 = scalar_lea.sflag [#allocation3], 1
    %14 = vsyncpa %s13, 0
    %15 = vsyncpa [#allocation6], 0
    %16 = vsyncpa [#allocation9], 0
    %17 = vsyncpa [#allocation12], 0
    %18 = vsyncpa [#allocation4], 0
    %s19 = scalar_lea.sflag [#allocation4], 1
    %20 = vsyncpa %s19, 0
    loop: start=0, step=1, limit=4
    $region2: #{tpu_custom_call.1} parent=1 // loop_pre_header
      _
    $region3: #{tpu_custom_call.1} parent=1 // loop_header
      %s22 = sphi 0, %s26
      %p23 = scmp.ge.s32.totalorder %s22, 4
      %s32 = sphi 0, %s34
      %s35 = sphi 0, %s32
      %s36 = sphi 0, %s35
      %s52 = sphi 0, %s36
      %s56 = sphi 0, %s56
      %s58 = sphi 0, %s56
      %s59 = sphi 0, %s58
      %s73 = sphi 0, %s59
      %s77 = sphi 0, %s77
      %s79 = sphi 0, %s77
      %s80 = sphi 0, %s79
      %s94 = sphi 0, %s80
      %s98 = sphi 0, %s98
      %s100 = sphi 0, %s98
      %s101 = sphi 0, %s100
      %s115 = sphi 0, %s101
      %s119 = sphi 0, %s119
      %s121 = sphi 0, %s119
      %s122 = sphi 0, %s121
      %s136 = sphi 0, %s122
      %s140 = sphi 0, %s140
      %s142 = sphi 0, %s140
      %s143 = sphi 0, %s142
      %s157 = sphi 0, %s143
      %s161 = sphi 0, %s161
      %s163 = sphi 0, %s161
      %s164 = sphi 0, %s163
      %s178 = sphi 0, %s164
      %s184 = sphi 0, %s186
      %s187 = sphi 0, %s184
      %s188 = sphi 0, %s187
      %s204 = sphi 0, %s188
    $region4: #{tpu_custom_call.1} parent=1 // loop_header_branch
      %25 = sbr.rel (%p23) target = $region8
    $region5: #{tpu_custom_call.1} parent=1 // loop_body
      %s27 = ssub.s32 %s22, 1
      %s28 = ssub.s32 %s22, 2
      %s29 = sadd.s32 %s22, 1
      %s30 = ssub.s32 %s22, %s29
      %p31 = scmp.eq.s32.totalorder %s30, 0
      %s33 = sadd.s32 %s32, 1
      %s34 = scalar_select %p31, %s32, %s33
      %p37 = pneg %p31
      %p38 = scmp.eq.s32.totalorder %s22, 1
      %p39 = por %p37, %p38
      %p40 = scmp.ne.s32.totalorder %s32, %s35
      %p41 = scmp.eq.s32.totalorder %s22, 0
      %p42 = por %p40, %p41
      %p43 = scmp.ne.s32.totalorder %s32, %s35
      %p44 = scmp.eq.s32.totalorder %s27, 1
      %p45 = por %p43, %p44
      %p46 = scmp.ne.s32.totalorder %s35, %s36
      %p47 = scmp.eq.s32.totalorder %s27, 0
      %p48 = por %p46, %p47
      %p49 = scmp.ne.s32.totalorder %s35, %s36
      %p50 = scmp.eq.s32.totalorder %s28, 1
      %p51 = por %p49, %p50
      %p53 = scmp.ne.s32.totalorder %s36, %s52
      %p54 = scmp.eq.s32.totalorder %s28, 0
      %p55 = por %p53, %p54
      %s57 = sadd.s32 %s56, 1
      %p60 = scmp.eq.s32.totalorder %s22, 1
      %p61 = scmp.ne.s32.totalorder %s56, %s58
      %p62 = scmp.eq.s32.totalorder %s22, 0
      %p63 = por %p61, %p62
      %p64 = scmp.ne.s32.totalorder %s56, %s58
      %p65 = scmp.eq.s32.totalorder %s27, 1
      %p66 = por %p64, %p65
      %p67 = scmp.ne.s32.totalorder %s58, %s59
      %p68 = scmp.eq.s32.totalorder %s27, 0
      %p69 = por %p67, %p68
      %p70 = scmp.ne.s32.totalorder %s58, %s59
      %p71 = scmp.eq.s32.totalorder %s28, 1
      %p72 = por %p70, %p71
      %p74 = scmp.ne.s32.totalorder %s59, %s73
      %p75 = scmp.eq.s32.totalorder %s28, 0
      %p76 = por %p74, %p75
      %s78 = sadd.s32 %s77, 1
      %p81 = scmp.eq.s32.totalorder %s22, 1
      %p82 = scmp.ne.s32.totalorder %s77, %s79
      %p83 = scmp.eq.s32.totalorder %s22, 0
      %p84 = por %p82, %p83
      %p85 = scmp.ne.s32.totalorder %s77, %s79
      %p86 = scmp.eq.s32.totalorder %s27, 1
      %p87 = por %p85, %p86
      %p88 = scmp.ne.s32.totalorder %s79, %s80
      %p89 = scmp.eq.s32.totalorder %s27, 0
      %p90 = por %p88, %p89
      %p91 = scmp.ne.s32.totalorder %s79, %s80
      %p92 = scmp.eq.s32.totalorder %s28, 1
      %p93 = por %p91, %p92
      %p95 = scmp.ne.s32.totalorder %s80, %s94
      %p96 = scmp.eq.s32.totalorder %s28, 0
      %p97 = por %p95, %p96
      %s99 = sadd.s32 %s98, 1
      %p102 = scmp.eq.s32.totalorder %s22, 1
      %p103 = scmp.ne.s32.totalorder %s98, %s100
      %p104 = scmp.eq.s32.totalorder %s22, 0
      %p105 = por %p103, %p104
      %p106 = scmp.ne.s32.totalorder %s98, %s100
      %p107 = scmp.eq.s32.totalorder %s27, 1
      %p108 = por %p106, %p107
      %p109 = scmp.ne.s32.totalorder %s100, %s101
      %p110 = scmp.eq.s32.totalorder %s27, 0
      %p111 = por %p109, %p110
      %p112 = scmp.ne.s32.totalorder %s100, %s101
      %p113 = scmp.eq.s32.totalorder %s28, 1
      %p114 = por %p112, %p113
      %p116 = scmp.ne.s32.totalorder %s101, %s115
      %p117 = scmp.eq.s32.totalorder %s28, 0
      %p118 = por %p116, %p117
      %s120 = sadd.s32 %s119, 1
      %p123 = scmp.eq.s32.totalorder %s22, 1
      %p124 = scmp.ne.s32.totalorder %s119, %s121
      %p125 = scmp.eq.s32.totalorder %s22, 0
      %p126 = por %p124, %p125
      %p127 = scmp.ne.s32.totalorder %s119, %s121
      %p128 = scmp.eq.s32.totalorder %s27, 1
      %p129 = por %p127, %p128
      %p130 = scmp.ne.s32.totalorder %s121, %s122
      %p131 = scmp.eq.s32.totalorder %s27, 0
      %p132 = por %p130, %p131
      %p133 = scmp.ne.s32.totalorder %s121, %s122
      %p134 = scmp.eq.s32.totalorder %s28, 1
      %p135 = por %p133, %p134
      %p137 = scmp.ne.s32.totalorder %s122, %s136
      %p138 = scmp.eq.s32.totalorder %s28, 0
      %p139 = por %p137, %p138
      %s141 = sadd.s32 %s140, 1
      %p144 = scmp.eq.s32.totalorder %s22, 1
      %p145 = scmp.ne.s32.totalorder %s140, %s142
      %p146 = scmp.eq.s32.totalorder %s22, 0
      %p147 = por %p145, %p146
      %p148 = scmp.ne.s32.totalorder %s140, %s142
      %p149 = scmp.eq.s32.totalorder %s27, 1
      %p150 = por %p148, %p149
      %p151 = scmp.ne.s32.totalorder %s142, %s143
      %p152 = scmp.eq.s32.totalorder %s27, 0
      %p153 = por %p151, %p152
      %p154 = scmp.ne.s32.totalorder %s142, %s143
      %p155 = scmp.eq.s32.totalorder %s28, 1
      %p156 = por %p154, %p155
      %p158 = scmp.ne.s32.totalorder %s143, %s157
      %p159 = scmp.eq.s32.totalorder %s28, 0
      %p160 = por %p158, %p159
      %s162 = sadd.s32 %s161, 1
      %p165 = scmp.eq.s32.totalorder %s22, 1
      %p166 = scmp.ne.s32.totalorder %s161, %s163
      %p167 = scmp.eq.s32.totalorder %s22, 0
      %p168 = por %p166, %p167
      %p169 = scmp.ne.s32.totalorder %s161, %s163
      %p170 = scmp.eq.s32.totalorder %s27, 1
      %p171 = por %p169, %p170
      %p172 = scmp.ne.s32.totalorder %s163, %s164
      %p173 = scmp.eq.s32.totalorder %s27, 0
      %p174 = por %p172, %p173
      %p175 = scmp.ne.s32.totalorder %s163, %s164
      %p176 = scmp.eq.s32.totalorder %s28, 1
      %p177 = por %p175, %p176
      %p179 = scmp.ne.s32.totalorder %s164, %s178
      %p180 = scmp.eq.s32.totalorder %s28, 0
      %p181 = por %p179, %p180
      %s182 = ssub.s32 %s22, %s29
      %p183 = scmp.eq.s32.totalorder %s182, 0
      %s185 = sadd.s32 %s184, 1
      %s186 = scalar_select %p183, %s184, %s185
      %p189 = pneg %p183
      %p190 = scmp.eq.s32.totalorder %s22, 1
      %p191 = por %p189, %p190
      %p192 = scmp.ne.s32.totalorder %s184, %s187
      %p193 = scmp.eq.s32.totalorder %s22, 0
      %p194 = por %p192, %p193
      %p195 = scmp.ne.s32.totalorder %s184, %s187
      %p196 = scmp.eq.s32.totalorder %s27, 1
      %p197 = por %p195, %p196
      %p198 = scmp.ne.s32.totalorder %s187, %s188
      %p199 = scmp.eq.s32.totalorder %s27, 0
      %p200 = por %p198, %p199
      %p201 = scmp.ne.s32.totalorder %s187, %s188
      %p202 = scmp.eq.s32.totalorder %s28, 1
      %p203 = por %p201, %p202
      %p205 = scmp.ne.s32.totalorder %s188, %s204
      %p206 = scmp.eq.s32.totalorder %s28, 0
      %p207 = por %p205, %p206
      %p208 = scmp.le.s32.totalorder 1, %s22
      %p209 = scmp.lt.s32.totalorder %s22, 3
      %p210 = pnand %p208, %p209
      %p211 = pneg %p210
      // Predicated region
      $region9: #{tpu_custom_call.1} parent=5 // pred_check
        _
      $region10: #{tpu_custom_call.1} parent=5 // pred_check_branch
        %213 = sbr.rel (%p210) target = $region12
      $region11: #{tpu_custom_call.1} parent=5 // pred_region
        %s214 = ssub.s32 %s22, 1
        // Predicated region
        $region13: #{tpu_custom_call.1} parent=11 // pred_check
          %p215 = pneg %p69
        $region14: #{tpu_custom_call.1} parent=11 // pred_check_branch
          %217 = sbr.rel (%p215) target = $region16
        $region15: #{tpu_custom_call.1} parent=11 // pred_region
          %s219 = ssub.s32 49152, 49152
          %220 = vsyncadd [#allocation6], %s219
          %s221 = sshll.u32 [#allocation5], 4
          %s222 = int_to_ptr.vmem [resolvable:$true] %s221
          %227 = dma.hbm_to_vmem [thread:$0]  %s1, 49152, %s222, [#allocation6], 768, 768, 48
        $region16: #{tpu_custom_call.1} parent=11 // pred_fallthru
          _
        // Predicated region
        $region17: #{tpu_custom_call.1} parent=11 // pred_check
          %p228 = pneg %p90
        $region18: #{tpu_custom_call.1} parent=11 // pred_check_branch
          %230 = sbr.rel (%p228) target = $region20
        $region19: #{tpu_custom_call.1} parent=11 // pred_region
          %s232 = ssub.s32 192, 192
          %233 = vsyncadd [#allocation6], %s232
          %s235 = sshll.u32 [#allocation7], 4
          %s236 = int_to_ptr.vmem [resolvable:$true] %s235
          %238 = dma.hbm_to_vmem [thread:$0]  %s2, 192, %s236, [#allocation6]
        $region20: #{tpu_custom_call.1} parent=11 // pred_fallthru
          _
        // Predicated region
        $region21: #{tpu_custom_call.1} parent=11 // pred_check
          %p239 = pneg %p111
        $region22: #{tpu_custom_call.1} parent=11 // pred_check_branch
          %241 = sbr.rel (%p239) target = $region24
        $region23: #{tpu_custom_call.1} parent=11 // pred_region
          %s243 = ssub.s32 16384, 16384
          %244 = vsyncadd [#allocation9], %s243
          %s245 = sshll.u32 [#allocation8], 4
          %s246 = int_to_ptr.vmem [resolvable:$true] %s245
          %251 = dma.hbm_to_vmem [thread:$0]  %s3, 16384, %s246, [#allocation9], 256, 256, 16
        $region24: #{tpu_custom_call.1} parent=11 // pred_fallthru
          _
        // Predicated region
        $region25: #{tpu_custom_call.1} parent=11 // pred_check
          %p252 = pneg %p132
        $region26: #{tpu_custom_call.1} parent=11 // pred_check_branch
          %254 = sbr.rel (%p252) target = $region28
        $region27: #{tpu_custom_call.1} parent=11 // pred_region
          %s256 = ssub.s32 64, 64
          %257 = vsyncadd [#allocation9], %s256
          %s259 = sshll.u32 [#allocation10], 4
          %s260 = int_to_ptr.vmem [resolvable:$true] %s259
          %262 = dma.hbm_to_vmem [thread:$0]  %s4, 64, %s260, [#allocation9]
        $region28: #{tpu_custom_call.1} parent=11 // pred_fallthru
          _
        // Predicated region
        $region29: #{tpu_custom_call.1} parent=11 // pred_check
          %p263 = pneg %p153
        $region30: #{tpu_custom_call.1} parent=11 // pred_check_branch
          %265 = sbr.rel (%p263) target = $region32
        $region31: #{tpu_custom_call.1} parent=11 // pred_region
          %s267 = ssub.s32 256, 256
          %268 = vsyncadd [#allocation12], %s267
          %s269 = sshll.u32 [#allocation11], 4
          %s270 = int_to_ptr.vmem [resolvable:$true] %s269
          %275 = dma.hbm_to_vmem [thread:$0]  %s5, 256, %s270, [#allocation12], 128, 128, 8
        $region32: #{tpu_custom_call.1} parent=11 // pred_fallthru
          _
        // Predicated region
        $region33: #{tpu_custom_call.1} parent=11 // pred_check
          %p276 = pneg %p174
        $region34: #{tpu_custom_call.1} parent=11 // pred_check_branch
          %278 = sbr.rel (%p276) target = $region36
        $region35: #{tpu_custom_call.1} parent=11 // pred_region
          %s280 = ssub.s32 256, 256
          %281 = vsyncadd [#allocation12], %s280
          %s282 = sshll.u32 [#allocation13], 4
          %s283 = int_to_ptr.vmem [resolvable:$true] %s282
          %288 = dma.hbm_to_vmem [thread:$0]  %s6, 256, %s283, [#allocation12], 128, 128, 8
        $region36: #{tpu_custom_call.1} parent=11 // pred_fallthru
          _
      $region12: #{tpu_custom_call.1} parent=5 // pred_fallthru
        _
      %p289 = scmp.lt.s32.totalorder %s22, 2
      // Predicated region
      $region37: #{tpu_custom_call.1} parent=5 // pred_check
        %p290 = pneg %p289
      $region38: #{tpu_custom_call.1} parent=5 // pred_check_branch
        %292 = sbr.rel (%p290) target = $region40
      $region39: #{tpu_custom_call.1} parent=5 // pred_region
        // Predicated region
        $region41: #{tpu_custom_call.1} parent=39 // pred_check
          %p293 = pneg %p42
        $region42: #{tpu_custom_call.1} parent=39 // pred_check_branch
          %295 = sbr.rel (%p293) target = $region44
        $region43: #{tpu_custom_call.1} parent=39 // pred_region
          %s296 = sand.u32 %s32, 1
          %s297 = scalar_lea.sflag [#allocation3], %s296
          %s298 = sand.u32 %s32, 1
          %s299 = smul.addr %s298, 32
          %s300 = scalar_lea.vmem [#allocation2], %s299
          %s302 = ssub.s32 512, 512
          %303 = vsyncadd %s297, %s302
          %s304 = smul.addr %s22, 8
          %s305 = smul.addr %s304, 64
          %s306 = scalar_lea.hbm %s0, %s305
          %s307 = sshll.u32 %s300, 4
          %s308 = int_to_ptr.vmem [resolvable:$true] %s307
          %313 = dma.hbm_to_vmem [thread:$0]  %s306, 512, %s308, %s297, 256, 256, 16
        $region44: #{tpu_custom_call.1} parent=39 // pred_fallthru
          _
      $region40: #{tpu_custom_call.1} parent=5 // pred_fallthru
        _
      %p314 = scmp.le.s32.totalorder 1, %s22
      %p315 = scmp.lt.s32.totalorder %s22, 3
      %p316 = pnand %p314, %p315
      %p317 = pneg %p316
      // Predicated region
      $region45: #{tpu_custom_call.1} parent=5 // pred_check
        _
      $region46: #{tpu_custom_call.1} parent=5 // pred_check_branch
        %319 = sbr.rel (%p316) target = $region48
      $region47: #{tpu_custom_call.1} parent=5 // pred_region
        %s320 = ssub.s32 %s22, 1
        %s321 = sand.u32 %s35, 1
        %s322 = scalar_lea.sflag [#allocation3], %s321
        %s323 = sand.u32 %s35, 1
        %s324 = smul.addr %s323, 32
        %s325 = scalar_lea.vmem [#allocation2], %s324
        // Predicated region
        $region49: #{tpu_custom_call.1} parent=47 // pred_check
          %p326 = pneg %p48
        $region50: #{tpu_custom_call.1} parent=47 // pred_check_branch
          %328 = sbr.rel (%p326) target = $region52
        $region51: #{tpu_custom_call.1} parent=47 // pred_region
          %329 = dma.done %s322, 512
        $region52: #{tpu_custom_call.1} parent=47 // pred_fallthru
          _
        // Predicated region
        $region53: #{tpu_custom_call.1} parent=47 // pred_check
          %p330 = pneg %p69
        $region54: #{tpu_custom_call.1} parent=47 // pred_check_branch
          %332 = sbr.rel (%p330) target = $region56
        $region55: #{tpu_custom_call.1} parent=47 // pred_region
          %333 = dma.done [#allocation6], 49152
        $region56: #{tpu_custom_call.1} parent=47 // pred_fallthru
          _
        // Predicated region
        $region57: #{tpu_custom_call.1} parent=47 // pred_check
          %p334 = pneg %p90
        $region58: #{tpu_custom_call.1} parent=47 // pred_check_branch
          %336 = sbr.rel (%p334) target = $region60
        $region59: #{tpu_custom_call.1} parent=47 // pred_region
          %337 = dma.done [#allocation6], 192
        $region60: #{tpu_custom_call.1} parent=47 // pred_fallthru
          _
        // Predicated region
        $region61: #{tpu_custom_call.1} parent=47 // pred_check
          %p338 = pneg %p111
        $region62: #{tpu_custom_call.1} parent=47 // pred_check_branch
          %340 = sbr.rel (%p338) target = $region64
        $region63: #{tpu_custom_call.1} parent=47 // pred_region
          %341 = dma.done [#allocation9], 16384
        $region64: #{tpu_custom_call.1} parent=47 // pred_fallthru
          _
        // Predicated region
        $region65: #{tpu_custom_call.1} parent=47 // pred_check
          %p342 = pneg %p132
        $region66: #{tpu_custom_call.1} parent=47 // pred_check_branch
          %344 = sbr.rel (%p342) target = $region68
        $region67: #{tpu_custom_call.1} parent=47 // pred_region
          %345 = dma.done [#allocation9], 64
        $region68: #{tpu_custom_call.1} parent=47 // pred_fallthru
          _
        // Predicated region
        $region69: #{tpu_custom_call.1} parent=47 // pred_check
          %p346 = pneg %p153
        $region70: #{tpu_custom_call.1} parent=47 // pred_check_branch
          %348 = sbr.rel (%p346) target = $region72
        $region71: #{tpu_custom_call.1} parent=47 // pred_region
          %349 = dma.done [#allocation12], 256
        $region72: #{tpu_custom_call.1} parent=47 // pred_fallthru
          _
        // Predicated region
        $region73: #{tpu_custom_call.1} parent=47 // pred_check
          %p350 = pneg %p174
        $region74: #{tpu_custom_call.1} parent=47 // pred_check_branch
          %352 = sbr.rel (%p350) target = $region76
        $region75: #{tpu_custom_call.1} parent=47 // pred_region
          %353 = dma.done [#allocation12], 256
        $region76: #{tpu_custom_call.1} parent=47 // pred_fallthru
          _
        %s354 = sand.u32 %s35, 1
        %s355 = scalar_lea.sflag [#allocation3], %s354
        %s356 = sand.u32 %s35, 1
        %s357 = smul.addr %s356, 32
        %s358 = scalar_lea.vmem [#allocation2], %s357
        %p359 = pneg %p48
        %p360 = pneg %p45
        %p361 = pneg %p69
        %p362 = pneg %p66
        %p363 = pneg %p90
        %p364 = pneg %p87
        %p365 = pneg %p111
        %p366 = pneg %p108
        %p367 = pneg %p132
        %p368 = pneg %p129
        %p369 = pneg %p153
        %p370 = pneg %p150
        %p371 = pneg %p174
        %p372 = pneg %p171
        %p373 = pneg %p200
        %p374 = pneg %p197
        %s375 = sand.u32 %s187, 1
        %s376 = scalar_lea.sflag [#allocation4], %s375
        %s377 = sand.u32 %s187, 1
        %s378 = smul.addr %s377, 64
        %s379 = scalar_lea.vmem [#allocation14], %s378
        %v381 = vld [vmem:[%s325] sm:$0xff]
        %v382 = vld [vmem:[%s325 + $0x8] sm:$0xff]
        %v383 = vld [vmem:[%s325 + $0x10] sm:$0xff]
        %v384 = vld [vmem:[%s325 + $0x18] sm:$0xff]
        %v385 = vld [vmem:[#allocation5] sm:$0xff]
        %v386 = vld [vmem:[#allocation5 + $0x8] sm:$0xff]
        %v387 = vld [vmem:[#allocation5 + $0x10] sm:$0xff]
        %v388 = vld [vmem:[#allocation5 + $0x18] sm:$0xff]
        %v389 = vld [vmem:[#allocation5 + $0x20] sm:$0xff]
        %v390 = vld [vmem:[#allocation5 + $0x28] sm:$0xff]
        %v391 = vld [vmem:[#allocation5 + $0x30] sm:$0xff]
        %v392 = vld [vmem:[#allocation5 + $0x38] sm:$0xff]
        %v393 = vld [vmem:[#allocation5 + $0x40] sm:$0xff]
        %v394 = vld [vmem:[#allocation5 + $0x48] sm:$0xff]
        %v395 = vld [vmem:[#allocation5 + $0x50] sm:$0xff]
        %v396 = vld [vmem:[#allocation5 + $0x58] sm:$0xff]
        %v397 = vld [vmem:[#allocation5 + $0x60] sm:$0xff]
        %v398 = vld [vmem:[#allocation5 + $0x68] sm:$0xff]
        %v399 = vld [vmem:[#allocation5 + $0x70] sm:$0xff]
        %v400 = vld [vmem:[#allocation5 + $0x78] sm:$0xff]
        %v401 = vld [vmem:[#allocation5 + $0x80] sm:$0xff]
        %v402 = vld [vmem:[#allocation5 + $0x88] sm:$0xff]
        %v403 = vld [vmem:[#allocation5 + $0x90] sm:$0xff]
        %v404 = vld [vmem:[#allocation5 + $0x98] sm:$0xff]
        %v405 = vld [vmem:[#allocation5 + $0xa0] sm:$0xff]
        %v406 = vld [vmem:[#allocation5 + $0xa8] sm:$0xff]
        %v407 = vld [vmem:[#allocation5 + $0xb0] sm:$0xff]
        %v408 = vld [vmem:[#allocation5 + $0xb8] sm:$0xff]
        %v409 = vld [vmem:[#allocation5 + $0xc0] sm:$0xff]
        %v410 = vld [vmem:[#allocation5 + $0xc8] sm:$0xff]
        %v411 = vld [vmem:[#allocation5 + $0xd0] sm:$0xff]
        %v412 = vld [vmem:[#allocation5 + $0xd8] sm:$0xff]
        %v413 = vld [vmem:[#allocation5 + $0xe0] sm:$0xff]
        %v414 = vld [vmem:[#allocation5 + $0xe8] sm:$0xff]
        %v415 = vld [vmem:[#allocation5 + $0xf0] sm:$0xff]
        %v416 = vld [vmem:[#allocation5 + $0xf8] sm:$0xff]
        %v417 = vld [vmem:[#allocation5 + $0x100] sm:$0xff]
        %v418 = vld [vmem:[#allocation5 + $0x108] sm:$0xff]
        %v419 = vld [vmem:[#allocation5 + $0x110] sm:$0xff]
        %v420 = vld [vmem:[#allocation5 + $0x118] sm:$0xff]
        %v421 = vld [vmem:[#allocation5 + $0x120] sm:$0xff]
        %v422 = vld [vmem:[#allocation5 + $0x128] sm:$0xff]
        %v423 = vld [vmem:[#allocation5 + $0x130] sm:$0xff]
        %v424 = vld [vmem:[#allocation5 + $0x138] sm:$0xff]
        %v425 = vld [vmem:[#allocation5 + $0x140] sm:$0xff]
        %v426 = vld [vmem:[#allocation5 + $0x148] sm:$0xff]
        %v427 = vld [vmem:[#allocation5 + $0x150] sm:$0xff]
        %v428 = vld [vmem:[#allocation5 + $0x158] sm:$0xff]
        %v429 = vld [vmem:[#allocation5 + $0x160] sm:$0xff]
        %v430 = vld [vmem:[#allocation5 + $0x168] sm:$0xff]
        %v431 = vld [vmem:[#allocation5 + $0x170] sm:$0xff]
        %v432 = vld [vmem:[#allocation5 + $0x178] sm:$0xff]
        %v433 = vld [vmem:[#allocation5 + $0x180] sm:$0xff]
        %v434 = vld [vmem:[#allocation5 + $0x188] sm:$0xff]
        %v435 = vld [vmem:[#allocation5 + $0x190] sm:$0xff]
        %v436 = vld [vmem:[#allocation5 + $0x198] sm:$0xff]
        %v437 = vld [vmem:[#allocation5 + $0x1a0] sm:$0xff]
        %v438 = vld [vmem:[#allocation5 + $0x1a8] sm:$0xff]
        %v439 = vld [vmem:[#allocation5 + $0x1b0] sm:$0xff]
        %v440 = vld [vmem:[#allocation5 + $0x1b8] sm:$0xff]
        %v441 = vld [vmem:[#allocation5 + $0x1c0] sm:$0xff]
        %v442 = vld [vmem:[#allocation5 + $0x1c8] sm:$0xff]
        %v443 = vld [vmem:[#allocation5 + $0x1d0] sm:$0xff]
        %v444 = vld [vmem:[#allocation5 + $0x1d8] sm:$0xff]
        %v445 = vld [vmem:[#allocation5 + $0x1e0] sm:$0xff]
        %v446 = vld [vmem:[#allocation5 + $0x1e8] sm:$0xff]
        %v447 = vld [vmem:[#allocation5 + $0x1f0] sm:$0xff]
        %v448 = vld [vmem:[#allocation5 + $0x1f8] sm:$0xff]
        %v449 = vld [vmem:[#allocation5 + $0x200] sm:$0xff]
        %v450 = vld [vmem:[#allocation5 + $0x208] sm:$0xff]
        %v451 = vld [vmem:[#allocation5 + $0x210] sm:$0xff]
        %v452 = vld [vmem:[#allocation5 + $0x218] sm:$0xff]
        %v453 = vld [vmem:[#allocation5 + $0x220] sm:$0xff]
        %v454 = vld [vmem:[#allocation5 + $0x228] sm:$0xff]
        %v455 = vld [vmem:[#allocation5 + $0x230] sm:$0xff]
        %v456 = vld [vmem:[#allocation5 + $0x238] sm:$0xff]
        %v457 = vld [vmem:[#allocation5 + $0x240] sm:$0xff]
        %v458 = vld [vmem:[#allocation5 + $0x248] sm:$0xff]
        %v459 = vld [vmem:[#allocation5 + $0x250] sm:$0xff]
        %v460 = vld [vmem:[#allocation5 + $0x258] sm:$0xff]
        %v461 = vld [vmem:[#allocation5 + $0x260] sm:$0xff]
        %v462 = vld [vmem:[#allocation5 + $0x268] sm:$0xff]
        %v463 = vld [vmem:[#allocation5 + $0x270] sm:$0xff]
        %v464 = vld [vmem:[#allocation5 + $0x278] sm:$0xff]
        %v465 = vld [vmem:[#allocation5 + $0x280] sm:$0xff]
        %v466 = vld [vmem:[#allocation5 + $0x288] sm:$0xff]
        %v467 = vld [vmem:[#allocation5 + $0x290] sm:$0xff]
        %v468 = vld [vmem:[#allocation5 + $0x298] sm:$0xff]
        %v469 = vld [vmem:[#allocation5 + $0x2a0] sm:$0xff]
        %v470 = vld [vmem:[#allocation5 + $0x2a8] sm:$0xff]
        %v471 = vld [vmem:[#allocation5 + $0x2b0] sm:$0xff]
        %v472 = vld [vmem:[#allocation5 + $0x2b8] sm:$0xff]
        %v473 = vld [vmem:[#allocation5 + $0x2c0] sm:$0xff]
        %v474 = vld [vmem:[#allocation5 + $0x2c8] sm:$0xff]
        %v475 = vld [vmem:[#allocation5 + $0x2d0] sm:$0xff]
        %v476 = vld [vmem:[#allocation5 + $0x2d8] sm:$0xff]
        %v477 = vld [vmem:[#allocation5 + $0x2e0] sm:$0xff]
        %v478 = vld [vmem:[#allocation5 + $0x2e8] sm:$0xff]
        %v479 = vld [vmem:[#allocation5 + $0x2f0] sm:$0xff]
        %v480 = vld [vmem:[#allocation5 + $0x2f8] sm:$0xff]
        %v481 = vld [vmem:[#allocation5 + $0x300] sm:$0xff]
        %v482 = vld [vmem:[#allocation5 + $0x308] sm:$0xff]
        %v483 = vld [vmem:[#allocation5 + $0x310] sm:$0xff]
        %v484 = vld [vmem:[#allocation5 + $0x318] sm:$0xff]
        %v485 = vld [vmem:[#allocation5 + $0x320] sm:$0xff]
        %v486 = vld [vmem:[#allocation5 + $0x328] sm:$0xff]
        %v487 = vld [vmem:[#allocation5 + $0x330] sm:$0xff]
        %v488 = vld [vmem:[#allocation5 + $0x338] sm:$0xff]
        %v489 = vld [vmem:[#allocation5 + $0x340] sm:$0xff]
        %v490 = vld [vmem:[#allocation5 + $0x348] sm:$0xff]
        %v491 = vld [vmem:[#allocation5 + $0x350] sm:$0xff]
        %v492 = vld [vmem:[#allocation5 + $0x358] sm:$0xff]
        %v493 = vld [vmem:[#allocation5 + $0x360] sm:$0xff]
        %v494 = vld [vmem:[#allocation5 + $0x368] sm:$0xff]
        %v495 = vld [vmem:[#allocation5 + $0x370] sm:$0xff]
        %v496 = vld [vmem:[#allocation5 + $0x378] sm:$0xff]
        %v497 = vld [vmem:[#allocation5 + $0x380] sm:$0xff]
        %v498 = vld [vmem:[#allocation5 + $0x388] sm:$0xff]
        %v499 = vld [vmem:[#allocation5 + $0x390] sm:$0xff]
        %v500 = vld [vmem:[#allocation5 + $0x398] sm:$0xff]
        %v501 = vld [vmem:[#allocation5 + $0x3a0] sm:$0xff]
        %v502 = vld [vmem:[#allocation5 + $0x3a8] sm:$0xff]
        %v503 = vld [vmem:[#allocation5 + $0x3b0] sm:$0xff]
        %v504 = vld [vmem:[#allocation5 + $0x3b8] sm:$0xff]
        %v505 = vld [vmem:[#allocation5 + $0x3c0] sm:$0xff]
        %v506 = vld [vmem:[#allocation5 + $0x3c8] sm:$0xff]
        %v507 = vld [vmem:[#allocation5 + $0x3d0] sm:$0xff]
        %v508 = vld [vmem:[#allocation5 + $0x3d8] sm:$0xff]
        %v509 = vld [vmem:[#allocation5 + $0x3e0] sm:$0xff]
        %v510 = vld [vmem:[#allocation5 + $0x3e8] sm:$0xff]
        %v511 = vld [vmem:[#allocation5 + $0x3f0] sm:$0xff]
        %v512 = vld [vmem:[#allocation5 + $0x3f8] sm:$0xff]
        %v513 = vld [vmem:[#allocation5 + $0x400] sm:$0xff]
        %v514 = vld [vmem:[#allocation5 + $0x408] sm:$0xff]
        %v515 = vld [vmem:[#allocation5 + $0x410] sm:$0xff]
        %v516 = vld [vmem:[#allocation5 + $0x418] sm:$0xff]
        %v517 = vld [vmem:[#allocation5 + $0x420] sm:$0xff]
        %v518 = vld [vmem:[#allocation5 + $0x428] sm:$0xff]
        %v519 = vld [vmem:[#allocation5 + $0x430] sm:$0xff]
        %v520 = vld [vmem:[#allocation5 + $0x438] sm:$0xff]
        %v521 = vld [vmem:[#allocation5 + $0x440] sm:$0xff]
        %v522 = vld [vmem:[#allocation5 + $0x448] sm:$0xff]
        %v523 = vld [vmem:[#allocation5 + $0x450] sm:$0xff]
        %v524 = vld [vmem:[#allocation5 + $0x458] sm:$0xff]
        %v525 = vld [vmem:[#allocation5 + $0x460] sm:$0xff]
        %v526 = vld [vmem:[#allocation5 + $0x468] sm:$0xff]
        %v527 = vld [vmem:[#allocation5 + $0x470] sm:$0xff]
        %v528 = vld [vmem:[#allocation5 + $0x478] sm:$0xff]
        %v529 = vld [vmem:[#allocation5 + $0x480] sm:$0xff]
        %v530 = vld [vmem:[#allocation5 + $0x488] sm:$0xff]
        %v531 = vld [vmem:[#allocation5 + $0x490] sm:$0xff]
        %v532 = vld [vmem:[#allocation5 + $0x498] sm:$0xff]
        %v533 = vld [vmem:[#allocation5 + $0x4a0] sm:$0xff]
        %v534 = vld [vmem:[#allocation5 + $0x4a8] sm:$0xff]
        %v535 = vld [vmem:[#allocation5 + $0x4b0] sm:$0xff]
        %v536 = vld [vmem:[#allocation5 + $0x4b8] sm:$0xff]
        %v537 = vld [vmem:[#allocation5 + $0x4c0] sm:$0xff]
        %v538 = vld [vmem:[#allocation5 + $0x4c8] sm:$0xff]
        %v539 = vld [vmem:[#allocation5 + $0x4d0] sm:$0xff]
        %v540 = vld [vmem:[#allocation5 + $0x4d8] sm:$0xff]
        %v541 = vld [vmem:[#allocation5 + $0x4e0] sm:$0xff]
        %v542 = vld [vmem:[#allocation5 + $0x4e8] sm:$0xff]
        %v543 = vld [vmem:[#allocation5 + $0x4f0] sm:$0xff]
        %v544 = vld [vmem:[#allocation5 + $0x4f8] sm:$0xff]
        %v545 = vld [vmem:[#allocation5 + $0x500] sm:$0xff]
        %v546 = vld [vmem:[#allocation5 + $0x508] sm:$0xff]
        %v547 = vld [vmem:[#allocation5 + $0x510] sm:$0xff]
        %v548 = vld [vmem:[#allocation5 + $0x518] sm:$0xff]
        %v549 = vld [vmem:[#allocation5 + $0x520] sm:$0xff]
        %v550 = vld [vmem:[#allocation5 + $0x528] sm:$0xff]
        %v551 = vld [vmem:[#allocation5 + $0x530] sm:$0xff]
        %v552 = vld [vmem:[#allocation5 + $0x538] sm:$0xff]
        %v553 = vld [vmem:[#allocation5 + $0x540] sm:$0xff]
        %v554 = vld [vmem:[#allocation5 + $0x548] sm:$0xff]
        %v555 = vld [vmem:[#allocation5 + $0x550] sm:$0xff]
        %v556 = vld [vmem:[#allocation5 + $0x558] sm:$0xff]
        %v557 = vld [vmem:[#allocation5 + $0x560] sm:$0xff]
        %v558 = vld [vmem:[#allocation5 + $0x568] sm:$0xff]
        %v559 = vld [vmem:[#allocation5 + $0x570] sm:$0xff]
        %v560 = vld [vmem:[#allocation5 + $0x578] sm:$0xff]
        %v561 = vld [vmem:[#allocation5 + $0x580] sm:$0xff]
        %v562 = vld [vmem:[#allocation5 + $0x588] sm:$0xff]
        %v563 = vld [vmem:[#allocation5 + $0x590] sm:$0xff]
        %v564 = vld [vmem:[#allocation5 + $0x598] sm:$0xff]
        %v565 = vld [vmem:[#allocation5 + $0x5a0] sm:$0xff]
        %v566 = vld [vmem:[#allocation5 + $0x5a8] sm:$0xff]
        %v567 = vld [vmem:[#allocation5 + $0x5b0] sm:$0xff]
        %v568 = vld [vmem:[#allocation5 + $0x5b8] sm:$0xff]
        %v569 = vld [vmem:[#allocation5 + $0x5c0] sm:$0xff]
        %v570 = vld [vmem:[#allocation5 + $0x5c8] sm:$0xff]
        %v571 = vld [vmem:[#allocation5 + $0x5d0] sm:$0xff]
        %v572 = vld [vmem:[#allocation5 + $0x5d8] sm:$0xff]
        %v573 = vld [vmem:[#allocation5 + $0x5e0] sm:$0xff]
        %v574 = vld [vmem:[#allocation5 + $0x5e8] sm:$0xff]
        %v575 = vld [vmem:[#allocation5 + $0x5f0] sm:$0xff]
        %v576 = vld [vmem:[#allocation5 + $0x5f8] sm:$0xff]
        %v577 = vld [vmem:[#allocation5 + $0x600] sm:$0xff]
        %v578 = vld [vmem:[#allocation5 + $0x608] sm:$0xff]
        %v579 = vld [vmem:[#allocation5 + $0x610] sm:$0xff]
        %v580 = vld [vmem:[#allocation5 + $0x618] sm:$0xff]
        %v581 = vld [vmem:[#allocation5 + $0x620] sm:$0xff]
        %v582 = vld [vmem:[#allocation5 + $0x628] sm:$0xff]
        %v583 = vld [vmem:[#allocation5 + $0x630] sm:$0xff]
        %v584 = vld [vmem:[#allocation5 + $0x638] sm:$0xff]
        %v585 = vld [vmem:[#allocation5 + $0x640] sm:$0xff]
        %v586 = vld [vmem:[#allocation5 + $0x648] sm:$0xff]
        %v587 = vld [vmem:[#allocation5 + $0x650] sm:$0xff]
        %v588 = vld [vmem:[#allocation5 + $0x658] sm:$0xff]
        %v589 = vld [vmem:[#allocation5 + $0x660] sm:$0xff]
        %v590 = vld [vmem:[#allocation5 + $0x668] sm:$0xff]
        %v591 = vld [vmem:[#allocation5 + $0x670] sm:$0xff]
        %v592 = vld [vmem:[#allocation5 + $0x678] sm:$0xff]
        %v593 = vld [vmem:[#allocation5 + $0x680] sm:$0xff]
        %v594 = vld [vmem:[#allocation5 + $0x688] sm:$0xff]
        %v595 = vld [vmem:[#allocation5 + $0x690] sm:$0xff]
        %v596 = vld [vmem:[#allocation5 + $0x698] sm:$0xff]
        %v597 = vld [vmem:[#allocation5 + $0x6a0] sm:$0xff]
        %v598 = vld [vmem:[#allocation5 + $0x6a8] sm:$0xff]
        %v599 = vld [vmem:[#allocation5 + $0x6b0] sm:$0xff]
        %v600 = vld [vmem:[#allocation5 + $0x6b8] sm:$0xff]
        %v601 = vld [vmem:[#allocation5 + $0x6c0] sm:$0xff]
        %v602 = vld [vmem:[#allocation5 + $0x6c8] sm:$0xff]
        %v603 = vld [vmem:[#allocation5 + $0x6d0] sm:$0xff]
        %v604 = vld [vmem:[#allocation5 + $0x6d8] sm:$0xff]
        %v605 = vld [vmem:[#allocation5 + $0x6e0] sm:$0xff]
        %v606 = vld [vmem:[#allocation5 + $0x6e8] sm:$0xff]
        %v607 = vld [vmem:[#allocation5 + $0x6f0] sm:$0xff]
        %v608 = vld [vmem:[#allocation5 + $0x6f8] sm:$0xff]
        %v609 = vld [vmem:[#allocation5 + $0x700] sm:$0xff]
        %v610 = vld [vmem:[#allocation5 + $0x708] sm:$0xff]
        %v611 = vld [vmem:[#allocation5 + $0x710] sm:$0xff]
        %v612 = vld [vmem:[#allocation5 + $0x718] sm:$0xff]
        %v613 = vld [vmem:[#allocation5 + $0x720] sm:$0xff]
        %v614 = vld [vmem:[#allocation5 + $0x728] sm:$0xff]
        %v615 = vld [vmem:[#allocation5 + $0x730] sm:$0xff]
        %v616 = vld [vmem:[#allocation5 + $0x738] sm:$0xff]
        %v617 = vld [vmem:[#allocation5 + $0x740] sm:$0xff]
        %v618 = vld [vmem:[#allocation5 + $0x748] sm:$0xff]
        %v619 = vld [vmem:[#allocation5 + $0x750] sm:$0xff]
        %v620 = vld [vmem:[#allocation5 + $0x758] sm:$0xff]
        %v621 = vld [vmem:[#allocation5 + $0x760] sm:$0xff]
        %v622 = vld [vmem:[#allocation5 + $0x768] sm:$0xff]
        %v623 = vld [vmem:[#allocation5 + $0x770] sm:$0xff]
        %v624 = vld [vmem:[#allocation5 + $0x778] sm:$0xff]
        %v625 = vld [vmem:[#allocation5 + $0x780] sm:$0xff]
        %v626 = vld [vmem:[#allocation5 + $0x788] sm:$0xff]
        %v627 = vld [vmem:[#allocation5 + $0x790] sm:$0xff]
        %v628 = vld [vmem:[#allocation5 + $0x798] sm:$0xff]
        %v629 = vld [vmem:[#allocation5 + $0x7a0] sm:$0xff]
        %v630 = vld [vmem:[#allocation5 + $0x7a8] sm:$0xff]
        %v631 = vld [vmem:[#allocation5 + $0x7b0] sm:$0xff]
        %v632 = vld [vmem:[#allocation5 + $0x7b8] sm:$0xff]
        %v633 = vld [vmem:[#allocation5 + $0x7c0] sm:$0xff]
        %v634 = vld [vmem:[#allocation5 + $0x7c8] sm:$0xff]
        %v635 = vld [vmem:[#allocation5 + $0x7d0] sm:$0xff]
        %v636 = vld [vmem:[#allocation5 + $0x7d8] sm:$0xff]
        %v637 = vld [vmem:[#allocation5 + $0x7e0] sm:$0xff]
        %v638 = vld [vmem:[#allocation5 + $0x7e8] sm:$0xff]
        %v639 = vld [vmem:[#allocation5 + $0x7f0] sm:$0xff]
        %v640 = vld [vmem:[#allocation5 + $0x7f8] sm:$0xff]
        %v641 = vld [vmem:[#allocation5 + $0x800] sm:$0xff]
        %v642 = vld [vmem:[#allocation5 + $0x808] sm:$0xff]
        %v643 = vld [vmem:[#allocation5 + $0x810] sm:$0xff]
        %v644 = vld [vmem:[#allocation5 + $0x818] sm:$0xff]
        %v645 = vld [vmem:[#allocation5 + $0x820] sm:$0xff]
        %v646 = vld [vmem:[#allocation5 + $0x828] sm:$0xff]
        %v647 = vld [vmem:[#allocation5 + $0x830] sm:$0xff]
        %v648 = vld [vmem:[#allocation5 + $0x838] sm:$0xff]
        %v649 = vld [vmem:[#allocation5 + $0x840] sm:$0xff]
        %v650 = vld [vmem:[#allocation5 + $0x848] sm:$0xff]
        %v651 = vld [vmem:[#allocation5 + $0x850] sm:$0xff]
        %v652 = vld [vmem:[#allocation5 + $0x858] sm:$0xff]
        %v653 = vld [vmem:[#allocation5 + $0x860] sm:$0xff]
        %v654 = vld [vmem:[#allocation5 + $0x868] sm:$0xff]
        %v655 = vld [vmem:[#allocation5 + $0x870] sm:$0xff]
        %v656 = vld [vmem:[#allocation5 + $0x878] sm:$0xff]
        %v657 = vld [vmem:[#allocation5 + $0x880] sm:$0xff]
        %v658 = vld [vmem:[#allocation5 + $0x888] sm:$0xff]
        %v659 = vld [vmem:[#allocation5 + $0x890] sm:$0xff]
        %v660 = vld [vmem:[#allocation5 + $0x898] sm:$0xff]
        %v661 = vld [vmem:[#allocation5 + $0x8a0] sm:$0xff]
        %v662 = vld [vmem:[#allocation5 + $0x8a8] sm:$0xff]
        %v663 = vld [vmem:[#allocation5 + $0x8b0] sm:$0xff]
        %v664 = vld [vmem:[#allocation5 + $0x8b8] sm:$0xff]
        %v665 = vld [vmem:[#allocation5 + $0x8c0] sm:$0xff]
        %v666 = vld [vmem:[#allocation5 + $0x8c8] sm:$0xff]
        %v667 = vld [vmem:[#allocation5 + $0x8d0] sm:$0xff]
        %v668 = vld [vmem:[#allocation5 + $0x8d8] sm:$0xff]
        %v669 = vld [vmem:[#allocation5 + $0x8e0] sm:$0xff]
        %v670 = vld [vmem:[#allocation5 + $0x8e8] sm:$0xff]
        %v671 = vld [vmem:[#allocation5 + $0x8f0] sm:$0xff]
        %v672 = vld [vmem:[#allocation5 + $0x8f8] sm:$0xff]
        %v673 = vld [vmem:[#allocation5 + $0x900] sm:$0xff]
        %v674 = vld [vmem:[#allocation5 + $0x908] sm:$0xff]
        %v675 = vld [vmem:[#allocation5 + $0x910] sm:$0xff]
        %v676 = vld [vmem:[#allocation5 + $0x918] sm:$0xff]
        %v677 = vld [vmem:[#allocation5 + $0x920] sm:$0xff]
        %v678 = vld [vmem:[#allocation5 + $0x928] sm:$0xff]
        %v679 = vld [vmem:[#allocation5 + $0x930] sm:$0xff]
        %v680 = vld [vmem:[#allocation5 + $0x938] sm:$0xff]
        %v681 = vld [vmem:[#allocation5 + $0x940] sm:$0xff]
        %v682 = vld [vmem:[#allocation5 + $0x948] sm:$0xff]
        %v683 = vld [vmem:[#allocation5 + $0x950] sm:$0xff]
        %v684 = vld [vmem:[#allocation5 + $0x958] sm:$0xff]
        %v685 = vld [vmem:[#allocation5 + $0x960] sm:$0xff]
        %v686 = vld [vmem:[#allocation5 + $0x968] sm:$0xff]
        %v687 = vld [vmem:[#allocation5 + $0x970] sm:$0xff]
        %v688 = vld [vmem:[#allocation5 + $0x978] sm:$0xff]
        %v689 = vld [vmem:[#allocation5 + $0x980] sm:$0xff]
        %v690 = vld [vmem:[#allocation5 + $0x988] sm:$0xff]
        %v691 = vld [vmem:[#allocation5 + $0x990] sm:$0xff]
        %v692 = vld [vmem:[#allocation5 + $0x998] sm:$0xff]
        %v693 = vld [vmem:[#allocation5 + $0x9a0] sm:$0xff]
        %v694 = vld [vmem:[#allocation5 + $0x9a8] sm:$0xff]
        %v695 = vld [vmem:[#allocation5 + $0x9b0] sm:$0xff]
        %v696 = vld [vmem:[#allocation5 + $0x9b8] sm:$0xff]
        %v697 = vld [vmem:[#allocation5 + $0x9c0] sm:$0xff]
        %v698 = vld [vmem:[#allocation5 + $0x9c8] sm:$0xff]
        %v699 = vld [vmem:[#allocation5 + $0x9d0] sm:$0xff]
        %v700 = vld [vmem:[#allocation5 + $0x9d8] sm:$0xff]
        %v701 = vld [vmem:[#allocation5 + $0x9e0] sm:$0xff]
        %v702 = vld [vmem:[#allocation5 + $0x9e8] sm:$0xff]
        %v703 = vld [vmem:[#allocation5 + $0x9f0] sm:$0xff]
        %v704 = vld [vmem:[#allocation5 + $0x9f8] sm:$0xff]
        %v705 = vld [vmem:[#allocation5 + $0xa00] sm:$0xff]
        %v706 = vld [vmem:[#allocation5 + $0xa08] sm:$0xff]
        %v707 = vld [vmem:[#allocation5 + $0xa10] sm:$0xff]
        %v708 = vld [vmem:[#allocation5 + $0xa18] sm:$0xff]
        %v709 = vld [vmem:[#allocation5 + $0xa20] sm:$0xff]
        %v710 = vld [vmem:[#allocation5 + $0xa28] sm:$0xff]
        %v711 = vld [vmem:[#allocation5 + $0xa30] sm:$0xff]
        %v712 = vld [vmem:[#allocation5 + $0xa38] sm:$0xff]
        %v713 = vld [vmem:[#allocation5 + $0xa40] sm:$0xff]
        %v714 = vld [vmem:[#allocation5 + $0xa48] sm:$0xff]
        %v715 = vld [vmem:[#allocation5 + $0xa50] sm:$0xff]
        %v716 = vld [vmem:[#allocation5 + $0xa58] sm:$0xff]
        %v717 = vld [vmem:[#allocation5 + $0xa60] sm:$0xff]
        %v718 = vld [vmem:[#allocation5 + $0xa68] sm:$0xff]
        %v719 = vld [vmem:[#allocation5 + $0xa70] sm:$0xff]
        %v720 = vld [vmem:[#allocation5 + $0xa78] sm:$0xff]
        %v721 = vld [vmem:[#allocation5 + $0xa80] sm:$0xff]
        %v722 = vld [vmem:[#allocation5 + $0xa88] sm:$0xff]
        %v723 = vld [vmem:[#allocation5 + $0xa90] sm:$0xff]
        %v724 = vld [vmem:[#allocation5 + $0xa98] sm:$0xff]
        %v725 = vld [vmem:[#allocation5 + $0xaa0] sm:$0xff]
        %v726 = vld [vmem:[#allocation5 + $0xaa8] sm:$0xff]
        %v727 = vld [vmem:[#allocation5 + $0xab0] sm:$0xff]
        %v728 = vld [vmem:[#allocation5 + $0xab8] sm:$0xff]
        %v729 = vld [vmem:[#allocation5 + $0xac0] sm:$0xff]
        %v730 = vld [vmem:[#allocation5 + $0xac8] sm:$0xff]
        %v731 = vld [vmem:[#allocation5 + $0xad0] sm:$0xff]
        %v732 = vld [vmem:[#allocation5 + $0xad8] sm:$0xff]
        %v733 = vld [vmem:[#allocation5 + $0xae0] sm:$0xff]
        %v734 = vld [vmem:[#allocation5 + $0xae8] sm:$0xff]
        %v735 = vld [vmem:[#allocation5 + $0xaf0] sm:$0xff]
        %v736 = vld [vmem:[#allocation5 + $0xaf8] sm:$0xff]
        %v737 = vld [vmem:[#allocation5 + $0xb00] sm:$0xff]
        %v738 = vld [vmem:[#allocation5 + $0xb08] sm:$0xff]
        %v739 = vld [vmem:[#allocation5 + $0xb10] sm:$0xff]
        %v740 = vld [vmem:[#allocation5 + $0xb18] sm:$0xff]
        %v741 = vld [vmem:[#allocation5 + $0xb20] sm:$0xff]
        %v742 = vld [vmem:[#allocation5 + $0xb28] sm:$0xff]
        %v743 = vld [vmem:[#allocation5 + $0xb30] sm:$0xff]
        %v744 = vld [vmem:[#allocation5 + $0xb38] sm:$0xff]
        %v745 = vld [vmem:[#allocation5 + $0xb40] sm:$0xff]
        %v746 = vld [vmem:[#allocation5 + $0xb48] sm:$0xff]
        %v747 = vld [vmem:[#allocation5 + $0xb50] sm:$0xff]
        %v748 = vld [vmem:[#allocation5 + $0xb58] sm:$0xff]
        %v749 = vld [vmem:[#allocation5 + $0xb60] sm:$0xff]
        %v750 = vld [vmem:[#allocation5 + $0xb68] sm:$0xff]
        %v751 = vld [vmem:[#allocation5 + $0xb70] sm:$0xff]
        %v752 = vld [vmem:[#allocation5 + $0xb78] sm:$0xff]
        %v753 = vld [vmem:[#allocation5 + $0xb80] sm:$0xff]
        %v754 = vld [vmem:[#allocation5 + $0xb88] sm:$0xff]
        %v755 = vld [vmem:[#allocation5 + $0xb90] sm:$0xff]
        %v756 = vld [vmem:[#allocation5 + $0xb98] sm:$0xff]
        %v757 = vld [vmem:[#allocation5 + $0xba0] sm:$0xff]
        %v758 = vld [vmem:[#allocation5 + $0xba8] sm:$0xff]
        %v759 = vld [vmem:[#allocation5 + $0xbb0] sm:$0xff]
        %v760 = vld [vmem:[#allocation5 + $0xbb8] sm:$0xff]
        %v761 = vld [vmem:[#allocation5 + $0xbc0] sm:$0xff]
        %v762 = vld [vmem:[#allocation5 + $0xbc8] sm:$0xff]
        %v763 = vld [vmem:[#allocation5 + $0xbd0] sm:$0xff]
        %v764 = vld [vmem:[#allocation5 + $0xbd8] sm:$0xff]
        %v765 = vld [vmem:[#allocation5 + $0xbe0] sm:$0xff]
        %v766 = vld [vmem:[#allocation5 + $0xbe8] sm:$0xff]
        %v767 = vld [vmem:[#allocation5 + $0xbf0] sm:$0xff]
        %v768 = vld [vmem:[#allocation5 + $0xbf8] sm:$0xff]
        %v769 = vld [vmem:[#allocation7] sm:$0xff]
        %v770 = vld [vmem:[#allocation7 + $0x8] sm:$0xf]
        %v773 = vlaneseq
        %v774 = vshrl.u32 %v773, 7
        %v775 = vsub.s32 0, %v774
        %v776 = vrot.slane %v769, %v775
        %v777 = vlaneseq
        %v778 = vshrl.u32 %v777, 7
        %v779 = vsub.s32 1, %v778
        %v780 = vrot.slane %v769, %v779
        %v781 = vlaneseq
        %v782 = vshrl.u32 %v781, 7
        %v783 = vsub.s32 2, %v782
        %v784 = vrot.slane %v769, %v783
        %v785 = vlaneseq
        %v786 = vshrl.u32 %v785, 7
        %v787 = vsub.s32 3, %v786
        %v788 = vrot.slane %v769, %v787
        %v789 = vlaneseq
        %v790 = vshrl.u32 %v789, 7
        %v791 = vsub.s32 4, %v790
        %v792 = vrot.slane %v769, %v791
        %v793 = vlaneseq
        %v794 = vshrl.u32 %v793, 7
        %v795 = vsub.s32 5, %v794
        %v796 = vrot.slane %v769, %v795
        %v797 = vlaneseq
        %v798 = vshrl.u32 %v797, 7
        %v799 = vsub.s32 6, %v798
        %v800 = vrot.slane %v769, %v799
        %v801 = vlaneseq
        %v802 = vshrl.u32 %v801, 7
        %v803 = vsub.s32 7, %v802
        %v804 = vrot.slane %v769, %v803
        %v805 = vlaneseq
        %v806 = vshrl.u32 %v805, 7
        %v807 = vsub.s32 0, %v806
        %v808 = vrot.slane %v770, %v807
        %v809 = vlaneseq
        %v810 = vshrl.u32 %v809, 7
        %v811 = vsub.s32 1, %v810
        %v812 = vrot.slane %v770, %v811
        %v813 = vlaneseq
        %v814 = vshrl.u32 %v813, 7
        %v815 = vsub.s32 2, %v814
        %v816 = vrot.slane %v770, %v815
        %v817 = vlaneseq
        %v818 = vshrl.u32 %v817, 7
        %v819 = vsub.s32 3, %v818
        %v820 = vrot.slane %v770, %v819
        %v837 = vunpack.c.l.b16 %v381
        %v838 = vunpack.c.h.b16 %v381
        %v839 = vunpack.c.l.b16 %v382
        %v840 = vunpack.c.h.b16 %v382
        %v841 = vunpack.c.l.b16 %v383
        %v842 = vunpack.c.h.b16 %v383
        %v843 = vunpack.c.l.b16 %v384
        %v844 = vunpack.c.h.b16 %v384
        %v845 = vpack.c.b16 %v841, %v837
        %v846 = vpack.c.b16 %v842, %v838
        %v847 = vpack.c.b16 %v843, %v839
        %v848 = vpack.c.b16 %v844, %v840
        %v1237 = vunpack.c.l.b16 %v385
        %v1238 = vunpack.c.h.b16 %v385
        %v1239 = vunpack.c.l.b16 %v386
        %v1240 = vunpack.c.h.b16 %v386
        %v1241 = vunpack.c.l.b16 %v387
        %v1242 = vunpack.c.h.b16 %v387
        %v1243 = vunpack.c.l.b16 %v388
        %v1244 = vunpack.c.h.b16 %v388
        %v1245 = vunpack.c.l.b16 %v389
        %v1246 = vunpack.c.h.b16 %v389
        %v1247 = vunpack.c.l.b16 %v390
        %v1248 = vunpack.c.h.b16 %v390
        %v1249 = vunpack.c.l.b16 %v391
        %v1250 = vunpack.c.h.b16 %v391
        %v1251 = vunpack.c.l.b16 %v392
        %v1252 = vunpack.c.h.b16 %v392
        %v1253 = vunpack.c.l.b16 %v393
        %v1254 = vunpack.c.h.b16 %v393
        %v1255 = vunpack.c.l.b16 %v394
        %v1256 = vunpack.c.h.b16 %v394
        %v1257 = vunpack.c.l.b16 %v395
        %v1258 = vunpack.c.h.b16 %v395
        %v1259 = vunpack.c.l.b16 %v396
        %v1260 = vunpack.c.h.b16 %v396
        %v1261 = vunpack.c.l.b16 %v397
        %v1262 = vunpack.c.h.b16 %v397
        %v1263 = vunpack.c.l.b16 %v398
        %v1264 = vunpack.c.h.b16 %v398
        %v1265 = vunpack.c.l.b16 %v399
        %v1266 = vunpack.c.h.b16 %v399
        %v1267 = vunpack.c.l.b16 %v400
        %v1268 = vunpack.c.h.b16 %v400
        %v1269 = vunpack.c.l.b16 %v401
        %v1270 = vunpack.c.h.b16 %v401
        %v1271 = vunpack.c.l.b16 %v402
        %v1272 = vunpack.c.h.b16 %v402
        %v1273 = vunpack.c.l.b16 %v403
        %v1274 = vunpack.c.h.b16 %v403
        %v1275 = vunpack.c.l.b16 %v404
        %v1276 = vunpack.c.h.b16 %v404
        %v1277 = vunpack.c.l.b16 %v405
        %v1278 = vunpack.c.h.b16 %v405
        %v1279 = vunpack.c.l.b16 %v406
        %v1280 = vunpack.c.h.b16 %v406
        %v1281 = vunpack.c.l.b16 %v407
        %v1282 = vunpack.c.h.b16 %v407
        %v1283 = vunpack.c.l.b16 %v408
        %v1284 = vunpack.c.h.b16 %v408
        %v1285 = vunpack.c.l.b16 %v409
        %v1286 = vunpack.c.h.b16 %v409
        %v1287 = vunpack.c.l.b16 %v410
        %v1288 = vunpack.c.h.b16 %v410
        %v1289 = vunpack.c.l.b16 %v411
        %v1290 = vunpack.c.h.b16 %v411
        %v1291 = vunpack.c.l.b16 %v412
        %v1292 = vunpack.c.h.b16 %v412
        %v1293 = vunpack.c.l.b16 %v413
        %v1294 = vunpack.c.h.b16 %v413
        %v1295 = vunpack.c.l.b16 %v414
        %v1296 = vunpack.c.h.b16 %v414
        %v1297 = vunpack.c.l.b16 %v415
        %v1298 = vunpack.c.h.b16 %v415
        %v1299 = vunpack.c.l.b16 %v416
        %v1300 = vunpack.c.h.b16 %v416
        %v1301 = vunpack.c.l.b16 %v417
        %v1302 = vunpack.c.h.b16 %v417
        %v1303 = vunpack.c.l.b16 %v418
        %v1304 = vunpack.c.h.b16 %v418
        %v1305 = vunpack.c.l.b16 %v419
        %v1306 = vunpack.c.h.b16 %v419
        %v1307 = vunpack.c.l.b16 %v420
        %v1308 = vunpack.c.h.b16 %v420
        %v1309 = vunpack.c.l.b16 %v421
        %v1310 = vunpack.c.h.b16 %v421
        %v1311 = vunpack.c.l.b16 %v422
        %v1312 = vunpack.c.h.b16 %v422
        %v1313 = vunpack.c.l.b16 %v423
        %v1314 = vunpack.c.h.b16 %v423
        %v1315 = vunpack.c.l.b16 %v424
        %v1316 = vunpack.c.h.b16 %v424
        %v1317 = vunpack.c.l.b16 %v425
        %v1318 = vunpack.c.h.b16 %v425
        %v1319 = vunpack.c.l.b16 %v426
        %v1320 = vunpack.c.h.b16 %v426
        %v1321 = vunpack.c.l.b16 %v427
        %v1322 = vunpack.c.h.b16 %v427
        %v1323 = vunpack.c.l.b16 %v428
        %v1324 = vunpack.c.h.b16 %v428
        %v1325 = vunpack.c.l.b16 %v429
        %v1326 = vunpack.c.h.b16 %v429
        %v1327 = vunpack.c.l.b16 %v430
        %v1328 = vunpack.c.h.b16 %v430
        %v1329 = vunpack.c.l.b16 %v431
        %v1330 = vunpack.c.h.b16 %v431
        %v1331 = vunpack.c.l.b16 %v432
        %v1332 = vunpack.c.h.b16 %v432
        %v1333 = vunpack.c.l.b16 %v433
        %v1334 = vunpack.c.h.b16 %v433
        %v1335 = vunpack.c.l.b16 %v434
        %v1336 = vunpack.c.h.b16 %v434
        %v1337 = vunpack.c.l.b16 %v435
        %v1338 = vunpack.c.h.b16 %v435
        %v1339 = vunpack.c.l.b16 %v436
        %v1340 = vunpack.c.h.b16 %v436
        %v1341 = vunpack.c.l.b16 %v437
        %v1342 = vunpack.c.h.b16 %v437
        %v1343 = vunpack.c.l.b16 %v438
        %v1344 = vunpack.c.h.b16 %v438
        %v1345 = vunpack.c.l.b16 %v439
        %v1346 = vunpack.c.h.b16 %v439
        %v1347 = vunpack.c.l.b16 %v440
        %v1348 = vunpack.c.h.b16 %v440
        %v1349 = vunpack.c.l.b16 %v441
        %v1350 = vunpack.c.h.b16 %v441
        %v1351 = vunpack.c.l.b16 %v442
        %v1352 = vunpack.c.h.b16 %v442
        %v1353 = vunpack.c.l.b16 %v443
        %v1354 = vunpack.c.h.b16 %v443
        %v1355 = vunpack.c.l.b16 %v444
        %v1356 = vunpack.c.h.b16 %v444
        %v1357 = vunpack.c.l.b16 %v445
        %v1358 = vunpack.c.h.b16 %v445
        %v1359 = vunpack.c.l.b16 %v446
        %v1360 = vunpack.c.h.b16 %v446
        %v1361 = vunpack.c.l.b16 %v447
        %v1362 = vunpack.c.h.b16 %v447
        %v1363 = vunpack.c.l.b16 %v448
        %v1364 = vunpack.c.h.b16 %v448
        %v1365 = vunpack.c.l.b16 %v449
        %v1366 = vunpack.c.h.b16 %v449
        %v1367 = vunpack.c.l.b16 %v450
        %v1368 = vunpack.c.h.b16 %v450
        %v1369 = vunpack.c.l.b16 %v451
        %v1370 = vunpack.c.h.b16 %v451
        %v1371 = vunpack.c.l.b16 %v452
        %v1372 = vunpack.c.h.b16 %v452
        %v1373 = vunpack.c.l.b16 %v453
        %v1374 = vunpack.c.h.b16 %v453
        %v1375 = vunpack.c.l.b16 %v454
        %v1376 = vunpack.c.h.b16 %v454
        %v1377 = vunpack.c.l.b16 %v455
        %v1378 = vunpack.c.h.b16 %v455
        %v1379 = vunpack.c.l.b16 %v456
        %v1380 = vunpack.c.h.b16 %v456
        %v1381 = vunpack.c.l.b16 %v457
        %v1382 = vunpack.c.h.b16 %v457
        %v1383 = vunpack.c.l.b16 %v458
        %v1384 = vunpack.c.h.b16 %v458
        %v1385 = vunpack.c.l.b16 %v459
        %v1386 = vunpack.c.h.b16 %v459
        %v1387 = vunpack.c.l.b16 %v460
        %v1388 = vunpack.c.h.b16 %v460
        %v1389 = vunpack.c.l.b16 %v461
        %v1390 = vunpack.c.h.b16 %v461
        %v1391 = vunpack.c.l.b16 %v462
        %v1392 = vunpack.c.h.b16 %v462
        %v1393 = vunpack.c.l.b16 %v463
        %v1394 = vunpack.c.h.b16 %v463
        %v1395 = vunpack.c.l.b16 %v464
        %v1396 = vunpack.c.h.b16 %v464
        %v1397 = vunpack.c.l.b16 %v465
        %v1398 = vunpack.c.h.b16 %v465
        %v1399 = vunpack.c.l.b16 %v466
        %v1400 = vunpack.c.h.b16 %v466
        %v1401 = vunpack.c.l.b16 %v467
        %v1402 = vunpack.c.h.b16 %v467
        %v1403 = vunpack.c.l.b16 %v468
        %v1404 = vunpack.c.h.b16 %v468
        %v1405 = vunpack.c.l.b16 %v469
        %v1406 = vunpack.c.h.b16 %v469
        %v1407 = vunpack.c.l.b16 %v470
        %v1408 = vunpack.c.h.b16 %v470
        %v1409 = vunpack.c.l.b16 %v471
        %v1410 = vunpack.c.h.b16 %v471
        %v1411 = vunpack.c.l.b16 %v472
        %v1412 = vunpack.c.h.b16 %v472
        %v1413 = vunpack.c.l.b16 %v473
        %v1414 = vunpack.c.h.b16 %v473
        %v1415 = vunpack.c.l.b16 %v474
        %v1416 = vunpack.c.h.b16 %v474
        %v1417 = vunpack.c.l.b16 %v475
        %v1418 = vunpack.c.h.b16 %v475
        %v1419 = vunpack.c.l.b16 %v476
        %v1420 = vunpack.c.h.b16 %v476
        %v1421 = vunpack.c.l.b16 %v477
        %v1422 = vunpack.c.h.b16 %v477
        %v1423 = vunpack.c.l.b16 %v478
        %v1424 = vunpack.c.h.b16 %v478
        %v1425 = vunpack.c.l.b16 %v479
        %v1426 = vunpack.c.h.b16 %v479
        %v1427 = vunpack.c.l.b16 %v480
        %v1428 = vunpack.c.h.b16 %v480
        %v1429 = vunpack.c.l.b16 %v481
        %v1430 = vunpack.c.h.b16 %v481
        %v1431 = vunpack.c.l.b16 %v482
        %v1432 = vunpack.c.h.b16 %v482
        %v1433 = vunpack.c.l.b16 %v483
        %v1434 = vunpack.c.h.b16 %v483
        %v1435 = vunpack.c.l.b16 %v484
        %v1436 = vunpack.c.h.b16 %v484
        %v1437 = vunpack.c.l.b16 %v485
        %v1438 = vunpack.c.h.b16 %v485
        %v1439 = vunpack.c.l.b16 %v486
        %v1440 = vunpack.c.h.b16 %v486
        %v1441 = vunpack.c.l.b16 %v487
        %v1442 = vunpack.c.h.b16 %v487
        %v1443 = vunpack.c.l.b16 %v488
        %v1444 = vunpack.c.h.b16 %v488
        %v1445 = vunpack.c.l.b16 %v489
        %v1446 = vunpack.c.h.b16 %v489
        %v1447 = vunpack.c.l.b16 %v490
        %v1448 = vunpack.c.h.b16 %v490
        %v1449 = vunpack.c.l.b16 %v491
        %v1450 = vunpack.c.h.b16 %v491
        %v1451 = vunpack.c.l.b16 %v492
        %v1452 = vunpack.c.h.b16 %v492
        %v1453 = vunpack.c.l.b16 %v493
        %v1454 = vunpack.c.h.b16 %v493
        %v1455 = vunpack.c.l.b16 %v494
        %v1456 = vunpack.c.h.b16 %v494
        %v1457 = vunpack.c.l.b16 %v495
        %v1458 = vunpack.c.h.b16 %v495
        %v1459 = vunpack.c.l.b16 %v496
        %v1460 = vunpack.c.h.b16 %v496
        %v1461 = vunpack.c.l.b16 %v497
        %v1462 = vunpack.c.h.b16 %v497
        %v1463 = vunpack.c.l.b16 %v498
        %v1464 = vunpack.c.h.b16 %v498
        %v1465 = vunpack.c.l.b16 %v499
        %v1466 = vunpack.c.h.b16 %v499
        %v1467 = vunpack.c.l.b16 %v500
        %v1468 = vunpack.c.h.b16 %v500
        %v1469 = vunpack.c.l.b16 %v501
        %v1470 = vunpack.c.h.b16 %v501
        %v1471 = vunpack.c.l.b16 %v502
        %v1472 = vunpack.c.h.b16 %v502
        %v1473 = vunpack.c.l.b16 %v503
        %v1474 = vunpack.c.h.b16 %v503
        %v1475 = vunpack.c.l.b16 %v504
        %v1476 = vunpack.c.h.b16 %v504
        %v1477 = vunpack.c.l.b16 %v505
        %v1478 = vunpack.c.h.b16 %v505
        %v1479 = vunpack.c.l.b16 %v506
        %v1480 = vunpack.c.h.b16 %v506
        %v1481 = vunpack.c.l.b16 %v507
        %v1482 = vunpack.c.h.b16 %v507
        %v1483 = vunpack.c.l.b16 %v508
        %v1484 = vunpack.c.h.b16 %v508
        %v1485 = vunpack.c.l.b16 %v509
        %v1486 = vunpack.c.h.b16 %v509
        %v1487 = vunpack.c.l.b16 %v510
        %v1488 = vunpack.c.h.b16 %v510
        %v1489 = vunpack.c.l.b16 %v511
        %v1490 = vunpack.c.h.b16 %v511
        %v1491 = vunpack.c.l.b16 %v512
        %v1492 = vunpack.c.h.b16 %v512
        %v1493 = vunpack.c.l.b16 %v513
        %v1494 = vunpack.c.h.b16 %v513
        %v1495 = vunpack.c.l.b16 %v514
        %v1496 = vunpack.c.h.b16 %v514
        %v1497 = vunpack.c.l.b16 %v515
        %v1498 = vunpack.c.h.b16 %v515
        %v1499 = vunpack.c.l.b16 %v516
        %v1500 = vunpack.c.h.b16 %v516
        %v1501 = vunpack.c.l.b16 %v517
        %v1502 = vunpack.c.h.b16 %v517
        %v1503 = vunpack.c.l.b16 %v518
        %v1504 = vunpack.c.h.b16 %v518
        %v1505 = vunpack.c.l.b16 %v519
        %v1506 = vunpack.c.h.b16 %v519
        %v1507 = vunpack.c.l.b16 %v520
        %v1508 = vunpack.c.h.b16 %v520
        %v1509 = vunpack.c.l.b16 %v521
        %v1510 = vunpack.c.h.b16 %v521
        %v1511 = vunpack.c.l.b16 %v522
        %v1512 = vunpack.c.h.b16 %v522
        %v1513 = vunpack.c.l.b16 %v523
        %v1514 = vunpack.c.h.b16 %v523
        %v1515 = vunpack.c.l.b16 %v524
        %v1516 = vunpack.c.h.b16 %v524
        %v1517 = vunpack.c.l.b16 %v525
        %v1518 = vunpack.c.h.b16 %v525
        %v1519 = vunpack.c.l.b16 %v526
        %v1520 = vunpack.c.h.b16 %v526
        %v1521 = vunpack.c.l.b16 %v527
        %v1522 = vunpack.c.h.b16 %v527
        %v1523 = vunpack.c.l.b16 %v528
        %v1524 = vunpack.c.h.b16 %v528
        %v1525 = vunpack.c.l.b16 %v529
        %v1526 = vunpack.c.h.b16 %v529
        %v1527 = vunpack.c.l.b16 %v530
        %v1528 = vunpack.c.h.b16 %v530
        %v1529 = vunpack.c.l.b16 %v531
        %v1530 = vunpack.c.h.b16 %v531
        %v1531 = vunpack.c.l.b16 %v532
        %v1532 = vunpack.c.h.b16 %v532
        %v1533 = vunpack.c.l.b16 %v533
        %v1534 = vunpack.c.h.b16 %v533
        %v1535 = vunpack.c.l.b16 %v534
        %v1536 = vunpack.c.h.b16 %v534
        %v1537 = vunpack.c.l.b16 %v535
        %v1538 = vunpack.c.h.b16 %v535
        %v1539 = vunpack.c.l.b16 %v536
        %v1540 = vunpack.c.h.b16 %v536
        %v1541 = vunpack.c.l.b16 %v537
        %v1542 = vunpack.c.h.b16 %v537
        %v1543 = vunpack.c.l.b16 %v538
        %v1544 = vunpack.c.h.b16 %v538
        %v1545 = vunpack.c.l.b16 %v539
        %v1546 = vunpack.c.h.b16 %v539
        %v1547 = vunpack.c.l.b16 %v540
        %v1548 = vunpack.c.h.b16 %v540
        %v1549 = vunpack.c.l.b16 %v541
        %v1550 = vunpack.c.h.b16 %v541
        %v1551 = vunpack.c.l.b16 %v542
        %v1552 = vunpack.c.h.b16 %v542
        %v1553 = vunpack.c.l.b16 %v543
        %v1554 = vunpack.c.h.b16 %v543
        %v1555 = vunpack.c.l.b16 %v544
        %v1556 = vunpack.c.h.b16 %v544
        %v1557 = vunpack.c.l.b16 %v545
        %v1558 = vunpack.c.h.b16 %v545
        %v1559 = vunpack.c.l.b16 %v546
        %v1560 = vunpack.c.h.b16 %v546
        %v1561 = vunpack.c.l.b16 %v547
        %v1562 = vunpack.c.h.b16 %v547
        %v1563 = vunpack.c.l.b16 %v548
        %v1564 = vunpack.c.h.b16 %v548
        %v1565 = vunpack.c.l.b16 %v549
        %v1566 = vunpack.c.h.b16 %v549
        %v1567 = vunpack.c.l.b16 %v550
        %v1568 = vunpack.c.h.b16 %v550
        %v1569 = vunpack.c.l.b16 %v551
        %v1570 = vunpack.c.h.b16 %v551
        %v1571 = vunpack.c.l.b16 %v552
        %v1572 = vunpack.c.h.b16 %v552
        %v1573 = vunpack.c.l.b16 %v553
        %v1574 = vunpack.c.h.b16 %v553
        %v1575 = vunpack.c.l.b16 %v554
        %v1576 = vunpack.c.h.b16 %v554
        %v1577 = vunpack.c.l.b16 %v555
        %v1578 = vunpack.c.h.b16 %v555
        %v1579 = vunpack.c.l.b16 %v556
        %v1580 = vunpack.c.h.b16 %v556
        %v1581 = vunpack.c.l.b16 %v557
        %v1582 = vunpack.c.h.b16 %v557
        %v1583 = vunpack.c.l.b16 %v558
        %v1584 = vunpack.c.h.b16 %v558
        %v1585 = vunpack.c.l.b16 %v559
        %v1586 = vunpack.c.h.b16 %v559
        %v1587 = vunpack.c.l.b16 %v560
        %v1588 = vunpack.c.h.b16 %v560
        %v1589 = vunpack.c.l.b16 %v561
        %v1590 = vunpack.c.h.b16 %v561
        %v1591 = vunpack.c.l.b16 %v562
        %v1592 = vunpack.c.h.b16 %v562
        %v1593 = vunpack.c.l.b16 %v563
        %v1594 = vunpack.c.h.b16 %v563
        %v1595 = vunpack.c.l.b16 %v564
        %v1596 = vunpack.c.h.b16 %v564
        %v1597 = vunpack.c.l.b16 %v565
        %v1598 = vunpack.c.h.b16 %v565
        %v1599 = vunpack.c.l.b16 %v566
        %v1600 = vunpack.c.h.b16 %v566
        %v1601 = vunpack.c.l.b16 %v567
        %v1602 = vunpack.c.h.b16 %v567
        %v1603 = vunpack.c.l.b16 %v568
        %v1604 = vunpack.c.h.b16 %v568
        %v1605 = vunpack.c.l.b16 %v569
        %v1606 = vunpack.c.h.b16 %v569
        %v1607 = vunpack.c.l.b16 %v570
        %v1608 = vunpack.c.h.b16 %v570
        %v1609 = vunpack.c.l.b16 %v571
        %v1610 = vunpack.c.h.b16 %v571
        %v1611 = vunpack.c.l.b16 %v572
        %v1612 = vunpack.c.h.b16 %v572
        %v1613 = vunpack.c.l.b16 %v573
        %v1614 = vunpack.c.h.b16 %v573
        %v1615 = vunpack.c.l.b16 %v574
        %v1616 = vunpack.c.h.b16 %v574
        %v1617 = vunpack.c.l.b16 %v575
        %v1618 = vunpack.c.h.b16 %v575
        %v1619 = vunpack.c.l.b16 %v576
        %v1620 = vunpack.c.h.b16 %v576
        %v1621 = vunpack.c.l.b16 %v577
        %v1622 = vunpack.c.h.b16 %v577
        %v1623 = vunpack.c.l.b16 %v578
        %v1624 = vunpack.c.h.b16 %v578
        %v1625 = vunpack.c.l.b16 %v579
        %v1626 = vunpack.c.h.b16 %v579
        %v1627 = vunpack.c.l.b16 %v580
        %v1628 = vunpack.c.h.b16 %v580
        %v1629 = vunpack.c.l.b16 %v581
        %v1630 = vunpack.c.h.b16 %v581
        %v1631 = vunpack.c.l.b16 %v582
        %v1632 = vunpack.c.h.b16 %v582
        %v1633 = vunpack.c.l.b16 %v583
        %v1634 = vunpack.c.h.b16 %v583
        %v1635 = vunpack.c.l.b16 %v584
        %v1636 = vunpack.c.h.b16 %v584
        %v1637 = vunpack.c.l.b16 %v585
        %v1638 = vunpack.c.h.b16 %v585
        %v1639 = vunpack.c.l.b16 %v586
        %v1640 = vunpack.c.h.b16 %v586
        %v1641 = vunpack.c.l.b16 %v587
        %v1642 = vunpack.c.h.b16 %v587
        %v1643 = vunpack.c.l.b16 %v588
        %v1644 = vunpack.c.h.b16 %v588
        %v1645 = vunpack.c.l.b16 %v589
        %v1646 = vunpack.c.h.b16 %v589
        %v1647 = vunpack.c.l.b16 %v590
        %v1648 = vunpack.c.h.b16 %v590
        %v1649 = vunpack.c.l.b16 %v591
        %v1650 = vunpack.c.h.b16 %v591
        %v1651 = vunpack.c.l.b16 %v592
        %v1652 = vunpack.c.h.b16 %v592
        %v1653 = vunpack.c.l.b16 %v593
        %v1654 = vunpack.c.h.b16 %v593
        %v1655 = vunpack.c.l.b16 %v594
        %v1656 = vunpack.c.h.b16 %v594
        %v1657 = vunpack.c.l.b16 %v595
        %v1658 = vunpack.c.h.b16 %v595
        %v1659 = vunpack.c.l.b16 %v596
        %v1660 = vunpack.c.h.b16 %v596
        %v1661 = vunpack.c.l.b16 %v597
        %v1662 = vunpack.c.h.b16 %v597
        %v1663 = vunpack.c.l.b16 %v598
        %v1664 = vunpack.c.h.b16 %v598
        %v1665 = vunpack.c.l.b16 %v599
        %v1666 = vunpack.c.h.b16 %v599
        %v1667 = vunpack.c.l.b16 %v600
        %v1668 = vunpack.c.h.b16 %v600
        %v1669 = vunpack.c.l.b16 %v601
        %v1670 = vunpack.c.h.b16 %v601
        %v1671 = vunpack.c.l.b16 %v602
        %v1672 = vunpack.c.h.b16 %v602
        %v1673 = vunpack.c.l.b16 %v603
        %v1674 = vunpack.c.h.b16 %v603
        %v1675 = vunpack.c.l.b16 %v604
        %v1676 = vunpack.c.h.b16 %v604
        %v1677 = vunpack.c.l.b16 %v605
        %v1678 = vunpack.c.h.b16 %v605
        %v1679 = vunpack.c.l.b16 %v606
        %v1680 = vunpack.c.h.b16 %v606
        %v1681 = vunpack.c.l.b16 %v607
        %v1682 = vunpack.c.h.b16 %v607
        %v1683 = vunpack.c.l.b16 %v608
        %v1684 = vunpack.c.h.b16 %v608
        %v1685 = vunpack.c.l.b16 %v609
        %v1686 = vunpack.c.h.b16 %v609
        %v1687 = vunpack.c.l.b16 %v610
        %v1688 = vunpack.c.h.b16 %v610
        %v1689 = vunpack.c.l.b16 %v611
        %v1690 = vunpack.c.h.b16 %v611
        %v1691 = vunpack.c.l.b16 %v612
        %v1692 = vunpack.c.h.b16 %v612
        %v1693 = vunpack.c.l.b16 %v613
        %v1694 = vunpack.c.h.b16 %v613
        %v1695 = vunpack.c.l.b16 %v614
        %v1696 = vunpack.c.h.b16 %v614
        %v1697 = vunpack.c.l.b16 %v615
        %v1698 = vunpack.c.h.b16 %v615
        %v1699 = vunpack.c.l.b16 %v616
        %v1700 = vunpack.c.h.b16 %v616
        %v1701 = vunpack.c.l.b16 %v617
        %v1702 = vunpack.c.h.b16 %v617
        %v1703 = vunpack.c.l.b16 %v618
        %v1704 = vunpack.c.h.b16 %v618
        %v1705 = vunpack.c.l.b16 %v619
        %v1706 = vunpack.c.h.b16 %v619
        %v1707 = vunpack.c.l.b16 %v620
        %v1708 = vunpack.c.h.b16 %v620
        %v1709 = vunpack.c.l.b16 %v621
        %v1710 = vunpack.c.h.b16 %v621
        %v1711 = vunpack.c.l.b16 %v622
        %v1712 = vunpack.c.h.b16 %v622
        %v1713 = vunpack.c.l.b16 %v623
        %v1714 = vunpack.c.h.b16 %v623
        %v1715 = vunpack.c.l.b16 %v624
        %v1716 = vunpack.c.h.b16 %v624
        %v1717 = vunpack.c.l.b16 %v625
        %v1718 = vunpack.c.h.b16 %v625
        %v1719 = vunpack.c.l.b16 %v626
        %v1720 = vunpack.c.h.b16 %v626
        %v1721 = vunpack.c.l.b16 %v627
        %v1722 = vunpack.c.h.b16 %v627
        %v1723 = vunpack.c.l.b16 %v628
        %v1724 = vunpack.c.h.b16 %v628
        %v1725 = vunpack.c.l.b16 %v629
        %v1726 = vunpack.c.h.b16 %v629
        %v1727 = vunpack.c.l.b16 %v630
        %v1728 = vunpack.c.h.b16 %v630
        %v1729 = vunpack.c.l.b16 %v631
        %v1730 = vunpack.c.h.b16 %v631
        %v1731 = vunpack.c.l.b16 %v632
        %v1732 = vunpack.c.h.b16 %v632
        %v1733 = vunpack.c.l.b16 %v633
        %v1734 = vunpack.c.h.b16 %v633
        %v1735 = vunpack.c.l.b16 %v634
        %v1736 = vunpack.c.h.b16 %v634
        %v1737 = vunpack.c.l.b16 %v635
        %v1738 = vunpack.c.h.b16 %v635
        %v1739 = vunpack.c.l.b16 %v636
        %v1740 = vunpack.c.h.b16 %v636
        %v1741 = vunpack.c.l.b16 %v637
        %v1742 = vunpack.c.h.b16 %v637
        %v1743 = vunpack.c.l.b16 %v638
        %v1744 = vunpack.c.h.b16 %v638
        %v1745 = vunpack.c.l.b16 %v639
        %v1746 = vunpack.c.h.b16 %v639
        %v1747 = vunpack.c.l.b16 %v640
        %v1748 = vunpack.c.h.b16 %v640
        %v1749 = vunpack.c.l.b16 %v641
        %v1750 = vunpack.c.h.b16 %v641
        %v1751 = vunpack.c.l.b16 %v642
        %v1752 = vunpack.c.h.b16 %v642
        %v1753 = vunpack.c.l.b16 %v643
        %v1754 = vunpack.c.h.b16 %v643
        %v1755 = vunpack.c.l.b16 %v644
        %v1756 = vunpack.c.h.b16 %v644
        %v1757 = vunpack.c.l.b16 %v645
        %v1758 = vunpack.c.h.b16 %v645
        %v1759 = vunpack.c.l.b16 %v646
        %v1760 = vunpack.c.h.b16 %v646
        %v1761 = vunpack.c.l.b16 %v647
        %v1762 = vunpack.c.h.b16 %v647
        %v1763 = vunpack.c.l.b16 %v648
        %v1764 = vunpack.c.h.b16 %v648
        %v1765 = vunpack.c.l.b16 %v649
        %v1766 = vunpack.c.h.b16 %v649
        %v1767 = vunpack.c.l.b16 %v650
        %v1768 = vunpack.c.h.b16 %v650
        %v1769 = vunpack.c.l.b16 %v651
        %v1770 = vunpack.c.h.b16 %v651
        %v1771 = vunpack.c.l.b16 %v652
        %v1772 = vunpack.c.h.b16 %v652
        %v1773 = vunpack.c.l.b16 %v653
        %v1774 = vunpack.c.h.b16 %v653
        %v1775 = vunpack.c.l.b16 %v654
        %v1776 = vunpack.c.h.b16 %v654
        %v1777 = vunpack.c.l.b16 %v655
        %v1778 = vunpack.c.h.b16 %v655
        %v1779 = vunpack.c.l.b16 %v656
        %v1780 = vunpack.c.h.b16 %v656
        %v1781 = vunpack.c.l.b16 %v657
        %v1782 = vunpack.c.h.b16 %v657
        %v1783 = vunpack.c.l.b16 %v658
        %v1784 = vunpack.c.h.b16 %v658
        %v1785 = vunpack.c.l.b16 %v659
        %v1786 = vunpack.c.h.b16 %v659
        %v1787 = vunpack.c.l.b16 %v660
        %v1788 = vunpack.c.h.b16 %v660
        %v1789 = vunpack.c.l.b16 %v661
        %v1790 = vunpack.c.h.b16 %v661
        %v1791 = vunpack.c.l.b16 %v662
        %v1792 = vunpack.c.h.b16 %v662
        %v1793 = vunpack.c.l.b16 %v663
        %v1794 = vunpack.c.h.b16 %v663
        %v1795 = vunpack.c.l.b16 %v664
        %v1796 = vunpack.c.h.b16 %v664
        %v1797 = vunpack.c.l.b16 %v665
        %v1798 = vunpack.c.h.b16 %v665
        %v1799 = vunpack.c.l.b16 %v666
        %v1800 = vunpack.c.h.b16 %v666
        %v1801 = vunpack.c.l.b16 %v667
        %v1802 = vunpack.c.h.b16 %v667
        %v1803 = vunpack.c.l.b16 %v668
        %v1804 = vunpack.c.h.b16 %v668
        %v1805 = vunpack.c.l.b16 %v669
        %v1806 = vunpack.c.h.b16 %v669
        %v1807 = vunpack.c.l.b16 %v670
        %v1808 = vunpack.c.h.b16 %v670
        %v1809 = vunpack.c.l.b16 %v671
        %v1810 = vunpack.c.h.b16 %v671
        %v1811 = vunpack.c.l.b16 %v672
        %v1812 = vunpack.c.h.b16 %v672
        %v1813 = vunpack.c.l.b16 %v673
        %v1814 = vunpack.c.h.b16 %v673
        %v1815 = vunpack.c.l.b16 %v674
        %v1816 = vunpack.c.h.b16 %v674
        %v1817 = vunpack.c.l.b16 %v675
        %v1818 = vunpack.c.h.b16 %v675
        %v1819 = vunpack.c.l.b16 %v676
        %v1820 = vunpack.c.h.b16 %v676
        %v1821 = vunpack.c.l.b16 %v677
        %v1822 = vunpack.c.h.b16 %v677
        %v1823 = vunpack.c.l.b16 %v678
        %v1824 = vunpack.c.h.b16 %v678
        %v1825 = vunpack.c.l.b16 %v679
        %v1826 = vunpack.c.h.b16 %v679
        %v1827 = vunpack.c.l.b16 %v680
        %v1828 = vunpack.c.h.b16 %v680
        %v1829 = vunpack.c.l.b16 %v681
        %v1830 = vunpack.c.h.b16 %v681
        %v1831 = vunpack.c.l.b16 %v682
        %v1832 = vunpack.c.h.b16 %v682
        %v1833 = vunpack.c.l.b16 %v683
        %v1834 = vunpack.c.h.b16 %v683
        %v1835 = vunpack.c.l.b16 %v684
        %v1836 = vunpack.c.h.b16 %v684
        %v1837 = vunpack.c.l.b16 %v685
        %v1838 = vunpack.c.h.b16 %v685
        %v1839 = vunpack.c.l.b16 %v686
        %v1840 = vunpack.c.h.b16 %v686
        %v1841 = vunpack.c.l.b16 %v687
        %v1842 = vunpack.c.h.b16 %v687
        %v1843 = vunpack.c.l.b16 %v688
        %v1844 = vunpack.c.h.b16 %v688
        %v1845 = vunpack.c.l.b16 %v689
        %v1846 = vunpack.c.h.b16 %v689
        %v1847 = vunpack.c.l.b16 %v690
        %v1848 = vunpack.c.h.b16 %v690
        %v1849 = vunpack.c.l.b16 %v691
        %v1850 = vunpack.c.h.b16 %v691
        %v1851 = vunpack.c.l.b16 %v692
        %v1852 = vunpack.c.h.b16 %v692
        %v1853 = vunpack.c.l.b16 %v693
        %v1854 = vunpack.c.h.b16 %v693
        %v1855 = vunpack.c.l.b16 %v694
        %v1856 = vunpack.c.h.b16 %v694
        %v1857 = vunpack.c.l.b16 %v695
        %v1858 = vunpack.c.h.b16 %v695
        %v1859 = vunpack.c.l.b16 %v696
        %v1860 = vunpack.c.h.b16 %v696
        %v1861 = vunpack.c.l.b16 %v697
        %v1862 = vunpack.c.h.b16 %v697
        %v1863 = vunpack.c.l.b16 %v698
        %v1864 = vunpack.c.h.b16 %v698
        %v1865 = vunpack.c.l.b16 %v699
        %v1866 = vunpack.c.h.b16 %v699
        %v1867 = vunpack.c.l.b16 %v700
        %v1868 = vunpack.c.h.b16 %v700
        %v1869 = vunpack.c.l.b16 %v701
        %v1870 = vunpack.c.h.b16 %v701
        %v1871 = vunpack.c.l.b16 %v702
        %v1872 = vunpack.c.h.b16 %v702
        %v1873 = vunpack.c.l.b16 %v703
        %v1874 = vunpack.c.h.b16 %v703
        %v1875 = vunpack.c.l.b16 %v704
        %v1876 = vunpack.c.h.b16 %v704
        %v1877 = vunpack.c.l.b16 %v705
        %v1878 = vunpack.c.h.b16 %v705
        %v1879 = vunpack.c.l.b16 %v706
        %v1880 = vunpack.c.h.b16 %v706
        %v1881 = vunpack.c.l.b16 %v707
        %v1882 = vunpack.c.h.b16 %v707
        %v1883 = vunpack.c.l.b16 %v708
        %v1884 = vunpack.c.h.b16 %v708
        %v1885 = vunpack.c.l.b16 %v709
        %v1886 = vunpack.c.h.b16 %v709
        %v1887 = vunpack.c.l.b16 %v710
        %v1888 = vunpack.c.h.b16 %v710
        %v1889 = vunpack.c.l.b16 %v711
        %v1890 = vunpack.c.h.b16 %v711
        %v1891 = vunpack.c.l.b16 %v712
        %v1892 = vunpack.c.h.b16 %v712
        %v1893 = vunpack.c.l.b16 %v713
        %v1894 = vunpack.c.h.b16 %v713
        %v1895 = vunpack.c.l.b16 %v714
        %v1896 = vunpack.c.h.b16 %v714
        %v1897 = vunpack.c.l.b16 %v715
        %v1898 = vunpack.c.h.b16 %v715
        %v1899 = vunpack.c.l.b16 %v716
        %v1900 = vunpack.c.h.b16 %v716
        %v1901 = vunpack.c.l.b16 %v717
        %v1902 = vunpack.c.h.b16 %v717
        %v1903 = vunpack.c.l.b16 %v718
        %v1904 = vunpack.c.h.b16 %v718
        %v1905 = vunpack.c.l.b16 %v719
        %v1906 = vunpack.c.h.b16 %v719
        %v1907 = vunpack.c.l.b16 %v720
        %v1908 = vunpack.c.h.b16 %v720
        %v1909 = vunpack.c.l.b16 %v721
        %v1910 = vunpack.c.h.b16 %v721
        %v1911 = vunpack.c.l.b16 %v722
        %v1912 = vunpack.c.h.b16 %v722
        %v1913 = vunpack.c.l.b16 %v723
        %v1914 = vunpack.c.h.b16 %v723
        %v1915 = vunpack.c.l.b16 %v724
        %v1916 = vunpack.c.h.b16 %v724
        %v1917 = vunpack.c.l.b16 %v725
        %v1918 = vunpack.c.h.b16 %v725
        %v1919 = vunpack.c.l.b16 %v726
        %v1920 = vunpack.c.h.b16 %v726
        %v1921 = vunpack.c.l.b16 %v727
        %v1922 = vunpack.c.h.b16 %v727
        %v1923 = vunpack.c.l.b16 %v728
        %v1924 = vunpack.c.h.b16 %v728
        %v1925 = vunpack.c.l.b16 %v729
        %v1926 = vunpack.c.h.b16 %v729
        %v1927 = vunpack.c.l.b16 %v730
        %v1928 = vunpack.c.h.b16 %v730
        %v1929 = vunpack.c.l.b16 %v731
        %v1930 = vunpack.c.h.b16 %v731
        %v1931 = vunpack.c.l.b16 %v732
        %v1932 = vunpack.c.h.b16 %v732
        %v1933 = vunpack.c.l.b16 %v733
        %v1934 = vunpack.c.h.b16 %v733
        %v1935 = vunpack.c.l.b16 %v734
        %v1936 = vunpack.c.h.b16 %v734
        %v1937 = vunpack.c.l.b16 %v735
        %v1938 = vunpack.c.h.b16 %v735
        %v1939 = vunpack.c.l.b16 %v736
        %v1940 = vunpack.c.h.b16 %v736
        %v1941 = vunpack.c.l.b16 %v737
        %v1942 = vunpack.c.h.b16 %v737
        %v1943 = vunpack.c.l.b16 %v738
        %v1944 = vunpack.c.h.b16 %v738
        %v1945 = vunpack.c.l.b16 %v739
        %v1946 = vunpack.c.h.b16 %v739
        %v1947 = vunpack.c.l.b16 %v740
        %v1948 = vunpack.c.h.b16 %v740
        %v1949 = vunpack.c.l.b16 %v741
        %v1950 = vunpack.c.h.b16 %v741
        %v1951 = vunpack.c.l.b16 %v742
        %v1952 = vunpack.c.h.b16 %v742
        %v1953 = vunpack.c.l.b16 %v743
        %v1954 = vunpack.c.h.b16 %v743
        %v1955 = vunpack.c.l.b16 %v744
        %v1956 = vunpack.c.h.b16 %v744
        %v1957 = vunpack.c.l.b16 %v745
        %v1958 = vunpack.c.h.b16 %v745
        %v1959 = vunpack.c.l.b16 %v746
        %v1960 = vunpack.c.h.b16 %v746
        %v1961 = vunpack.c.l.b16 %v747
        %v1962 = vunpack.c.h.b16 %v747
        %v1963 = vunpack.c.l.b16 %v748
        %v1964 = vunpack.c.h.b16 %v748
        %v1965 = vunpack.c.l.b16 %v749
        %v1966 = vunpack.c.h.b16 %v749
        %v1967 = vunpack.c.l.b16 %v750
        %v1968 = vunpack.c.h.b16 %v750
        %v1969 = vunpack.c.l.b16 %v751
        %v1970 = vunpack.c.h.b16 %v751
        %v1971 = vunpack.c.l.b16 %v752
        %v1972 = vunpack.c.h.b16 %v752
        %v1973 = vunpack.c.l.b16 %v753
        %v1974 = vunpack.c.h.b16 %v753
        %v1975 = vunpack.c.l.b16 %v754
        %v1976 = vunpack.c.h.b16 %v754
        %v1977 = vunpack.c.l.b16 %v755
        %v1978 = vunpack.c.h.b16 %v755
        %v1979 = vunpack.c.l.b16 %v756
        %v1980 = vunpack.c.h.b16 %v756
        %v1981 = vunpack.c.l.b16 %v757
        %v1982 = vunpack.c.h.b16 %v757
        %v1983 = vunpack.c.l.b16 %v758
        %v1984 = vunpack.c.h.b16 %v758
        %v1985 = vunpack.c.l.b16 %v759
        %v1986 = vunpack.c.h.b16 %v759
        %v1987 = vunpack.c.l.b16 %v760
        %v1988 = vunpack.c.h.b16 %v760
        %v1989 = vunpack.c.l.b16 %v761
        %v1990 = vunpack.c.h.b16 %v761
        %v1991 = vunpack.c.l.b16 %v762
        %v1992 = vunpack.c.h.b16 %v762
        %v1993 = vunpack.c.l.b16 %v763
        %v1994 = vunpack.c.h.b16 %v763
        %v1995 = vunpack.c.l.b16 %v764
        %v1996 = vunpack.c.h.b16 %v764
        %v1997 = vunpack.c.l.b16 %v765
        %v1998 = vunpack.c.h.b16 %v765
        %v1999 = vunpack.c.l.b16 %v766
        %v2000 = vunpack.c.h.b16 %v766
        %v2001 = vunpack.c.l.b16 %v767
        %v2002 = vunpack.c.h.b16 %v767
        %v2003 = vunpack.c.l.b16 %v768
        %v2004 = vunpack.c.h.b16 %v768
        %v2005 = vpack.c.b16 %v1249, %v1237
        %v2006 = vpack.c.b16 %v1250, %v1238
        %v2007 = vpack.c.b16 %v1251, %v1239
        %v2008 = vpack.c.b16 %v1252, %v1240
        %v2009 = vpack.c.b16 %v1253, %v1241
        %v2010 = vpack.c.b16 %v1254, %v1242
        %v2011 = vpack.c.b16 %v1255, %v1243
        %v2012 = vpack.c.b16 %v1256, %v1244
        %v2013 = vpack.c.b16 %v1257, %v1245
        %v2014 = vpack.c.b16 %v1258, %v1246
        %v2015 = vpack.c.b16 %v1259, %v1247
        %v2016 = vpack.c.b16 %v1260, %v1248
        %v2017 = vpack.c.b16 %v1273, %v1261
        %v2018 = vpack.c.b16 %v1274, %v1262
        %v2019 = vpack.c.b16 %v1275, %v1263
        %v2020 = vpack.c.b16 %v1276, %v1264
        %v2021 = vpack.c.b16 %v1277, %v1265
        %v2022 = vpack.c.b16 %v1278, %v1266
        %v2023 = vpack.c.b16 %v1279, %v1267
        %v2024 = vpack.c.b16 %v1280, %v1268
        %v2025 = vpack.c.b16 %v1281, %v1269
        %v2026 = vpack.c.b16 %v1282, %v1270
        %v2027 = vpack.c.b16 %v1283, %v1271
        %v2028 = vpack.c.b16 %v1284, %v1272
        %v2029 = vpack.c.b16 %v1297, %v1285
        %v2030 = vpack.c.b16 %v1298, %v1286
        %v2031 = vpack.c.b16 %v1299, %v1287
        %v2032 = vpack.c.b16 %v1300, %v1288
        %v2033 = vpack.c.b16 %v1301, %v1289
        %v2034 = vpack.c.b16 %v1302, %v1290
        %v2035 = vpack.c.b16 %v1303, %v1291
        %v2036 = vpack.c.b16 %v1304, %v1292
        %v2037 = vpack.c.b16 %v1305, %v1293
        %v2038 = vpack.c.b16 %v1306, %v1294
        %v2039 = vpack.c.b16 %v1307, %v1295
        %v2040 = vpack.c.b16 %v1308, %v1296
        %v2041 = vpack.c.b16 %v1321, %v1309
        %v2042 = vpack.c.b16 %v1322, %v1310
        %v2043 = vpack.c.b16 %v1323, %v1311
        %v2044 = vpack.c.b16 %v1324, %v1312
        %v2045 = vpack.c.b16 %v1325, %v1313
        %v2046 = vpack.c.b16 %v1326, %v1314
        %v2047 = vpack.c.b16 %v1327, %v1315
        %v2048 = vpack.c.b16 %v1328, %v1316
        %v2049 = vpack.c.b16 %v1329, %v1317
        %v2050 = vpack.c.b16 %v1330, %v1318
        %v2051 = vpack.c.b16 %v1331, %v1319
        %v2052 = vpack.c.b16 %v1332, %v1320
        %v2053 = vpack.c.b16 %v1345, %v1333
        %v2054 = vpack.c.b16 %v1346, %v1334
        %v2055 = vpack.c.b16 %v1347, %v1335
        %v2056 = vpack.c.b16 %v1348, %v1336
        %v2057 = vpack.c.b16 %v1349, %v1337
        %v2058 = vpack.c.b16 %v1350, %v1338
        %v2059 = vpack.c.b16 %v1351, %v1339
        %v2060 = vpack.c.b16 %v1352, %v1340
        %v2061 = vpack.c.b16 %v1353, %v1341
        %v2062 = vpack.c.b16 %v1354, %v1342
        %v2063 = vpack.c.b16 %v1355, %v1343
        %v2064 = vpack.c.b16 %v1356, %v1344
        %v2065 = vpack.c.b16 %v1369, %v1357
        %v2066 = vpack.c.b16 %v1370, %v1358
        %v2067 = vpack.c.b16 %v1371, %v1359
        %v2068 = vpack.c.b16 %v1372, %v1360
        %v2069 = vpack.c.b16 %v1373, %v1361
        %v2070 = vpack.c.b16 %v1374, %v1362
        %v2071 = vpack.c.b16 %v1375, %v1363
        %v2072 = vpack.c.b16 %v1376, %v1364
        %v2073 = vpack.c.b16 %v1377, %v1365
        %v2074 = vpack.c.b16 %v1378, %v1366
        %v2075 = vpack.c.b16 %v1379, %v1367
        %v2076 = vpack.c.b16 %v1380, %v1368
        %v2077 = vpack.c.b16 %v1393, %v1381
        %v2078 = vpack.c.b16 %v1394, %v1382
        %v2079 = vpack.c.b16 %v1395, %v1383
        %v2080 = vpack.c.b16 %v1396, %v1384
        %v2081 = vpack.c.b16 %v1397, %v1385
        %v2082 = vpack.c.b16 %v1398, %v1386
        %v2083 = vpack.c.b16 %v1399, %v1387
        %v2084 = vpack.c.b16 %v1400, %v1388
        %v2085 = vpack.c.b16 %v1401, %v1389
        %v2086 = vpack.c.b16 %v1402, %v1390
        %v2087 = vpack.c.b16 %v1403, %v1391
        %v2088 = vpack.c.b16 %v1404, %v1392
        %v2089 = vpack.c.b16 %v1417, %v1405
        %v2090 = vpack.c.b16 %v1418, %v1406
        %v2091 = vpack.c.b16 %v1419, %v1407
        %v2092 = vpack.c.b16 %v1420, %v1408
        %v2093 = vpack.c.b16 %v1421, %v1409
        %v2094 = vpack.c.b16 %v1422, %v1410
        %v2095 = vpack.c.b16 %v1423, %v1411
        %v2096 = vpack.c.b16 %v1424, %v1412
        %v2097 = vpack.c.b16 %v1425, %v1413
        %v2098 = vpack.c.b16 %v1426, %v1414
        %v2099 = vpack.c.b16 %v1427, %v1415
        %v2100 = vpack.c.b16 %v1428, %v1416
        %v2101 = vpack.c.b16 %v1441, %v1429
        %v2102 = vpack.c.b16 %v1442, %v1430
        %v2103 = vpack.c.b16 %v1443, %v1431
        %v2104 = vpack.c.b16 %v1444, %v1432
        %v2105 = vpack.c.b16 %v1445, %v1433
        %v2106 = vpack.c.b16 %v1446, %v1434
        %v2107 = vpack.c.b16 %v1447, %v1435
        %v2108 = vpack.c.b16 %v1448, %v1436
        %v2109 = vpack.c.b16 %v1449, %v1437
        %v2110 = vpack.c.b16 %v1450, %v1438
        %v2111 = vpack.c.b16 %v1451, %v1439
        %v2112 = vpack.c.b16 %v1452, %v1440
        %v2113 = vpack.c.b16 %v1465, %v1453
        %v2114 = vpack.c.b16 %v1466, %v1454
        %v2115 = vpack.c.b16 %v1467, %v1455
        %v2116 = vpack.c.b16 %v1468, %v1456
        %v2117 = vpack.c.b16 %v1469, %v1457
        %v2118 = vpack.c.b16 %v1470, %v1458
        %v2119 = vpack.c.b16 %v1471, %v1459
        %v2120 = vpack.c.b16 %v1472, %v1460
        %v2121 = vpack.c.b16 %v1473, %v1461
        %v2122 = vpack.c.b16 %v1474, %v1462
        %v2123 = vpack.c.b16 %v1475, %v1463
        %v2124 = vpack.c.b16 %v1476, %v1464
        %v2125 = vpack.c.b16 %v1489, %v1477
        %v2126 = vpack.c.b16 %v1490, %v1478
        %v2127 = vpack.c.b16 %v1491, %v1479
        %v2128 = vpack.c.b16 %v1492, %v1480
        %v2129 = vpack.c.b16 %v1493, %v1481
        %v2130 = vpack.c.b16 %v1494, %v1482
        %v2131 = vpack.c.b16 %v1495, %v1483
        %v2132 = vpack.c.b16 %v1496, %v1484
        %v2133 = vpack.c.b16 %v1497, %v1485
        %v2134 = vpack.c.b16 %v1498, %v1486
        %v2135 = vpack.c.b16 %v1499, %v1487
        %v2136 = vpack.c.b16 %v1500, %v1488
        %v2137 = vpack.c.b16 %v1513, %v1501
        %v2138 = vpack.c.b16 %v1514, %v1502
        %v2139 = vpack.c.b16 %v1515, %v1503
        %v2140 = vpack.c.b16 %v1516, %v1504
        %v2141 = vpack.c.b16 %v1517, %v1505
        %v2142 = vpack.c.b16 %v1518, %v1506
        %v2143 = vpack.c.b16 %v1519, %v1507
        %v2144 = vpack.c.b16 %v1520, %v1508
        %v2145 = vpack.c.b16 %v1521, %v1509
        %v2146 = vpack.c.b16 %v1522, %v1510
        %v2147 = vpack.c.b16 %v1523, %v1511
        %v2148 = vpack.c.b16 %v1524, %v1512
        %v2149 = vpack.c.b16 %v1537, %v1525
        %v2150 = vpack.c.b16 %v1538, %v1526
        %v2151 = vpack.c.b16 %v1539, %v1527
        %v2152 = vpack.c.b16 %v1540, %v1528
        %v2153 = vpack.c.b16 %v1541, %v1529
        %v2154 = vpack.c.b16 %v1542, %v1530
        %v2155 = vpack.c.b16 %v1543, %v1531
        %v2156 = vpack.c.b16 %v1544, %v1532
        %v2157 = vpack.c.b16 %v1545, %v1533
        %v2158 = vpack.c.b16 %v1546, %v1534
        %v2159 = vpack.c.b16 %v1547, %v1535
        %v2160 = vpack.c.b16 %v1548, %v1536
        %v2161 = vpack.c.b16 %v1561, %v1549
        %v2162 = vpack.c.b16 %v1562, %v1550
        %v2163 = vpack.c.b16 %v1563, %v1551
        %v2164 = vpack.c.b16 %v1564, %v1552
        %v2165 = vpack.c.b16 %v1565, %v1553
        %v2166 = vpack.c.b16 %v1566, %v1554
        %v2167 = vpack.c.b16 %v1567, %v1555
        %v2168 = vpack.c.b16 %v1568, %v1556
        %v2169 = vpack.c.b16 %v1569, %v1557
        %v2170 = vpack.c.b16 %v1570, %v1558
        %v2171 = vpack.c.b16 %v1571, %v1559
        %v2172 = vpack.c.b16 %v1572, %v1560
        %v2173 = vpack.c.b16 %v1585, %v1573
        %v2174 = vpack.c.b16 %v1586, %v1574
        %v2175 = vpack.c.b16 %v1587, %v1575
        %v2176 = vpack.c.b16 %v1588, %v1576
        %v2177 = vpack.c.b16 %v1589, %v1577
        %v2178 = vpack.c.b16 %v1590, %v1578
        %v2179 = vpack.c.b16 %v1591, %v1579
        %v2180 = vpack.c.b16 %v1592, %v1580
        %v2181 = vpack.c.b16 %v1593, %v1581
        %v2182 = vpack.c.b16 %v1594, %v1582
        %v2183 = vpack.c.b16 %v1595, %v1583
        %v2184 = vpack.c.b16 %v1596, %v1584
        %v2185 = vpack.c.b16 %v1609, %v1597
        %v2186 = vpack.c.b16 %v1610, %v1598
        %v2187 = vpack.c.b16 %v1611, %v1599
        %v2188 = vpack.c.b16 %v1612, %v1600
        %v2189 = vpack.c.b16 %v1613, %v1601
        %v2190 = vpack.c.b16 %v1614, %v1602
        %v2191 = vpack.c.b16 %v1615, %v1603
        %v2192 = vpack.c.b16 %v1616, %v1604
        %v2193 = vpack.c.b16 %v1617, %v1605
        %v2194 = vpack.c.b16 %v1618, %v1606
        %v2195 = vpack.c.b16 %v1619, %v1607
        %v2196 = vpack.c.b16 %v1620, %v1608
        %v2197 = vpack.c.b16 %v1633, %v1621
        %v2198 = vpack.c.b16 %v1634, %v1622
        %v2199 = vpack.c.b16 %v1635, %v1623
        %v2200 = vpack.c.b16 %v1636, %v1624
        %v2201 = vpack.c.b16 %v1637, %v1625
        %v2202 = vpack.c.b16 %v1638, %v1626
        %v2203 = vpack.c.b16 %v1639, %v1627
        %v2204 = vpack.c.b16 %v1640, %v1628
        %v2205 = vpack.c.b16 %v1641, %v1629
        %v2206 = vpack.c.b16 %v1642, %v1630
        %v2207 = vpack.c.b16 %v1643, %v1631
        %v2208 = vpack.c.b16 %v1644, %v1632
        %v2209 = vpack.c.b16 %v1657, %v1645
        %v2210 = vpack.c.b16 %v1658, %v1646
        %v2211 = vpack.c.b16 %v1659, %v1647
        %v2212 = vpack.c.b16 %v1660, %v1648
        %v2213 = vpack.c.b16 %v1661, %v1649
        %v2214 = vpack.c.b16 %v1662, %v1650
        %v2215 = vpack.c.b16 %v1663, %v1651
        %v2216 = vpack.c.b16 %v1664, %v1652
        %v2217 = vpack.c.b16 %v1665, %v1653
        %v2218 = vpack.c.b16 %v1666, %v1654
        %v2219 = vpack.c.b16 %v1667, %v1655
        %v2220 = vpack.c.b16 %v1668, %v1656
        %v2221 = vpack.c.b16 %v1681, %v1669
        %v2222 = vpack.c.b16 %v1682, %v1670
        %v2223 = vpack.c.b16 %v1683, %v1671
        %v2224 = vpack.c.b16 %v1684, %v1672
        %v2225 = vpack.c.b16 %v1685, %v1673
        %v2226 = vpack.c.b16 %v1686, %v1674
        %v2227 = vpack.c.b16 %v1687, %v1675
        %v2228 = vpack.c.b16 %v1688, %v1676
        %v2229 = vpack.c.b16 %v1689, %v1677
        %v2230 = vpack.c.b16 %v1690, %v1678
        %v2231 = vpack.c.b16 %v1691, %v1679
        %v2232 = vpack.c.b16 %v1692, %v1680
        %v2233 = vpack.c.b16 %v1705, %v1693
        %v2234 = vpack.c.b16 %v1706, %v1694
        %v2235 = vpack.c.b16 %v1707, %v1695
        %v2236 = vpack.c.b16 %v1708, %v1696
        %v2237 = vpack.c.b16 %v1709, %v1697
        %v2238 = vpack.c.b16 %v1710, %v1698
        %v2239 = vpack.c.b16 %v1711, %v1699
        %v2240 = vpack.c.b16 %v1712, %v1700
        %v2241 = vpack.c.b16 %v1713, %v1701
        %v2242 = vpack.c.b16 %v1714, %v1702
        %v2243 = vpack.c.b16 %v1715, %v1703
        %v2244 = vpack.c.b16 %v1716, %v1704
        %v2245 = vpack.c.b16 %v1729, %v1717
        %v2246 = vpack.c.b16 %v1730, %v1718
        %v2247 = vpack.c.b16 %v1731, %v1719
        %v2248 = vpack.c.b16 %v1732, %v1720
        %v2249 = vpack.c.b16 %v1733, %v1721
        %v2250 = vpack.c.b16 %v1734, %v1722
        %v2251 = vpack.c.b16 %v1735, %v1723
        %v2252 = vpack.c.b16 %v1736, %v1724
        %v2253 = vpack.c.b16 %v1737, %v1725
        %v2254 = vpack.c.b16 %v1738, %v1726
        %v2255 = vpack.c.b16 %v1739, %v1727
        %v2256 = vpack.c.b16 %v1740, %v1728
        %v2257 = vpack.c.b16 %v1753, %v1741
        %v2258 = vpack.c.b16 %v1754, %v1742
        %v2259 = vpack.c.b16 %v1755, %v1743
        %v2260 = vpack.c.b16 %v1756, %v1744
        %v2261 = vpack.c.b16 %v1757, %v1745
        %v2262 = vpack.c.b16 %v1758, %v1746
        %v2263 = vpack.c.b16 %v1759, %v1747
        %v2264 = vpack.c.b16 %v1760, %v1748
        %v2265 = vpack.c.b16 %v1761, %v1749
        %v2266 = vpack.c.b16 %v1762, %v1750
        %v2267 = vpack.c.b16 %v1763, %v1751
        %v2268 = vpack.c.b16 %v1764, %v1752
        %v2269 = vpack.c.b16 %v1777, %v1765
        %v2270 = vpack.c.b16 %v1778, %v1766
        %v2271 = vpack.c.b16 %v1779, %v1767
        %v2272 = vpack.c.b16 %v1780, %v1768
        %v2273 = vpack.c.b16 %v1781, %v1769
        %v2274 = vpack.c.b16 %v1782, %v1770
        %v2275 = vpack.c.b16 %v1783, %v1771
        %v2276 = vpack.c.b16 %v1784, %v1772
        %v2277 = vpack.c.b16 %v1785, %v1773
        %v2278 = vpack.c.b16 %v1786, %v1774
        %v2279 = vpack.c.b16 %v1787, %v1775
        %v2280 = vpack.c.b16 %v1788, %v1776
        %v2281 = vpack.c.b16 %v1801, %v1789
        %v2282 = vpack.c.b16 %v1802, %v1790
        %v2283 = vpack.c.b16 %v1803, %v1791
        %v2284 = vpack.c.b16 %v1804, %v1792
        %v2285 = vpack.c.b16 %v1805, %v1793
        %v2286 = vpack.c.b16 %v1806, %v1794
        %v2287 = vpack.c.b16 %v1807, %v1795
        %v2288 = vpack.c.b16 %v1808, %v1796
        %v2289 = vpack.c.b16 %v1809, %v1797
        %v2290 = vpack.c.b16 %v1810, %v1798
        %v2291 = vpack.c.b16 %v1811, %v1799
        %v2292 = vpack.c.b16 %v1812, %v1800
        %v2293 = vpack.c.b16 %v1825, %v1813
        %v2294 = vpack.c.b16 %v1826, %v1814
        %v2295 = vpack.c.b16 %v1827, %v1815
        %v2296 = vpack.c.b16 %v1828, %v1816
        %v2297 = vpack.c.b16 %v1829, %v1817
        %v2298 = vpack.c.b16 %v1830, %v1818
        %v2299 = vpack.c.b16 %v1831, %v1819
        %v2300 = vpack.c.b16 %v1832, %v1820
        %v2301 = vpack.c.b16 %v1833, %v1821
        %v2302 = vpack.c.b16 %v1834, %v1822
        %v2303 = vpack.c.b16 %v1835, %v1823
        %v2304 = vpack.c.b16 %v1836, %v1824
        %v2305 = vpack.c.b16 %v1849, %v1837
        %v2306 = vpack.c.b16 %v1850, %v1838
        %v2307 = vpack.c.b16 %v1851, %v1839
        %v2308 = vpack.c.b16 %v1852, %v1840
        %v2309 = vpack.c.b16 %v1853, %v1841
        %v2310 = vpack.c.b16 %v1854, %v1842
        %v2311 = vpack.c.b16 %v1855, %v1843
        %v2312 = vpack.c.b16 %v1856, %v1844
        %v2313 = vpack.c.b16 %v1857, %v1845
        %v2314 = vpack.c.b16 %v1858, %v1846
        %v2315 = vpack.c.b16 %v1859, %v1847
        %v2316 = vpack.c.b16 %v1860, %v1848
        %v2317 = vpack.c.b16 %v1873, %v1861
        %v2318 = vpack.c.b16 %v1874, %v1862
        %v2319 = vpack.c.b16 %v1875, %v1863
        %v2320 = vpack.c.b16 %v1876, %v1864
        %v2321 = vpack.c.b16 %v1877, %v1865
        %v2322 = vpack.c.b16 %v1878, %v1866
        %v2323 = vpack.c.b16 %v1879, %v1867
        %v2324 = vpack.c.b16 %v1880, %v1868
        %v2325 = vpack.c.b16 %v1881, %v1869
        %v2326 = vpack.c.b16 %v1882, %v1870
        %v2327 = vpack.c.b16 %v1883, %v1871
        %v2328 = vpack.c.b16 %v1884, %v1872
        %v2329 = vpack.c.b16 %v1897, %v1885
        %v2330 = vpack.c.b16 %v1898, %v1886
        %v2331 = vpack.c.b16 %v1899, %v1887
        %v2332 = vpack.c.b16 %v1900, %v1888
        %v2333 = vpack.c.b16 %v1901, %v1889
        %v2334 = vpack.c.b16 %v1902, %v1890
        %v2335 = vpack.c.b16 %v1903, %v1891
        %v2336 = vpack.c.b16 %v1904, %v1892
        %v2337 = vpack.c.b16 %v1905, %v1893
        %v2338 = vpack.c.b16 %v1906, %v1894
        %v2339 = vpack.c.b16 %v1907, %v1895
        %v2340 = vpack.c.b16 %v1908, %v1896
        %v2341 = vpack.c.b16 %v1921, %v1909
        %v2342 = vpack.c.b16 %v1922, %v1910
        %v2343 = vpack.c.b16 %v1923, %v1911
        %v2344 = vpack.c.b16 %v1924, %v1912
        %v2345 = vpack.c.b16 %v1925, %v1913
        %v2346 = vpack.c.b16 %v1926, %v1914
        %v2347 = vpack.c.b16 %v1927, %v1915
        %v2348 = vpack.c.b16 %v1928, %v1916
        %v2349 = vpack.c.b16 %v1929, %v1917
        %v2350 = vpack.c.b16 %v1930, %v1918
        %v2351 = vpack.c.b16 %v1931, %v1919
        %v2352 = vpack.c.b16 %v1932, %v1920
        %v2353 = vpack.c.b16 %v1945, %v1933
        %v2354 = vpack.c.b16 %v1946, %v1934
        %v2355 = vpack.c.b16 %v1947, %v1935
        %v2356 = vpack.c.b16 %v1948, %v1936
        %v2357 = vpack.c.b16 %v1949, %v1937
        %v2358 = vpack.c.b16 %v1950, %v1938
        %v2359 = vpack.c.b16 %v1951, %v1939
        %v2360 = vpack.c.b16 %v1952, %v1940
        %v2361 = vpack.c.b16 %v1953, %v1941
        %v2362 = vpack.c.b16 %v1954, %v1942
        %v2363 = vpack.c.b16 %v1955, %v1943
        %v2364 = vpack.c.b16 %v1956, %v1944
        %v2365 = vpack.c.b16 %v1969, %v1957
        %v2366 = vpack.c.b16 %v1970, %v1958
        %v2367 = vpack.c.b16 %v1971, %v1959
        %v2368 = vpack.c.b16 %v1972, %v1960
        %v2369 = vpack.c.b16 %v1973, %v1961
        %v2370 = vpack.c.b16 %v1974, %v1962
        %v2371 = vpack.c.b16 %v1975, %v1963
        %v2372 = vpack.c.b16 %v1976, %v1964
        %v2373 = vpack.c.b16 %v1977, %v1965
        %v2374 = vpack.c.b16 %v1978, %v1966
        %v2375 = vpack.c.b16 %v1979, %v1967
        %v2376 = vpack.c.b16 %v1980, %v1968
        %v2377 = vpack.c.b16 %v1993, %v1981
        %v2378 = vpack.c.b16 %v1994, %v1982
        %v2379 = vpack.c.b16 %v1995, %v1983
        %v2380 = vpack.c.b16 %v1996, %v1984
        %v2381 = vpack.c.b16 %v1997, %v1985
        %v2382 = vpack.c.b16 %v1998, %v1986
        %v2383 = vpack.c.b16 %v1999, %v1987
        %v2384 = vpack.c.b16 %v2000, %v1988
        %v2385 = vpack.c.b16 %v2001, %v1989
        %v2386 = vpack.c.b16 %v2002, %v1990
        %v2387 = vpack.c.b16 %v2003, %v1991
        %v2388 = vpack.c.b16 %v2004, %v1992
        %2773 = vmatprep.subr.bf16.mxu0 %v2090
        %2774 = vmatpush1.bf16.msra.mxu0 %v2089
        %2775 = vmatprep.subr.bf16.mxu0 %v2078
        %2776 = vmatpush1.bf16.msra.mxu0 %v2077
        %2777 = vmatprep.subr.bf16.mxu0 %v2066
        %2778 = vmatpush1.bf16.msra.mxu0 %v2065
        %2779 = vmatprep.subr.bf16.mxu0 %v2054
        %2780 = vmatpush1.bf16.msra.mxu0 %v2053
        %2781 = vmatprep.subr.bf16.mxu0 %v2042
        %2782 = vmatpush1.bf16.msra.mxu0 %v2041
        %2783 = vmatprep.subr.bf16.mxu0 %v2030
        %2784 = vmatpush1.bf16.msra.mxu0 %v2029
        %2785 = vmatprep.subr.bf16.mxu0 %v2018
        %2786 = vmatpush1.bf16.msra.mxu0 %v2017
        %2787 = vmatprep.subr.bf16.mxu0 %v2006
        %2788 = vmatpush1.bf16.msra.mxu0 %v2005
        %2789 = vmatprep.subr.bf16.mxu0 %v2186
        %2790 = vmatpush2.bf16.msra.mxu0 %v2185
        %2791 = vmatprep.subr.bf16.mxu0 %v2174
        %2792 = vmatpush2.bf16.msra.mxu0 %v2173
        %2793 = vmatprep.subr.bf16.mxu0 %v2162
        %2794 = vmatpush2.bf16.msra.mxu0 %v2161
        %2795 = vmatprep.subr.bf16.mxu0 %v2150
        %2796 = vmatpush2.bf16.msra.mxu0 %v2149
        %2797 = vmatprep.subr.bf16.mxu0 %v2138
        %2798 = vmatpush2.bf16.msra.mxu0 %v2137
        %2799 = vmatprep.subr.bf16.mxu0 %v2126
        %2800 = vmatpush2.bf16.msra.mxu0 %v2125
        %2801 = vmatprep.subr.bf16.mxu0 %v2114
        %2802 = vmatpush2.bf16.msra.mxu0 %v2113
        %2803 = vmatprep.subr.bf16.mxu0 %v2102
        %2804 = vmatpush2.bf16.msra.mxu0 %v2101
        %2805 = vmatprep.mubr.bf16.mxu0 %v846
        %2806 = vmatmul.mubr.bf16.gmra.mxu0 %v845
        %v2807 = vpop.f32.mrf.mxu0
        %v2808 = vadd.f32 %v776, %v2807
        %v2809 = vpop.f32.mrf.mxu0
        %v2810 = vadd.f32 %v780, %v2809
        %v2811 = vpop.f32.mrf.mxu0
        %v2812 = vadd.f32 %v776, %v2811
        %v2813 = vpop.f32.mrf.mxu0
        %v2814 = vadd.f32 %v780, %v2813
        %2815 = vdwg.mxu0
        %2816 = vmatprep.subr.bf16.mxu0 %v2282
        %2817 = vmatpush1.bf16.msra.mxu0 %v2281
        %2818 = vmatprep.subr.bf16.mxu0 %v2270
        %2819 = vmatpush1.bf16.msra.mxu0 %v2269
        %2820 = vmatprep.subr.bf16.mxu0 %v2258
        %2821 = vmatpush1.bf16.msra.mxu0 %v2257
        %2822 = vmatprep.subr.bf16.mxu0 %v2246
        %2823 = vmatpush1.bf16.msra.mxu0 %v2245
        %2824 = vmatprep.subr.bf16.mxu0 %v2234
        %2825 = vmatpush1.bf16.msra.mxu0 %v2233
        %2826 = vmatprep.subr.bf16.mxu0 %v2222
        %2827 = vmatpush1.bf16.msra.mxu0 %v2221
        %2828 = vmatprep.subr.bf16.mxu0 %v2210
        %2829 = vmatpush1.bf16.msra.mxu0 %v2209
        %2830 = vmatprep.subr.bf16.mxu0 %v2198
        %2831 = vmatpush1.bf16.msra.mxu0 %v2197
        %2832 = vmatprep.subr.bf16.mxu0 %v2378
        %2833 = vmatpush2.bf16.msra.mxu0 %v2377
        %2834 = vmatprep.subr.bf16.mxu0 %v2366
        %2835 = vmatpush2.bf16.msra.mxu0 %v2365
        %2836 = vmatprep.subr.bf16.mxu0 %v2354
        %2837 = vmatpush2.bf16.msra.mxu0 %v2353
        %2838 = vmatprep.subr.bf16.mxu0 %v2342
        %2839 = vmatpush2.bf16.msra.mxu0 %v2341
        %2840 = vmatprep.subr.bf16.mxu0 %v2330
        %2841 = vmatpush2.bf16.msra.mxu0 %v2329
        %2842 = vmatprep.subr.bf16.mxu0 %v2318
        %2843 = vmatpush2.bf16.msra.mxu0 %v2317
        %2844 = vmatprep.subr.bf16.mxu0 %v2306
        %2845 = vmatpush2.bf16.msra.mxu0 %v2305
        %2846 = vmatprep.subr.bf16.mxu0 %v2294
        %2847 = vmatpush2.bf16.msra.mxu0 %v2293
        %2848 = vmatprep.mubr.bf16.mxu0 %v848
        %2849 = vmatmul.mubr.bf16.gmra.mxu0 %v847
        %v2850 = vpop.f32.mrf.mxu0
        %v2851 = vadd.f32 %v2808, %v2850
        %v2852 = vpop.f32.mrf.mxu0
        %v2853 = vadd.f32 %v2810, %v2852
        %v2854 = vpop.f32.mrf.mxu0
        %v2855 = vadd.f32 %v2812, %v2854
        %v2856 = vpop.f32.mrf.mxu0
        %v2857 = vadd.f32 %v2814, %v2856
        %2858 = vdwg.mxu0
        %2859 = vmatprep.subr.bf16.mxu0 %v2092
        %2860 = vmatpush1.bf16.msra.mxu0 %v2091
        %2861 = vmatprep.subr.bf16.mxu0 %v2080
        %2862 = vmatpush1.bf16.msra.mxu0 %v2079
        %2863 = vmatprep.subr.bf16.mxu0 %v2068
        %2864 = vmatpush1.bf16.msra.mxu0 %v2067
        %2865 = vmatprep.subr.bf16.mxu0 %v2056
        %2866 = vmatpush1.bf16.msra.mxu0 %v2055
        %2867 = vmatprep.subr.bf16.mxu0 %v2044
        %2868 = vmatpush1.bf16.msra.mxu0 %v2043
        %2869 = vmatprep.subr.bf16.mxu0 %v2032
        %2870 = vmatpush1.bf16.msra.mxu0 %v2031
        %2871 = vmatprep.subr.bf16.mxu0 %v2020
        %2872 = vmatpush1.bf16.msra.mxu0 %v2019
        %2873 = vmatprep.subr.bf16.mxu0 %v2008
        %2874 = vmatpush1.bf16.msra.mxu0 %v2007
        %2875 = vmatprep.subr.bf16.mxu0 %v2188
        %2876 = vmatpush2.bf16.msra.mxu0 %v2187
        %2877 = vmatprep.subr.bf16.mxu0 %v2176
        %2878 = vmatpush2.bf16.msra.mxu0 %v2175
        %2879 = vmatprep.subr.bf16.mxu0 %v2164
        %2880 = vmatpush2.bf16.msra.mxu0 %v2163
        %2881 = vmatprep.subr.bf16.mxu0 %v2152
        %2882 = vmatpush2.bf16.msra.mxu0 %v2151
        %2883 = vmatprep.subr.bf16.mxu0 %v2140
        %2884 = vmatpush2.bf16.msra.mxu0 %v2139
        %2885 = vmatprep.subr.bf16.mxu0 %v2128
        %2886 = vmatpush2.bf16.msra.mxu0 %v2127
        %2887 = vmatprep.subr.bf16.mxu0 %v2116
        %2888 = vmatpush2.bf16.msra.mxu0 %v2115
        %2889 = vmatprep.subr.bf16.mxu0 %v2104
        %2890 = vmatpush2.bf16.msra.mxu0 %v2103
        %2891 = vmatprep.mubr.bf16.mxu0 %v846
        %2892 = vmatmul.mubr.bf16.gmra.mxu0 %v845
        %v2893 = vpop.f32.mrf.mxu0
        %v2894 = vadd.f32 %v784, %v2893
        %v2895 = vpop.f32.mrf.mxu0
        %v2896 = vadd.f32 %v788, %v2895
        %v2897 = vpop.f32.mrf.mxu0
        %v2898 = vadd.f32 %v784, %v2897
        %v2899 = vpop.f32.mrf.mxu0
        %v2900 = vadd.f32 %v788, %v2899
        %2901 = vdwg.mxu0
        %2902 = vmatprep.subr.bf16.mxu0 %v2284
        %2903 = vmatpush1.bf16.msra.mxu0 %v2283
        %2904 = vmatprep.subr.bf16.mxu0 %v2272
        %2905 = vmatpush1.bf16.msra.mxu0 %v2271
        %2906 = vmatprep.subr.bf16.mxu0 %v2260
        %2907 = vmatpush1.bf16.msra.mxu0 %v2259
        %2908 = vmatprep.subr.bf16.mxu0 %v2248
        %2909 = vmatpush1.bf16.msra.mxu0 %v2247
        %2910 = vmatprep.subr.bf16.mxu0 %v2236
        %2911 = vmatpush1.bf16.msra.mxu0 %v2235
        %2912 = vmatprep.subr.bf16.mxu0 %v2224
        %2913 = vmatpush1.bf16.msra.mxu0 %v2223
        %2914 = vmatprep.subr.bf16.mxu0 %v2212
        %2915 = vmatpush1.bf16.msra.mxu0 %v2211
        %2916 = vmatprep.subr.bf16.mxu0 %v2200
        %2917 = vmatpush1.bf16.msra.mxu0 %v2199
        %2918 = vmatprep.subr.bf16.mxu0 %v2380
        %2919 = vmatpush2.bf16.msra.mxu0 %v2379
        %2920 = vmatprep.subr.bf16.mxu0 %v2368
        %2921 = vmatpush2.bf16.msra.mxu0 %v2367
        %2922 = vmatprep.subr.bf16.mxu0 %v2356
        %2923 = vmatpush2.bf16.msra.mxu0 %v2355
        %2924 = vmatprep.subr.bf16.mxu0 %v2344
        %2925 = vmatpush2.bf16.msra.mxu0 %v2343
        %2926 = vmatprep.subr.bf16.mxu0 %v2332
        %2927 = vmatpush2.bf16.msra.mxu0 %v2331
        %2928 = vmatprep.subr.bf16.mxu0 %v2320
        %2929 = vmatpush2.bf16.msra.mxu0 %v2319
        %2930 = vmatprep.subr.bf16.mxu0 %v2308
        %2931 = vmatpush2.bf16.msra.mxu0 %v2307
        %2932 = vmatprep.subr.bf16.mxu0 %v2296
        %2933 = vmatpush2.bf16.msra.mxu0 %v2295
        %2934 = vmatprep.mubr.bf16.mxu0 %v848
        %2935 = vmatmul.mubr.bf16.gmra.mxu0 %v847
        %v2936 = vpop.f32.mrf.mxu0
        %v2937 = vadd.f32 %v2894, %v2936
        %v2938 = vpop.f32.mrf.mxu0
        %v2939 = vadd.f32 %v2896, %v2938
        %v2940 = vpop.f32.mrf.mxu0
        %v2941 = vadd.f32 %v2898, %v2940
        %v2942 = vpop.f32.mrf.mxu0
        %v2943 = vadd.f32 %v2900, %v2942
        %2944 = vdwg.mxu0
        %2945 = vmatprep.subr.bf16.mxu0 %v2094
        %2946 = vmatpush1.bf16.msra.mxu0 %v2093
        %2947 = vmatprep.subr.bf16.mxu0 %v2082
        %2948 = vmatpush1.bf16.msra.mxu0 %v2081
        %2949 = vmatprep.subr.bf16.mxu0 %v2070
        %2950 = vmatpush1.bf16.msra.mxu0 %v2069
        %2951 = vmatprep.subr.bf16.mxu0 %v2058
        %2952 = vmatpush1.bf16.msra.mxu0 %v2057
        %2953 = vmatprep.subr.bf16.mxu0 %v2046
        %2954 = vmatpush1.bf16.msra.mxu0 %v2045
        %2955 = vmatprep.subr.bf16.mxu0 %v2034
        %2956 = vmatpush1.bf16.msra.mxu0 %v2033
        %2957 = vmatprep.subr.bf16.mxu0 %v2022
        %2958 = vmatpush1.bf16.msra.mxu0 %v2021
        %2959 = vmatprep.subr.bf16.mxu0 %v2010
        %2960 = vmatpush1.bf16.msra.mxu0 %v2009
        %2961 = vmatprep.subr.bf16.mxu0 %v2190
        %2962 = vmatpush2.bf16.msra.mxu0 %v2189
        %2963 = vmatprep.subr.bf16.mxu0 %v2178
        %2964 = vmatpush2.bf16.msra.mxu0 %v2177
        %2965 = vmatprep.subr.bf16.mxu0 %v2166
        %2966 = vmatpush2.bf16.msra.mxu0 %v2165
        %2967 = vmatprep.subr.bf16.mxu0 %v2154
        %2968 = vmatpush2.bf16.msra.mxu0 %v2153
        %2969 = vmatprep.subr.bf16.mxu0 %v2142
        %2970 = vmatpush2.bf16.msra.mxu0 %v2141
        %2971 = vmatprep.subr.bf16.mxu0 %v2130
        %2972 = vmatpush2.bf16.msra.mxu0 %v2129
        %2973 = vmatprep.subr.bf16.mxu0 %v2118
        %2974 = vmatpush2.bf16.msra.mxu0 %v2117
        %2975 = vmatprep.subr.bf16.mxu0 %v2106
        %2976 = vmatpush2.bf16.msra.mxu0 %v2105
        %2977 = vmatprep.mubr.bf16.mxu0 %v846
        %2978 = vmatmul.mubr.bf16.gmra.mxu0 %v845
        %v2979 = vpop.f32.mrf.mxu0
        %v2980 = vadd.f32 %v792, %v2979
        %v2981 = vpop.f32.mrf.mxu0
        %v2982 = vadd.f32 %v796, %v2981
        %v2983 = vpop.f32.mrf.mxu0
        %v2984 = vadd.f32 %v792, %v2983
        %v2985 = vpop.f32.mrf.mxu0
        %v2986 = vadd.f32 %v796, %v2985
        %2987 = vdwg.mxu0
        %2988 = vmatprep.subr.bf16.mxu0 %v2286
        %2989 = vmatpush1.bf16.msra.mxu0 %v2285
        %2990 = vmatprep.subr.bf16.mxu0 %v2274
        %2991 = vmatpush1.bf16.msra.mxu0 %v2273
        %2992 = vmatprep.subr.bf16.mxu0 %v2262
        %2993 = vmatpush1.bf16.msra.mxu0 %v2261
        %2994 = vmatprep.subr.bf16.mxu0 %v2250
        %2995 = vmatpush1.bf16.msra.mxu0 %v2249
        %2996 = vmatprep.subr.bf16.mxu0 %v2238
        %2997 = vmatpush1.bf16.msra.mxu0 %v2237
        %2998 = vmatprep.subr.bf16.mxu0 %v2226
        %2999 = vmatpush1.bf16.msra.mxu0 %v2225
        %3000 = vmatprep.subr.bf16.mxu0 %v2214
        %3001 = vmatpush1.bf16.msra.mxu0 %v2213
        %3002 = vmatprep.subr.bf16.mxu0 %v2202
        %3003 = vmatpush1.bf16.msra.mxu0 %v2201
        %3004 = vmatprep.subr.bf16.mxu0 %v2382
        %3005 = vmatpush2.bf16.msra.mxu0 %v2381
        %3006 = vmatprep.subr.bf16.mxu0 %v2370
        %3007 = vmatpush2.bf16.msra.mxu0 %v2369
        %3008 = vmatprep.subr.bf16.mxu0 %v2358
        %3009 = vmatpush2.bf16.msra.mxu0 %v2357
        %3010 = vmatprep.subr.bf16.mxu0 %v2346
        %3011 = vmatpush2.bf16.msra.mxu0 %v2345
        %3012 = vmatprep.subr.bf16.mxu0 %v2334
        %3013 = vmatpush2.bf16.msra.mxu0 %v2333
        %3014 = vmatprep.subr.bf16.mxu0 %v2322
        %3015 = vmatpush2.bf16.msra.mxu0 %v2321
        %3016 = vmatprep.subr.bf16.mxu0 %v2310
        %3017 = vmatpush2.bf16.msra.mxu0 %v2309
        %3018 = vmatprep.subr.bf16.mxu0 %v2298
        %3019 = vmatpush2.bf16.msra.mxu0 %v2297
        %3020 = vmatprep.mubr.bf16.mxu0 %v848
        %3021 = vmatmul.mubr.bf16.gmra.mxu0 %v847
        %v3022 = vpop.f32.mrf.mxu0
        %v3023 = vadd.f32 %v2980, %v3022
        %v3024 = vpop.f32.mrf.mxu0
        %v3025 = vadd.f32 %v2982, %v3024
        %v3026 = vpop.f32.mrf.mxu0
        %v3027 = vadd.f32 %v2984, %v3026
        %v3028 = vpop.f32.mrf.mxu0
        %v3029 = vadd.f32 %v2986, %v3028
        %3030 = vdwg.mxu0
        %3031 = vmatprep.subr.bf16.mxu0 %v2096
        %3032 = vmatpush1.bf16.msra.mxu0 %v2095
        %3033 = vmatprep.subr.bf16.mxu0 %v2084
        %3034 = vmatpush1.bf16.msra.mxu0 %v2083
        %3035 = vmatprep.subr.bf16.mxu0 %v2072
        %3036 = vmatpush1.bf16.msra.mxu0 %v2071
        %3037 = vmatprep.subr.bf16.mxu0 %v2060
        %3038 = vmatpush1.bf16.msra.mxu0 %v2059
        %3039 = vmatprep.subr.bf16.mxu0 %v2048
        %3040 = vmatpush1.bf16.msra.mxu0 %v2047
        %3041 = vmatprep.subr.bf16.mxu0 %v2036
        %3042 = vmatpush1.bf16.msra.mxu0 %v2035
        %3043 = vmatprep.subr.bf16.mxu0 %v2024
        %3044 = vmatpush1.bf16.msra.mxu0 %v2023
        %3045 = vmatprep.subr.bf16.mxu0 %v2012
        %3046 = vmatpush1.bf16.msra.mxu0 %v2011
        %3047 = vmatprep.subr.bf16.mxu0 %v2192
        %3048 = vmatpush2.bf16.msra.mxu0 %v2191
        %3049 = vmatprep.subr.bf16.mxu0 %v2180
        %3050 = vmatpush2.bf16.msra.mxu0 %v2179
        %3051 = vmatprep.subr.bf16.mxu0 %v2168
        %3052 = vmatpush2.bf16.msra.mxu0 %v2167
        %3053 = vmatprep.subr.bf16.mxu0 %v2156
        %3054 = vmatpush2.bf16.msra.mxu0 %v2155
        %3055 = vmatprep.subr.bf16.mxu0 %v2144
        %3056 = vmatpush2.bf16.msra.mxu0 %v2143
        %3057 = vmatprep.subr.bf16.mxu0 %v2132
        %3058 = vmatpush2.bf16.msra.mxu0 %v2131
        %3059 = vmatprep.subr.bf16.mxu0 %v2120
        %3060 = vmatpush2.bf16.msra.mxu0 %v2119
        %3061 = vmatprep.subr.bf16.mxu0 %v2108
        %3062 = vmatpush2.bf16.msra.mxu0 %v2107
        %3063 = vmatprep.mubr.bf16.mxu0 %v846
        %3064 = vmatmul.mubr.bf16.gmra.mxu0 %v845
        %v3065 = vpop.f32.mrf.mxu0
        %v3066 = vadd.f32 %v800, %v3065
        %v3067 = vpop.f32.mrf.mxu0
        %v3068 = vadd.f32 %v804, %v3067
        %v3069 = vpop.f32.mrf.mxu0
        %v3070 = vadd.f32 %v800, %v3069
        %v3071 = vpop.f32.mrf.mxu0
        %v3072 = vadd.f32 %v804, %v3071
        %3073 = vdwg.mxu0
        %3074 = vmatprep.subr.bf16.mxu0 %v2288
        %3075 = vmatpush1.bf16.msra.mxu0 %v2287
        %3076 = vmatprep.subr.bf16.mxu0 %v2276
        %3077 = vmatpush1.bf16.msra.mxu0 %v2275
        %3078 = vmatprep.subr.bf16.mxu0 %v2264
        %3079 = vmatpush1.bf16.msra.mxu0 %v2263
        %3080 = vmatprep.subr.bf16.mxu0 %v2252
        %3081 = vmatpush1.bf16.msra.mxu0 %v2251
        %3082 = vmatprep.subr.bf16.mxu0 %v2240
        %3083 = vmatpush1.bf16.msra.mxu0 %v2239
        %3084 = vmatprep.subr.bf16.mxu0 %v2228
        %3085 = vmatpush1.bf16.msra.mxu0 %v2227
        %3086 = vmatprep.subr.bf16.mxu0 %v2216
        %3087 = vmatpush1.bf16.msra.mxu0 %v2215
        %3088 = vmatprep.subr.bf16.mxu0 %v2204
        %3089 = vmatpush1.bf16.msra.mxu0 %v2203
        %3090 = vmatprep.subr.bf16.mxu0 %v2384
        %3091 = vmatpush2.bf16.msra.mxu0 %v2383
        %3092 = vmatprep.subr.bf16.mxu0 %v2372
        %3093 = vmatpush2.bf16.msra.mxu0 %v2371
        %3094 = vmatprep.subr.bf16.mxu0 %v2360
        %3095 = vmatpush2.bf16.msra.mxu0 %v2359
        %3096 = vmatprep.subr.bf16.mxu0 %v2348
        %3097 = vmatpush2.bf16.msra.mxu0 %v2347
        %3098 = vmatprep.subr.bf16.mxu0 %v2336
        %3099 = vmatpush2.bf16.msra.mxu0 %v2335
        %3100 = vmatprep.subr.bf16.mxu0 %v2324
        %3101 = vmatpush2.bf16.msra.mxu0 %v2323
        %3102 = vmatprep.subr.bf16.mxu0 %v2312
        %3103 = vmatpush2.bf16.msra.mxu0 %v2311
        %3104 = vmatprep.subr.bf16.mxu0 %v2300
        %3105 = vmatpush2.bf16.msra.mxu0 %v2299
        %3106 = vmatprep.mubr.bf16.mxu0 %v848
        %3107 = vmatmul.mubr.bf16.gmra.mxu0 %v847
        %v3108 = vpop.f32.mrf.mxu0
        %v3109 = vadd.f32 %v3066, %v3108
        %v3110 = vpop.f32.mrf.mxu0
        %v3111 = vadd.f32 %v3068, %v3110
        %v3112 = vpop.f32.mrf.mxu0
        %v3113 = vadd.f32 %v3070, %v3112
        %v3114 = vpop.f32.mrf.mxu0
        %v3115 = vadd.f32 %v3072, %v3114
        %3116 = vdwg.mxu0
        %3117 = vmatprep.subr.bf16.mxu0 %v2098
        %3118 = vmatpush1.bf16.msra.mxu0 %v2097
        %3119 = vmatprep.subr.bf16.mxu0 %v2086
        %3120 = vmatpush1.bf16.msra.mxu0 %v2085
        %3121 = vmatprep.subr.bf16.mxu0 %v2074
        %3122 = vmatpush1.bf16.msra.mxu0 %v2073
        %3123 = vmatprep.subr.bf16.mxu0 %v2062
        %3124 = vmatpush1.bf16.msra.mxu0 %v2061
        %3125 = vmatprep.subr.bf16.mxu0 %v2050
        %3126 = vmatpush1.bf16.msra.mxu0 %v2049
        %3127 = vmatprep.subr.bf16.mxu0 %v2038
        %3128 = vmatpush1.bf16.msra.mxu0 %v2037
        %3129 = vmatprep.subr.bf16.mxu0 %v2026
        %3130 = vmatpush1.bf16.msra.mxu0 %v2025
        %3131 = vmatprep.subr.bf16.mxu0 %v2014
        %3132 = vmatpush1.bf16.msra.mxu0 %v2013
        %3133 = vmatprep.subr.bf16.mxu0 %v2194
        %3134 = vmatpush2.bf16.msra.mxu0 %v2193
        %3135 = vmatprep.subr.bf16.mxu0 %v2182
        %3136 = vmatpush2.bf16.msra.mxu0 %v2181
        %3137 = vmatprep.subr.bf16.mxu0 %v2170
        %3138 = vmatpush2.bf16.msra.mxu0 %v2169
        %3139 = vmatprep.subr.bf16.mxu0 %v2158
        %3140 = vmatpush2.bf16.msra.mxu0 %v2157
        %3141 = vmatprep.subr.bf16.mxu0 %v2146
        %3142 = vmatpush2.bf16.msra.mxu0 %v2145
        %3143 = vmatprep.subr.bf16.mxu0 %v2134
        %3144 = vmatpush2.bf16.msra.mxu0 %v2133
        %3145 = vmatprep.subr.bf16.mxu0 %v2122
        %3146 = vmatpush2.bf16.msra.mxu0 %v2121
        %3147 = vmatprep.subr.bf16.mxu0 %v2110
        %3148 = vmatpush2.bf16.msra.mxu0 %v2109
        %3149 = vmatprep.mubr.bf16.mxu0 %v846
        %3150 = vmatmul.mubr.bf16.gmra.mxu0 %v845
        %v3151 = vpop.f32.mrf.mxu0
        %v3152 = vadd.f32 %v808, %v3151
        %v3153 = vpop.f32.mrf.mxu0
        %v3154 = vadd.f32 %v812, %v3153
        %v3155 = vpop.f32.mrf.mxu0
        %v3156 = vadd.f32 %v808, %v3155
        %v3157 = vpop.f32.mrf.mxu0
        %v3158 = vadd.f32 %v812, %v3157
        %3159 = vdwg.mxu0
        %3160 = vmatprep.subr.bf16.mxu0 %v2290
        %3161 = vmatpush1.bf16.msra.mxu0 %v2289
        %3162 = vmatprep.subr.bf16.mxu0 %v2278
        %3163 = vmatpush1.bf16.msra.mxu0 %v2277
        %3164 = vmatprep.subr.bf16.mxu0 %v2266
        %3165 = vmatpush1.bf16.msra.mxu0 %v2265
        %3166 = vmatprep.subr.bf16.mxu0 %v2254
        %3167 = vmatpush1.bf16.msra.mxu0 %v2253
        %3168 = vmatprep.subr.bf16.mxu0 %v2242
        %3169 = vmatpush1.bf16.msra.mxu0 %v2241
        %3170 = vmatprep.subr.bf16.mxu0 %v2230
        %3171 = vmatpush1.bf16.msra.mxu0 %v2229
        %3172 = vmatprep.subr.bf16.mxu0 %v2218
        %3173 = vmatpush1.bf16.msra.mxu0 %v2217
        %3174 = vmatprep.subr.bf16.mxu0 %v2206
        %3175 = vmatpush1.bf16.msra.mxu0 %v2205
        %3176 = vmatprep.subr.bf16.mxu0 %v2386
        %3177 = vmatpush2.bf16.msra.mxu0 %v2385
        %3178 = vmatprep.subr.bf16.mxu0 %v2374
        %3179 = vmatpush2.bf16.msra.mxu0 %v2373
        %3180 = vmatprep.subr.bf16.mxu0 %v2362
        %3181 = vmatpush2.bf16.msra.mxu0 %v2361
        %3182 = vmatprep.subr.bf16.mxu0 %v2350
        %3183 = vmatpush2.bf16.msra.mxu0 %v2349
        %3184 = vmatprep.subr.bf16.mxu0 %v2338
        %3185 = vmatpush2.bf16.msra.mxu0 %v2337
        %3186 = vmatprep.subr.bf16.mxu0 %v2326
        %3187 = vmatpush2.bf16.msra.mxu0 %v2325
        %3188 = vmatprep.subr.bf16.mxu0 %v2314
        %3189 = vmatpush2.bf16.msra.mxu0 %v2313
        %3190 = vmatprep.subr.bf16.mxu0 %v2302
        %3191 = vmatpush2.bf16.msra.mxu0 %v2301
        %3192 = vmatprep.mubr.bf16.mxu0 %v848
        %3193 = vmatmul.mubr.bf16.gmra.mxu0 %v847
        %v3194 = vpop.f32.mrf.mxu0
        %v3195 = vadd.f32 %v3152, %v3194
        %v3196 = vpop.f32.mrf.mxu0
        %v3197 = vadd.f32 %v3154, %v3196
        %v3198 = vpop.f32.mrf.mxu0
        %v3199 = vadd.f32 %v3156, %v3198
        %v3200 = vpop.f32.mrf.mxu0
        %v3201 = vadd.f32 %v3158, %v3200
        %3202 = vdwg.mxu0
        %3203 = vmatprep.subr.bf16.mxu0 %v2100
        %3204 = vmatpush1.bf16.msra.mxu0 %v2099
        %3205 = vmatprep.subr.bf16.mxu0 %v2088
        %3206 = vmatpush1.bf16.msra.mxu0 %v2087
        %3207 = vmatprep.subr.bf16.mxu0 %v2076
        %3208 = vmatpush1.bf16.msra.mxu0 %v2075
        %3209 = vmatprep.subr.bf16.mxu0 %v2064
        %3210 = vmatpush1.bf16.msra.mxu0 %v2063
        %3211 = vmatprep.subr.bf16.mxu0 %v2052
        %3212 = vmatpush1.bf16.msra.mxu0 %v2051
        %3213 = vmatprep.subr.bf16.mxu0 %v2040
        %3214 = vmatpush1.bf16.msra.mxu0 %v2039
        %3215 = vmatprep.subr.bf16.mxu0 %v2028
        %3216 = vmatpush1.bf16.msra.mxu0 %v2027
        %3217 = vmatprep.subr.bf16.mxu0 %v2016
        %3218 = vmatpush1.bf16.msra.mxu0 %v2015
        %3219 = vmatprep.subr.bf16.mxu0 %v2196
        %3220 = vmatpush2.bf16.msra.mxu0 %v2195
        %3221 = vmatprep.subr.bf16.mxu0 %v2184
        %3222 = vmatpush2.bf16.msra.mxu0 %v2183
        %3223 = vmatprep.subr.bf16.mxu0 %v2172
        %3224 = vmatpush2.bf16.msra.mxu0 %v2171
        %3225 = vmatprep.subr.bf16.mxu0 %v2160
        %3226 = vmatpush2.bf16.msra.mxu0 %v2159
        %3227 = vmatprep.subr.bf16.mxu0 %v2148
        %3228 = vmatpush2.bf16.msra.mxu0 %v2147
        %3229 = vmatprep.subr.bf16.mxu0 %v2136
        %3230 = vmatpush2.bf16.msra.mxu0 %v2135
        %3231 = vmatprep.subr.bf16.mxu0 %v2124
        %3232 = vmatpush2.bf16.msra.mxu0 %v2123
        %3233 = vmatprep.subr.bf16.mxu0 %v2112
        %3234 = vmatpush2.bf16.msra.mxu0 %v2111
        %3235 = vmatprep.mubr.bf16.mxu0 %v846
        %3236 = vmatmul.mubr.bf16.gmra.mxu0 %v845
        %v3237 = vpop.f32.mrf.mxu0
        %v3238 = vadd.f32 %v816, %v3237
        %v3239 = vpop.f32.mrf.mxu0
        %v3240 = vadd.f32 %v820, %v3239
        %v3241 = vpop.f32.mrf.mxu0
        %v3242 = vadd.f32 %v816, %v3241
        %v3243 = vpop.f32.mrf.mxu0
        %v3244 = vadd.f32 %v820, %v3243
        %3245 = vdwg.mxu0
        %3246 = vmatprep.subr.bf16.mxu0 %v2292
        %3247 = vmatpush1.bf16.msra.mxu0 %v2291
        %3248 = vmatprep.subr.bf16.mxu0 %v2280
        %3249 = vmatpush1.bf16.msra.mxu0 %v2279
        %3250 = vmatprep.subr.bf16.mxu0 %v2268
        %3251 = vmatpush1.bf16.msra.mxu0 %v2267
        %3252 = vmatprep.subr.bf16.mxu0 %v2256
        %3253 = vmatpush1.bf16.msra.mxu0 %v2255
        %3254 = vmatprep.subr.bf16.mxu0 %v2244
        %3255 = vmatpush1.bf16.msra.mxu0 %v2243
        %3256 = vmatprep.subr.bf16.mxu0 %v2232
        %3257 = vmatpush1.bf16.msra.mxu0 %v2231
        %3258 = vmatprep.subr.bf16.mxu0 %v2220
        %3259 = vmatpush1.bf16.msra.mxu0 %v2219
        %3260 = vmatprep.subr.bf16.mxu0 %v2208
        %3261 = vmatpush1.bf16.msra.mxu0 %v2207
        %3262 = vmatprep.subr.bf16.mxu0 %v2388
        %3263 = vmatpush2.bf16.msra.mxu0 %v2387
        %3264 = vmatprep.subr.bf16.mxu0 %v2376
        %3265 = vmatpush2.bf16.msra.mxu0 %v2375
        %3266 = vmatprep.subr.bf16.mxu0 %v2364
        %3267 = vmatpush2.bf16.msra.mxu0 %v2363
        %3268 = vmatprep.subr.bf16.mxu0 %v2352
        %3269 = vmatpush2.bf16.msra.mxu0 %v2351
        %3270 = vmatprep.subr.bf16.mxu0 %v2340
        %3271 = vmatpush2.bf16.msra.mxu0 %v2339
        %3272 = vmatprep.subr.bf16.mxu0 %v2328
        %3273 = vmatpush2.bf16.msra.mxu0 %v2327
        %3274 = vmatprep.subr.bf16.mxu0 %v2316
        %3275 = vmatpush2.bf16.msra.mxu0 %v2315
        %3276 = vmatprep.subr.bf16.mxu0 %v2304
        %3277 = vmatpush2.bf16.msra.mxu0 %v2303
        %3278 = vmatprep.mubr.bf16.mxu0 %v848
        %3279 = vmatmul.mubr.bf16.gmra.mxu0 %v847
        %v3280 = vpop.f32.mrf.mxu0
        %v3281 = vadd.f32 %v3238, %v3280
        %v3282 = vpop.f32.mrf.mxu0
        %v3283 = vadd.f32 %v3240, %v3282
        %v3284 = vpop.f32.mrf.mxu0
        %v3285 = vadd.f32 %v3242, %v3284
        %v3286 = vpop.f32.mrf.mxu0
        %v3287 = vadd.f32 %v3244, %v3286
        %3288 = vdwg.mxu0
        %v3289 = vld [vmem:[#allocation11] sm:$0xff]
        %v3290 = vld [vmem:[#allocation11 + $0x8] sm:$0xff]
        %v3291 = vld [vmem:[#allocation13] sm:$0xff]
        %v3292 = vld [vmem:[#allocation13 + $0x8] sm:$0xff]
        %v3293 = vlaneseq
        %v3294 = vshrl.u32 %v3293, 7
        %v3295 = vadd.s32 %v3294, 8
        %v3296 = vlaneseq
        %v3297 = vand.u32 %v3296, 127
        %vm3298 = vcmp.le.s32.totalorder %v3297, %v3294
        %vm3299 = vcmp.le.s32.totalorder %v3297, %v3295
        %v3300 = vmul.f32 %v2851, %v3289
        %v3301 = vmul.f32 %v2855, %v3290
        %3302 = vrot.lane.b32.xlu0 %v2851, 64
        %v3303 = vpop.permute.xlu0 %3302
        %3304 = vrot.lane.b32.xlu0 %v2855, 64
        %v3305 = vpop.permute.xlu0 %3304
        %v3306 = vmul.f32 %v3303, %v3291
        %v3307 = vmul.f32 %v3305, %v3292
        %v3308 = vadd.f32 %v3300, %v3306
        %v3309 = vadd.f32 %v3301, %v3307
        %v3310 = vmul.f32 %v3023, %v3289
        %v3311 = vmul.f32 %v3027, %v3290
        %3312 = vrot.lane.b32.xlu0 %v3023, 64
        %v3313 = vpop.permute.xlu0 %3312
        %3314 = vrot.lane.b32.xlu0 %v3027, 64
        %v3315 = vpop.permute.xlu0 %3314
        %v3316 = vmul.f32 %v3313, %v3291
        %v3317 = vmul.f32 %v3315, %v3292
        %v3318 = vadd.f32 %v3310, %v3316
        %v3319 = vadd.f32 %v3311, %v3317
        %v3320 = vpack.c.bf16 %v3309, %v3308
        %v3321 = vpack.c.bf16 %v3319, %v3318
        %v3322 = vpack.c.bf16 %v3199, %v3195
        %3323 = vmatprep.subr.bf16.mxu0 0
        %3324 = vmatpush1.bf16.xpose.msra.mxu0 0
        %3325 = vmatprep.subr.bf16.mxu0 0
        %3326 = vmatpush1.bf16.xpose.msra.mxu0 0
        %3327 = vmatprep.subr.bf16.mxu0 0
        %3328 = vmatpush1.bf16.xpose.msra.mxu0 0
        %3329 = vmatprep.subr.bf16.mxu0 0
        %3330 = vmatpush1.bf16.xpose.msra.mxu0 0
        %3331 = vmatprep.subr.bf16.mxu0 0
        %3332 = vmatpush1.bf16.xpose.msra.mxu0 0
        %3333 = vmatprep.subr.bf16.mxu0 0
        %3334 = vmatpush1.bf16.xpose.msra.mxu0 0
        %3335 = vmatprep.subr.bf16.mxu0 0
        %3336 = vmatpush1.bf16.xpose.msra.mxu0 0
        %3337 = vmatprep.subr.bf16.mxu0 0
        %3338 = vmatpush1.bf16.xpose.msra.mxu0 %v3321
        %3339 = vmatprep.subr.bf16.mxu0 0
        %3340 = vmatpush2.bf16.xpose.msra.mxu0 0
        %3341 = vmatprep.subr.bf16.mxu0 0
        %3342 = vmatpush2.bf16.xpose.msra.mxu0 0
        %3343 = vmatprep.subr.bf16.mxu0 0
        %3344 = vmatpush2.bf16.xpose.msra.mxu0 0
        %3345 = vmatprep.subr.bf16.mxu0 0
        %3346 = vmatpush2.bf16.xpose.msra.mxu0 0
        %3347 = vmatprep.subr.bf16.mxu0 0
        %3348 = vmatpush2.bf16.xpose.msra.mxu0 0
        %3349 = vmatprep.subr.bf16.mxu0 0
        %3350 = vmatpush2.bf16.xpose.msra.mxu0 0
        %3351 = vmatprep.subr.bf16.mxu0 0
        %3352 = vmatpush2.bf16.xpose.msra.mxu0 0
        %3353 = vmatprep.subr.bf16.mxu0 0
        %3354 = vmatpush2.bf16.xpose.msra.mxu0 0
        %3355 = vmatprep.mubr.bf16.mxu0 0
        %3356 = vmatmul.mubr.bf16.gmra.mxu0 %v3320
        %v3357 = vpop.f32.mrf.mxu0
        %v3358 = vadd.f32 0.0, %v3357
        %v3359 = vpop.f32.mrf.mxu0
        %v3360 = vpop.f32.mrf.mxu0
        %v3361 = vadd.f32 0.0, %v3360
        %v3362 = vpop.f32.mrf.mxu0
        %3363 = vdwg.mxu0
        %v3364 = vsel %vm3298, %v3358, -1e+30
        %v3365 = vsel %vm3299, %v3361, -1e+30
        %vm3366 = vcmask 130048
        %v3367 = vsel %vm3366, %v3364, -inf
        %3368 = vmax.xlane.f32.xlu0 %v3367
        %v3369 = vpop.xlane.xlu0 %3368
        %v3370 = vsel %vm3366, %v3365, -inf
        %3371 = vmax.xlane.f32.xlu0 %v3370
        %v3372 = vpop.xlane.xlu0 %3371
        %v3373 = vsub.f32 %v3364, %v3369
        %v3374 = vsub.f32 %v3365, %v3372
        %v3375 = vmul.f32 %v3373, 1.442695
        %v3376 = vpow.pop %v3375
        %v3377 = vmul.f32 %v3374, 1.442695
        %v3378 = vpow.pop %v3377
        %v3379 = vsel %vm3366, %v3376, 0.0
        %3380 = vadd.xlane.f32.xlu0 %v3379
        %v3381 = vpop.xlane.xlu0 %3380
        %v3382 = vsel %vm3366, %v3378, 0.0
        %3383 = vadd.xlane.f32.xlu0 %v3382
        %v3384 = vpop.xlane.xlu0 %3383
        %v3385 = vrcp.pop %v3381
        %v3386 = vrcp.pop %v3384
        %v3387 = vmul.f32 %v3376, %v3385
        %v3388 = vmul.f32 %v3378, %v3386
        %v3389 = vpack.c.bf16 %v3388, %v3387
        %v3391 = vsel %vm3366, %v3389, 0
        %3393 = vmatprep.subr.bf16.mxu0 0
        %3394 = vmatpush1.bf16.msra.mxu0 0
        %3395 = vmatprep.subr.bf16.mxu0 0
        %3396 = vmatpush1.bf16.msra.mxu0 0
        %3397 = vmatprep.subr.bf16.mxu0 0
        %3398 = vmatpush1.bf16.msra.mxu0 0
        %3399 = vmatprep.subr.bf16.mxu0 0
        %3400 = vmatpush1.bf16.msra.mxu0 0
        %3401 = vmatprep.subr.bf16.mxu0 0
        %3402 = vmatpush1.bf16.msra.mxu0 0
        %3403 = vmatprep.subr.bf16.mxu0 0
        %3404 = vmatpush1.bf16.msra.mxu0 0
        %3405 = vmatprep.subr.bf16.mxu0 0
        %3406 = vmatpush1.bf16.msra.mxu0 0
        %3407 = vmatprep.subr.bf16.mxu0 0
        %3408 = vmatpush1.bf16.msra.mxu0 %v3322
        %3409 = vmatprep.subr.bf16.mxu0 0
        %3410 = vmatpush2.bf16.msra.mxu0 0
        %3411 = vmatprep.subr.bf16.mxu0 0
        %3412 = vmatpush2.bf16.msra.mxu0 0
        %3413 = vmatprep.subr.bf16.mxu0 0
        %3414 = vmatpush2.bf16.msra.mxu0 0
        %3415 = vmatprep.subr.bf16.mxu0 0
        %3416 = vmatpush2.bf16.msra.mxu0 0
        %3417 = vmatprep.subr.bf16.mxu0 0
        %3418 = vmatpush2.bf16.msra.mxu0 0
        %3419 = vmatprep.subr.bf16.mxu0 0
        %3420 = vmatpush2.bf16.msra.mxu0 0
        %3421 = vmatprep.subr.bf16.mxu0 0
        %3422 = vmatpush2.bf16.msra.mxu0 0
        %3423 = vmatprep.subr.bf16.mxu0 0
        %3424 = vmatpush2.bf16.msra.mxu0 0
        %3425 = vmatprep.mubr.bf16.mxu0 0
        %3426 = vmatmul.mubr.bf16.gmra.mxu0 %v3391
        %v3427 = vpop.f32.mrf.mxu0
        %v3428 = vadd.f32 0.0, %v3427
        %v3429 = vpop.f32.mrf.mxu0
        %v3430 = vpop.f32.mrf.mxu0
        %v3431 = vadd.f32 0.0, %v3430
        %v3432 = vpop.f32.mrf.mxu0
        %3433 = vdwg.mxu0
        %v3434 = vpack.c.bf16 %v3431, %v3428
        %v3435 = vmul.f32 %v2853, %v3289
        %v3436 = vmul.f32 %v2857, %v3290
        %3437 = vrot.lane.b32.xlu0 %v2853, 64
        %v3438 = vpop.permute.xlu0 %3437
        %3439 = vrot.lane.b32.xlu0 %v2857, 64
        %v3440 = vpop.permute.xlu0 %3439
        %v3441 = vmul.f32 %v3438, %v3291
        %v3442 = vmul.f32 %v3440, %v3292
        %v3443 = vadd.f32 %v3435, %v3441
        %v3444 = vadd.f32 %v3436, %v3442
        %v3445 = vmul.f32 %v3025, %v3289
        %v3446 = vmul.f32 %v3029, %v3290
        %3447 = vrot.lane.b32.xlu0 %v3025, 64
        %v3448 = vpop.permute.xlu0 %3447
        %3449 = vrot.lane.b32.xlu0 %v3029, 64
        %v3450 = vpop.permute.xlu0 %3449
        %v3451 = vmul.f32 %v3448, %v3291
        %v3452 = vmul.f32 %v3450, %v3292
        %v3453 = vadd.f32 %v3445, %v3451
        %v3454 = vadd.f32 %v3446, %v3452
        %v3455 = vpack.c.bf16 %v3444, %v3443
        %v3456 = vpack.c.bf16 %v3454, %v3453
        %v3457 = vpack.c.bf16 %v3201, %v3197
        %3458 = vmatprep.subr.bf16.mxu0 0
        %3459 = vmatpush1.bf16.xpose.msra.mxu0 0
        %3460 = vmatprep.subr.bf16.mxu0 0
        %3461 = vmatpush1.bf16.xpose.msra.mxu0 0
        %3462 = vmatprep.subr.bf16.mxu0 0
        %3463 = vmatpush1.bf16.xpose.msra.mxu0 0
        %3464 = vmatprep.subr.bf16.mxu0 0
        %3465 = vmatpush1.bf16.xpose.msra.mxu0 0
        %3466 = vmatprep.subr.bf16.mxu0 0
        %3467 = vmatpush1.bf16.xpose.msra.mxu0 0
        %3468 = vmatprep.subr.bf16.mxu0 0
        %3469 = vmatpush1.bf16.xpose.msra.mxu0 0
        %3470 = vmatprep.subr.bf16.mxu0 0
        %3471 = vmatpush1.bf16.xpose.msra.mxu0 0
        %3472 = vmatprep.subr.bf16.mxu0 0
        %3473 = vmatpush1.bf16.xpose.msra.mxu0 %v3456
        %3474 = vmatprep.subr.bf16.mxu0 0
        %3475 = vmatpush2.bf16.xpose.msra.mxu0 0
        %3476 = vmatprep.subr.bf16.mxu0 0
        %3477 = vmatpush2.bf16.xpose.msra.mxu0 0
        %3478 = vmatprep.subr.bf16.mxu0 0
        %3479 = vmatpush2.bf16.xpose.msra.mxu0 0
        %3480 = vmatprep.subr.bf16.mxu0 0
        %3481 = vmatpush2.bf16.xpose.msra.mxu0 0
        %3482 = vmatprep.subr.bf16.mxu0 0
        %3483 = vmatpush2.bf16.xpose.msra.mxu0 0
        %3484 = vmatprep.subr.bf16.mxu0 0
        %3485 = vmatpush2.bf16.xpose.msra.mxu0 0
        %3486 = vmatprep.subr.bf16.mxu0 0
        %3487 = vmatpush2.bf16.xpose.msra.mxu0 0
        %3488 = vmatprep.subr.bf16.mxu0 0
        %3489 = vmatpush2.bf16.xpose.msra.mxu0 0
        %3490 = vmatprep.mubr.bf16.mxu0 0
        %3491 = vmatmul.mubr.bf16.gmra.mxu0 %v3455
        %v3492 = vpop.f32.mrf.mxu0
        %v3493 = vadd.f32 0.0, %v3492
        %v3494 = vpop.f32.mrf.mxu0
        %v3495 = vpop.f32.mrf.mxu0
        %v3496 = vadd.f32 0.0, %v3495
        %v3497 = vpop.f32.mrf.mxu0
        %3498 = vdwg.mxu0
        %v3499 = vsel %vm3298, %v3493, -1e+30
        %v3500 = vsel %vm3299, %v3496, -1e+30
        %v3501 = vsel %vm3366, %v3499, -inf
        %3502 = vmax.xlane.f32.xlu0 %v3501
        %v3503 = vpop.xlane.xlu0 %3502
        %v3504 = vsel %vm3366, %v3500, -inf
        %3505 = vmax.xlane.f32.xlu0 %v3504
        %v3506 = vpop.xlane.xlu0 %3505
        %v3507 = vsub.f32 %v3499, %v3503
        %v3508 = vsub.f32 %v3500, %v3506
        %v3509 = vmul.f32 %v3507, 1.442695
        %v3510 = vpow.pop %v3509
        %v3511 = vmul.f32 %v3508, 1.442695
        %v3512 = vpow.pop %v3511
        %v3513 = vsel %vm3366, %v3510, 0.0
        %3514 = vadd.xlane.f32.xlu0 %v3513
        %v3515 = vpop.xlane.xlu0 %3514
        %v3516 = vsel %vm3366, %v3512, 0.0
        %3517 = vadd.xlane.f32.xlu0 %v3516
        %v3518 = vpop.xlane.xlu0 %3517
        %v3519 = vrcp.pop %v3515
        %v3520 = vrcp.pop %v3518
        %v3521 = vmul.f32 %v3510, %v3519
        %v3522 = vmul.f32 %v3512, %v3520
        %v3523 = vpack.c.bf16 %v3522, %v3521
        %v3525 = vsel %vm3366, %v3523, 0
        %3527 = vmatprep.subr.bf16.mxu0 0
        %3528 = vmatpush1.bf16.msra.mxu0 0
        %3529 = vmatprep.subr.bf16.mxu0 0
        %3530 = vmatpush1.bf16.msra.mxu0 0
        %3531 = vmatprep.subr.bf16.mxu0 0
        %3532 = vmatpush1.bf16.msra.mxu0 0
        %3533 = vmatprep.subr.bf16.mxu0 0
        %3534 = vmatpush1.bf16.msra.mxu0 0
        %3535 = vmatprep.subr.bf16.mxu0 0
        %3536 = vmatpush1.bf16.msra.mxu0 0
        %3537 = vmatprep.subr.bf16.mxu0 0
        %3538 = vmatpush1.bf16.msra.mxu0 0
        %3539 = vmatprep.subr.bf16.mxu0 0
        %3540 = vmatpush1.bf16.msra.mxu0 0
        %3541 = vmatprep.subr.bf16.mxu0 0
        %3542 = vmatpush1.bf16.msra.mxu0 %v3457
        %3543 = vmatprep.subr.bf16.mxu0 0
        %3544 = vmatpush2.bf16.msra.mxu0 0
        %3545 = vmatprep.subr.bf16.mxu0 0
        %3546 = vmatpush2.bf16.msra.mxu0 0
        %3547 = vmatprep.subr.bf16.mxu0 0
        %3548 = vmatpush2.bf16.msra.mxu0 0
        %3549 = vmatprep.subr.bf16.mxu0 0
        %3550 = vmatpush2.bf16.msra.mxu0 0
        %3551 = vmatprep.subr.bf16.mxu0 0
        %3552 = vmatpush2.bf16.msra.mxu0 0
        %3553 = vmatprep.subr.bf16.mxu0 0
        %3554 = vmatpush2.bf16.msra.mxu0 0
        %3555 = vmatprep.subr.bf16.mxu0 0
        %3556 = vmatpush2.bf16.msra.mxu0 0
        %3557 = vmatprep.subr.bf16.mxu0 0
        %3558 = vmatpush2.bf16.msra.mxu0 0
        %3559 = vmatprep.mubr.bf16.mxu0 0
        %3560 = vmatmul.mubr.bf16.gmra.mxu0 %v3525
        %v3561 = vpop.f32.mrf.mxu0
        %v3562 = vadd.f32 0.0, %v3561
        %v3563 = vpop.f32.mrf.mxu0
        %v3564 = vpop.f32.mrf.mxu0
        %v3565 = vadd.f32 0.0, %v3564
        %v3566 = vpop.f32.mrf.mxu0
        %3567 = vdwg.mxu0
        %v3568 = vpack.c.bf16 %v3565, %v3562
        %v3569 = vmul.f32 %v2937, %v3289
        %v3570 = vmul.f32 %v2941, %v3290
        %3571 = vrot.lane.b32.xlu0 %v2937, 64
        %v3572 = vpop.permute.xlu0 %3571
        %3573 = vrot.lane.b32.xlu0 %v2941, 64
        %v3574 = vpop.permute.xlu0 %3573
        %v3575 = vmul.f32 %v3572, %v3291
        %v3576 = vmul.f32 %v3574, %v3292
        %v3577 = vadd.f32 %v3569, %v3575
        %v3578 = vadd.f32 %v3570, %v3576
        %v3579 = vmul.f32 %v3109, %v3289
        %v3580 = vmul.f32 %v3113, %v3290
        %3581 = vrot.lane.b32.xlu0 %v3109, 64
        %v3582 = vpop.permute.xlu0 %3581
        %3583 = vrot.lane.b32.xlu0 %v3113, 64
        %v3584 = vpop.permute.xlu0 %3583
        %v3585 = vmul.f32 %v3582, %v3291
        %v3586 = vmul.f32 %v3584, %v3292
        %v3587 = vadd.f32 %v3579, %v3585
        %v3588 = vadd.f32 %v3580, %v3586
        %v3589 = vpack.c.bf16 %v3578, %v3577
        %v3590 = vpack.c.bf16 %v3588, %v3587
        %v3591 = vpack.c.bf16 %v3285, %v3281
        %3592 = vmatprep.subr.bf16.mxu0 0
        %3593 = vmatpush1.bf16.xpose.msra.mxu0 0
        %3594 = vmatprep.subr.bf16.mxu0 0
        %3595 = vmatpush1.bf16.xpose.msra.mxu0 0
        %3596 = vmatprep.subr.bf16.mxu0 0
        %3597 = vmatpush1.bf16.xpose.msra.mxu0 0
        %3598 = vmatprep.subr.bf16.mxu0 0
        %3599 = vmatpush1.bf16.xpose.msra.mxu0 0
        %3600 = vmatprep.subr.bf16.mxu0 0
        %3601 = vmatpush1.bf16.xpose.msra.mxu0 0
        %3602 = vmatprep.subr.bf16.mxu0 0
        %3603 = vmatpush1.bf16.xpose.msra.mxu0 0
        %3604 = vmatprep.subr.bf16.mxu0 0
        %3605 = vmatpush1.bf16.xpose.msra.mxu0 0
        %3606 = vmatprep.subr.bf16.mxu0 0
        %3607 = vmatpush1.bf16.xpose.msra.mxu0 %v3590
        %3608 = vmatprep.subr.bf16.mxu0 0
        %3609 = vmatpush2.bf16.xpose.msra.mxu0 0
        %3610 = vmatprep.subr.bf16.mxu0 0
        %3611 = vmatpush2.bf16.xpose.msra.mxu0 0
        %3612 = vmatprep.subr.bf16.mxu0 0
        %3613 = vmatpush2.bf16.xpose.msra.mxu0 0
        %3614 = vmatprep.subr.bf16.mxu0 0
        %3615 = vmatpush2.bf16.xpose.msra.mxu0 0
        %3616 = vmatprep.subr.bf16.mxu0 0
        %3617 = vmatpush2.bf16.xpose.msra.mxu0 0
        %3618 = vmatprep.subr.bf16.mxu0 0
        %3619 = vmatpush2.bf16.xpose.msra.mxu0 0
        %3620 = vmatprep.subr.bf16.mxu0 0
        %3621 = vmatpush2.bf16.xpose.msra.mxu0 0
        %3622 = vmatprep.subr.bf16.mxu0 0
        %3623 = vmatpush2.bf16.xpose.msra.mxu0 0
        %3624 = vmatprep.mubr.bf16.mxu0 0
        %3625 = vmatmul.mubr.bf16.gmra.mxu0 %v3589
        %v3626 = vpop.f32.mrf.mxu0
        %v3627 = vadd.f32 0.0, %v3626
        %v3628 = vpop.f32.mrf.mxu0
        %v3629 = vpop.f32.mrf.mxu0
        %v3630 = vadd.f32 0.0, %v3629
        %v3631 = vpop.f32.mrf.mxu0
        %3632 = vdwg.mxu0
        %v3633 = vsel %vm3298, %v3627, -1e+30
        %v3634 = vsel %vm3299, %v3630, -1e+30
        %v3635 = vsel %vm3366, %v3633, -inf
        %3636 = vmax.xlane.f32.xlu0 %v3635
        %v3637 = vpop.xlane.xlu0 %3636
        %v3638 = vsel %vm3366, %v3634, -inf
        %3639 = vmax.xlane.f32.xlu0 %v3638
        %v3640 = vpop.xlane.xlu0 %3639
        %v3641 = vsub.f32 %v3633, %v3637
        %v3642 = vsub.f32 %v3634, %v3640
        %v3643 = vmul.f32 %v3641, 1.442695
        %v3644 = vpow.pop %v3643
        %v3645 = vmul.f32 %v3642, 1.442695
        %v3646 = vpow.pop %v3645
        %v3647 = vsel %vm3366, %v3644, 0.0
        %3648 = vadd.xlane.f32.xlu0 %v3647
        %v3649 = vpop.xlane.xlu0 %3648
        %v3650 = vsel %vm3366, %v3646, 0.0
        %3651 = vadd.xlane.f32.xlu0 %v3650
        %v3652 = vpop.xlane.xlu0 %3651
        %v3653 = vrcp.pop %v3649
        %v3654 = vrcp.pop %v3652
        %v3655 = vmul.f32 %v3644, %v3653
        %v3656 = vmul.f32 %v3646, %v3654
        %v3657 = vpack.c.bf16 %v3656, %v3655
        %v3659 = vsel %vm3366, %v3657, 0
        %3661 = vmatprep.subr.bf16.mxu0 0
        %3662 = vmatpush1.bf16.msra.mxu0 0
        %3663 = vmatprep.subr.bf16.mxu0 0
        %3664 = vmatpush1.bf16.msra.mxu0 0
        %3665 = vmatprep.subr.bf16.mxu0 0
        %3666 = vmatpush1.bf16.msra.mxu0 0
        %3667 = vmatprep.subr.bf16.mxu0 0
        %3668 = vmatpush1.bf16.msra.mxu0 0
        %3669 = vmatprep.subr.bf16.mxu0 0
        %3670 = vmatpush1.bf16.msra.mxu0 0
        %3671 = vmatprep.subr.bf16.mxu0 0
        %3672 = vmatpush1.bf16.msra.mxu0 0
        %3673 = vmatprep.subr.bf16.mxu0 0
        %3674 = vmatpush1.bf16.msra.mxu0 0
        %3675 = vmatprep.subr.bf16.mxu0 0
        %3676 = vmatpush1.bf16.msra.mxu0 %v3591
        %3677 = vmatprep.subr.bf16.mxu0 0
        %3678 = vmatpush2.bf16.msra.mxu0 0
        %3679 = vmatprep.subr.bf16.mxu0 0
        %3680 = vmatpush2.bf16.msra.mxu0 0
        %3681 = vmatprep.subr.bf16.mxu0 0
        %3682 = vmatpush2.bf16.msra.mxu0 0
        %3683 = vmatprep.subr.bf16.mxu0 0
        %3684 = vmatpush2.bf16.msra.mxu0 0
        %3685 = vmatprep.subr.bf16.mxu0 0
        %3686 = vmatpush2.bf16.msra.mxu0 0
        %3687 = vmatprep.subr.bf16.mxu0 0
        %3688 = vmatpush2.bf16.msra.mxu0 0
        %3689 = vmatprep.subr.bf16.mxu0 0
        %3690 = vmatpush2.bf16.msra.mxu0 0
        %3691 = vmatprep.subr.bf16.mxu0 0
        %3692 = vmatpush2.bf16.msra.mxu0 0
        %3693 = vmatprep.mubr.bf16.mxu0 0
        %3694 = vmatmul.mubr.bf16.gmra.mxu0 %v3659
        %v3695 = vpop.f32.mrf.mxu0
        %v3696 = vadd.f32 0.0, %v3695
        %v3697 = vpop.f32.mrf.mxu0
        %v3698 = vpop.f32.mrf.mxu0
        %v3699 = vadd.f32 0.0, %v3698
        %v3700 = vpop.f32.mrf.mxu0
        %3701 = vdwg.mxu0
        %v3702 = vpack.c.bf16 %v3699, %v3696
        %v3703 = vmul.f32 %v2939, %v3289
        %v3704 = vmul.f32 %v2943, %v3290
        %3705 = vrot.lane.b32.xlu0 %v2939, 64
        %v3706 = vpop.permute.xlu0 %3705
        %3707 = vrot.lane.b32.xlu0 %v2943, 64
        %v3708 = vpop.permute.xlu0 %3707
        %v3709 = vmul.f32 %v3706, %v3291
        %v3710 = vmul.f32 %v3708, %v3292
        %v3711 = vadd.f32 %v3703, %v3709
        %v3712 = vadd.f32 %v3704, %v3710
        %v3713 = vmul.f32 %v3111, %v3289
        %v3714 = vmul.f32 %v3115, %v3290
        %3715 = vrot.lane.b32.xlu0 %v3111, 64
        %v3716 = vpop.permute.xlu0 %3715
        %3717 = vrot.lane.b32.xlu0 %v3115, 64
        %v3718 = vpop.permute.xlu0 %3717
        %v3719 = vmul.f32 %v3716, %v3291
        %v3720 = vmul.f32 %v3718, %v3292
        %v3721 = vadd.f32 %v3713, %v3719
        %v3722 = vadd.f32 %v3714, %v3720
        %v3723 = vpack.c.bf16 %v3712, %v3711
        %v3724 = vpack.c.bf16 %v3722, %v3721
        %v3725 = vpack.c.bf16 %v3287, %v3283
        %3726 = vmatprep.subr.bf16.mxu0 0
        %3727 = vmatpush1.bf16.xpose.msra.mxu0 0
        %3728 = vmatprep.subr.bf16.mxu0 0
        %3729 = vmatpush1.bf16.xpose.msra.mxu0 0
        %3730 = vmatprep.subr.bf16.mxu0 0
        %3731 = vmatpush1.bf16.xpose.msra.mxu0 0
        %3732 = vmatprep.subr.bf16.mxu0 0
        %3733 = vmatpush1.bf16.xpose.msra.mxu0 0
        %3734 = vmatprep.subr.bf16.mxu0 0
        %3735 = vmatpush1.bf16.xpose.msra.mxu0 0
        %3736 = vmatprep.subr.bf16.mxu0 0
        %3737 = vmatpush1.bf16.xpose.msra.mxu0 0
        %3738 = vmatprep.subr.bf16.mxu0 0
        %3739 = vmatpush1.bf16.xpose.msra.mxu0 0
        %3740 = vmatprep.subr.bf16.mxu0 0
        %3741 = vmatpush1.bf16.xpose.msra.mxu0 %v3724
        %3742 = vmatprep.subr.bf16.mxu0 0
        %3743 = vmatpush2.bf16.xpose.msra.mxu0 0
        %3744 = vmatprep.subr.bf16.mxu0 0
        %3745 = vmatpush2.bf16.xpose.msra.mxu0 0
        %3746 = vmatprep.subr.bf16.mxu0 0
        %3747 = vmatpush2.bf16.xpose.msra.mxu0 0
        %3748 = vmatprep.subr.bf16.mxu0 0
        %3749 = vmatpush2.bf16.xpose.msra.mxu0 0
        %3750 = vmatprep.subr.bf16.mxu0 0
        %3751 = vmatpush2.bf16.xpose.msra.mxu0 0
        %3752 = vmatprep.subr.bf16.mxu0 0
        %3753 = vmatpush2.bf16.xpose.msra.mxu0 0
        %3754 = vmatprep.subr.bf16.mxu0 0
        %3755 = vmatpush2.bf16.xpose.msra.mxu0 0
        %3756 = vmatprep.subr.bf16.mxu0 0
        %3757 = vmatpush2.bf16.xpose.msra.mxu0 0
        %3758 = vmatprep.mubr.bf16.mxu0 0
        %3759 = vmatmul.mubr.bf16.gmra.mxu0 %v3723
        %v3760 = vpop.f32.mrf.mxu0
        %v3761 = vadd.f32 0.0, %v3760
        %v3762 = vpop.f32.mrf.mxu0
        %v3763 = vpop.f32.mrf.mxu0
        %v3764 = vadd.f32 0.0, %v3763
        %v3765 = vpop.f32.mrf.mxu0
        %3766 = vdwg.mxu0
        %v3767 = vsel %vm3298, %v3761, -1e+30
        %v3768 = vsel %vm3299, %v3764, -1e+30
        %v3769 = vsel %vm3366, %v3767, -inf
        %3770 = vmax.xlane.f32.xlu0 %v3769
        %v3771 = vpop.xlane.xlu0 %3770
        %v3772 = vsel %vm3366, %v3768, -inf
        %3773 = vmax.xlane.f32.xlu0 %v3772
        %v3774 = vpop.xlane.xlu0 %3773
        %v3775 = vsub.f32 %v3767, %v3771
        %v3776 = vsub.f32 %v3768, %v3774
        %v3777 = vmul.f32 %v3775, 1.442695
        %v3778 = vpow.pop %v3777
        %v3779 = vmul.f32 %v3776, 1.442695
        %v3780 = vpow.pop %v3779
        %v3781 = vsel %vm3366, %v3778, 0.0
        %3782 = vadd.xlane.f32.xlu0 %v3781
        %v3783 = vpop.xlane.xlu0 %3782
        %v3784 = vsel %vm3366, %v3780, 0.0
        %3785 = vadd.xlane.f32.xlu0 %v3784
        %v3786 = vpop.xlane.xlu0 %3785
        %v3787 = vrcp.pop %v3783
        %v3788 = vrcp.pop %v3786
        %v3789 = vmul.f32 %v3778, %v3787
        %v3790 = vmul.f32 %v3780, %v3788
        %v3791 = vpack.c.bf16 %v3790, %v3789
        %v3793 = vsel %vm3366, %v3791, 0
        %3795 = vmatprep.subr.bf16.mxu0 0
        %3796 = vmatpush1.bf16.msra.mxu0 0
        %3797 = vmatprep.subr.bf16.mxu0 0
        %3798 = vmatpush1.bf16.msra.mxu0 0
        %3799 = vmatprep.subr.bf16.mxu0 0
        %3800 = vmatpush1.bf16.msra.mxu0 0
        %3801 = vmatprep.subr.bf16.mxu0 0
        %3802 = vmatpush1.bf16.msra.mxu0 0
        %3803 = vmatprep.subr.bf16.mxu0 0
        %3804 = vmatpush1.bf16.msra.mxu0 0
        %3805 = vmatprep.subr.bf16.mxu0 0
        %3806 = vmatpush1.bf16.msra.mxu0 0
        %3807 = vmatprep.subr.bf16.mxu0 0
        %3808 = vmatpush1.bf16.msra.mxu0 0
        %3809 = vmatprep.subr.bf16.mxu0 0
        %3810 = vmatpush1.bf16.msra.mxu0 %v3725
        %3811 = vmatprep.subr.bf16.mxu0 0
        %3812 = vmatpush2.bf16.msra.mxu0 0
        %3813 = vmatprep.subr.bf16.mxu0 0
        %3814 = vmatpush2.bf16.msra.mxu0 0
        %3815 = vmatprep.subr.bf16.mxu0 0
        %3816 = vmatpush2.bf16.msra.mxu0 0
        %3817 = vmatprep.subr.bf16.mxu0 0
        %3818 = vmatpush2.bf16.msra.mxu0 0
        %3819 = vmatprep.subr.bf16.mxu0 0
        %3820 = vmatpush2.bf16.msra.mxu0 0
        %3821 = vmatprep.subr.bf16.mxu0 0
        %3822 = vmatpush2.bf16.msra.mxu0 0
        %3823 = vmatprep.subr.bf16.mxu0 0
        %3824 = vmatpush2.bf16.msra.mxu0 0
        %3825 = vmatprep.subr.bf16.mxu0 0
        %3826 = vmatpush2.bf16.msra.mxu0 0
        %3827 = vmatprep.mubr.bf16.mxu0 0
        %3828 = vmatmul.mubr.bf16.gmra.mxu0 %v3793
        %v3829 = vpop.f32.mrf.mxu0
        %v3830 = vadd.f32 0.0, %v3829
        %v3831 = vpop.f32.mrf.mxu0
        %v3832 = vpop.f32.mrf.mxu0
        %v3833 = vadd.f32 0.0, %v3832
        %v3834 = vpop.f32.mrf.mxu0
        %3835 = vdwg.mxu0
        %v3836 = vpack.c.bf16 %v3833, %v3830
        %v3837 = vld [vmem:[#allocation8] sm:$0xff]
        %v3838 = vld [vmem:[#allocation8 + $0x8] sm:$0xff]
        %v3839 = vld [vmem:[#allocation8 + $0x10] sm:$0xff]
        %v3840 = vld [vmem:[#allocation8 + $0x18] sm:$0xff]
        %v3841 = vld [vmem:[#allocation8 + $0x20] sm:$0xff]
        %v3842 = vld [vmem:[#allocation8 + $0x28] sm:$0xff]
        %v3843 = vld [vmem:[#allocation8 + $0x30] sm:$0xff]
        %v3844 = vld [vmem:[#allocation8 + $0x38] sm:$0xff]
        %v3845 = vld [vmem:[#allocation8 + $0x40] sm:$0xff]
        %v3846 = vld [vmem:[#allocation8 + $0x48] sm:$0xff]
        %v3847 = vld [vmem:[#allocation8 + $0x50] sm:$0xff]
        %v3848 = vld [vmem:[#allocation8 + $0x58] sm:$0xff]
        %v3849 = vld [vmem:[#allocation8 + $0x60] sm:$0xff]
        %v3850 = vld [vmem:[#allocation8 + $0x68] sm:$0xff]
        %v3851 = vld [vmem:[#allocation8 + $0x70] sm:$0xff]
        %v3852 = vld [vmem:[#allocation8 + $0x78] sm:$0xff]
        %v3853 = vld [vmem:[#allocation8 + $0x80] sm:$0xff]
        %v3854 = vld [vmem:[#allocation8 + $0x88] sm:$0xff]
        %v3855 = vld [vmem:[#allocation8 + $0x90] sm:$0xff]
        %v3856 = vld [vmem:[#allocation8 + $0x98] sm:$0xff]
        %v3857 = vld [vmem:[#allocation8 + $0xa0] sm:$0xff]
        %v3858 = vld [vmem:[#allocation8 + $0xa8] sm:$0xff]
        %v3859 = vld [vmem:[#allocation8 + $0xb0] sm:$0xff]
        %v3860 = vld [vmem:[#allocation8 + $0xb8] sm:$0xff]
        %v3861 = vld [vmem:[#allocation8 + $0xc0] sm:$0xff]
        %v3862 = vld [vmem:[#allocation8 + $0xc8] sm:$0xff]
        %v3863 = vld [vmem:[#allocation8 + $0xd0] sm:$0xff]
        %v3864 = vld [vmem:[#allocation8 + $0xd8] sm:$0xff]
        %v3865 = vld [vmem:[#allocation8 + $0xe0] sm:$0xff]
        %v3866 = vld [vmem:[#allocation8 + $0xe8] sm:$0xff]
        %v3867 = vld [vmem:[#allocation8 + $0xf0] sm:$0xff]
        %v3868 = vld [vmem:[#allocation8 + $0xf8] sm:$0xff]
        %v3869 = vld [vmem:[#allocation8 + $0x100] sm:$0xff]
        %v3870 = vld [vmem:[#allocation8 + $0x108] sm:$0xff]
        %v3871 = vld [vmem:[#allocation8 + $0x110] sm:$0xff]
        %v3872 = vld [vmem:[#allocation8 + $0x118] sm:$0xff]
        %v3873 = vld [vmem:[#allocation8 + $0x120] sm:$0xff]
        %v3874 = vld [vmem:[#allocation8 + $0x128] sm:$0xff]
        %v3875 = vld [vmem:[#allocation8 + $0x130] sm:$0xff]
        %v3876 = vld [vmem:[#allocation8 + $0x138] sm:$0xff]
        %v3877 = vld [vmem:[#allocation8 + $0x140] sm:$0xff]
        %v3878 = vld [vmem:[#allocation8 + $0x148] sm:$0xff]
        %v3879 = vld [vmem:[#allocation8 + $0x150] sm:$0xff]
        %v3880 = vld [vmem:[#allocation8 + $0x158] sm:$0xff]
        %v3881 = vld [vmem:[#allocation8 + $0x160] sm:$0xff]
        %v3882 = vld [vmem:[#allocation8 + $0x168] sm:$0xff]
        %v3883 = vld [vmem:[#allocation8 + $0x170] sm:$0xff]
        %v3884 = vld [vmem:[#allocation8 + $0x178] sm:$0xff]
        %v3885 = vld [vmem:[#allocation8 + $0x180] sm:$0xff]
        %v3886 = vld [vmem:[#allocation8 + $0x188] sm:$0xff]
        %v3887 = vld [vmem:[#allocation8 + $0x190] sm:$0xff]
        %v3888 = vld [vmem:[#allocation8 + $0x198] sm:$0xff]
        %v3889 = vld [vmem:[#allocation8 + $0x1a0] sm:$0xff]
        %v3890 = vld [vmem:[#allocation8 + $0x1a8] sm:$0xff]
        %v3891 = vld [vmem:[#allocation8 + $0x1b0] sm:$0xff]
        %v3892 = vld [vmem:[#allocation8 + $0x1b8] sm:$0xff]
        %v3893 = vld [vmem:[#allocation8 + $0x1c0] sm:$0xff]
        %v3894 = vld [vmem:[#allocation8 + $0x1c8] sm:$0xff]
        %v3895 = vld [vmem:[#allocation8 + $0x1d0] sm:$0xff]
        %v3896 = vld [vmem:[#allocation8 + $0x1d8] sm:$0xff]
        %v3897 = vld [vmem:[#allocation8 + $0x1e0] sm:$0xff]
        %v3898 = vld [vmem:[#allocation8 + $0x1e8] sm:$0xff]
        %v3899 = vld [vmem:[#allocation8 + $0x1f0] sm:$0xff]
        %v3900 = vld [vmem:[#allocation8 + $0x1f8] sm:$0xff]
        %v3901 = vld [vmem:[#allocation8 + $0x200] sm:$0xff]
        %v3902 = vld [vmem:[#allocation8 + $0x208] sm:$0xff]
        %v3903 = vld [vmem:[#allocation8 + $0x210] sm:$0xff]
        %v3904 = vld [vmem:[#allocation8 + $0x218] sm:$0xff]
        %v3905 = vld [vmem:[#allocation8 + $0x220] sm:$0xff]
        %v3906 = vld [vmem:[#allocation8 + $0x228] sm:$0xff]
        %v3907 = vld [vmem:[#allocation8 + $0x230] sm:$0xff]
        %v3908 = vld [vmem:[#allocation8 + $0x238] sm:$0xff]
        %v3909 = vld [vmem:[#allocation8 + $0x240] sm:$0xff]
        %v3910 = vld [vmem:[#allocation8 + $0x248] sm:$0xff]
        %v3911 = vld [vmem:[#allocation8 + $0x250] sm:$0xff]
        %v3912 = vld [vmem:[#allocation8 + $0x258] sm:$0xff]
        %v3913 = vld [vmem:[#allocation8 + $0x260] sm:$0xff]
        %v3914 = vld [vmem:[#allocation8 + $0x268] sm:$0xff]
        %v3915 = vld [vmem:[#allocation8 + $0x270] sm:$0xff]
        %v3916 = vld [vmem:[#allocation8 + $0x278] sm:$0xff]
        %v3917 = vld [vmem:[#allocation8 + $0x280] sm:$0xff]
        %v3918 = vld [vmem:[#allocation8 + $0x288] sm:$0xff]
        %v3919 = vld [vmem:[#allocation8 + $0x290] sm:$0xff]
        %v3920 = vld [vmem:[#allocation8 + $0x298] sm:$0xff]
        %v3921 = vld [vmem:[#allocation8 + $0x2a0] sm:$0xff]
        %v3922 = vld [vmem:[#allocation8 + $0x2a8] sm:$0xff]
        %v3923 = vld [vmem:[#allocation8 + $0x2b0] sm:$0xff]
        %v3924 = vld [vmem:[#allocation8 + $0x2b8] sm:$0xff]
        %v3925 = vld [vmem:[#allocation8 + $0x2c0] sm:$0xff]
        %v3926 = vld [vmem:[#allocation8 + $0x2c8] sm:$0xff]
        %v3927 = vld [vmem:[#allocation8 + $0x2d0] sm:$0xff]
        %v3928 = vld [vmem:[#allocation8 + $0x2d8] sm:$0xff]
        %v3929 = vld [vmem:[#allocation8 + $0x2e0] sm:$0xff]
        %v3930 = vld [vmem:[#allocation8 + $0x2e8] sm:$0xff]
        %v3931 = vld [vmem:[#allocation8 + $0x2f0] sm:$0xff]
        %v3932 = vld [vmem:[#allocation8 + $0x2f8] sm:$0xff]
        %v3933 = vld [vmem:[#allocation8 + $0x300] sm:$0xff]
        %v3934 = vld [vmem:[#allocation8 + $0x308] sm:$0xff]
        %v3935 = vld [vmem:[#allocation8 + $0x310] sm:$0xff]
        %v3936 = vld [vmem:[#allocation8 + $0x318] sm:$0xff]
        %v3937 = vld [vmem:[#allocation8 + $0x320] sm:$0xff]
        %v3938 = vld [vmem:[#allocation8 + $0x328] sm:$0xff]
        %v3939 = vld [vmem:[#allocation8 + $0x330] sm:$0xff]
        %v3940 = vld [vmem:[#allocation8 + $0x338] sm:$0xff]
        %v3941 = vld [vmem:[#allocation8 + $0x340] sm:$0xff]
        %v3942 = vld [vmem:[#allocation8 + $0x348] sm:$0xff]
        %v3943 = vld [vmem:[#allocation8 + $0x350] sm:$0xff]
        %v3944 = vld [vmem:[#allocation8 + $0x358] sm:$0xff]
        %v3945 = vld [vmem:[#allocation8 + $0x360] sm:$0xff]
        %v3946 = vld [vmem:[#allocation8 + $0x368] sm:$0xff]
        %v3947 = vld [vmem:[#allocation8 + $0x370] sm:$0xff]
        %v3948 = vld [vmem:[#allocation8 + $0x378] sm:$0xff]
        %v3949 = vld [vmem:[#allocation8 + $0x380] sm:$0xff]
        %v3950 = vld [vmem:[#allocation8 + $0x388] sm:$0xff]
        %v3951 = vld [vmem:[#allocation8 + $0x390] sm:$0xff]
        %v3952 = vld [vmem:[#allocation8 + $0x398] sm:$0xff]
        %v3953 = vld [vmem:[#allocation8 + $0x3a0] sm:$0xff]
        %v3954 = vld [vmem:[#allocation8 + $0x3a8] sm:$0xff]
        %v3955 = vld [vmem:[#allocation8 + $0x3b0] sm:$0xff]
        %v3956 = vld [vmem:[#allocation8 + $0x3b8] sm:$0xff]
        %v3957 = vld [vmem:[#allocation8 + $0x3c0] sm:$0xff]
        %v3958 = vld [vmem:[#allocation8 + $0x3c8] sm:$0xff]
        %v3959 = vld [vmem:[#allocation8 + $0x3d0] sm:$0xff]
        %v3960 = vld [vmem:[#allocation8 + $0x3d8] sm:$0xff]
        %v3961 = vld [vmem:[#allocation8 + $0x3e0] sm:$0xff]
        %v3962 = vld [vmem:[#allocation8 + $0x3e8] sm:$0xff]
        %v3963 = vld [vmem:[#allocation8 + $0x3f0] sm:$0xff]
        %v3964 = vld [vmem:[#allocation8 + $0x3f8] sm:$0xff]
        %v3965 = vld [vmem:[#allocation10] sm:$0xf]
        %v3967 = vlaneseq
        %v3968 = vshrl.u32 %v3967, 7
        %v3969 = vsub.s32 0, %v3968
        %v3970 = vrot.slane %v3965, %v3969
        %v3971 = vlaneseq
        %v3972 = vshrl.u32 %v3971, 7
        %v3973 = vsub.s32 1, %v3972
        %v3974 = vrot.slane %v3965, %v3973
        %v3975 = vlaneseq
        %v3976 = vshrl.u32 %v3975, 7
        %v3977 = vsub.s32 2, %v3976
        %v3978 = vrot.slane %v3965, %v3977
        %v3979 = vlaneseq
        %v3980 = vshrl.u32 %v3979, 7
        %v3981 = vsub.s32 3, %v3980
        %v3982 = vrot.slane %v3965, %v3981
        %v4115 = vunpack.c.l.b16 %v3837
        %v4116 = vunpack.c.h.b16 %v3837
        %v4117 = vunpack.c.l.b16 %v3838
        %v4118 = vunpack.c.h.b16 %v3838
        %v4119 = vunpack.c.l.b16 %v3839
        %v4120 = vunpack.c.h.b16 %v3839
        %v4121 = vunpack.c.l.b16 %v3840
        %v4122 = vunpack.c.h.b16 %v3840
        %v4123 = vunpack.c.l.b16 %v3841
        %v4124 = vunpack.c.h.b16 %v3841
        %v4125 = vunpack.c.l.b16 %v3842
        %v4126 = vunpack.c.h.b16 %v3842
        %v4127 = vunpack.c.l.b16 %v3843
        %v4128 = vunpack.c.h.b16 %v3843
        %v4129 = vunpack.c.l.b16 %v3844
        %v4130 = vunpack.c.h.b16 %v3844
        %v4131 = vunpack.c.l.b16 %v3845
        %v4132 = vunpack.c.h.b16 %v3845
        %v4133 = vunpack.c.l.b16 %v3846
        %v4134 = vunpack.c.h.b16 %v3846
        %v4135 = vunpack.c.l.b16 %v3847
        %v4136 = vunpack.c.h.b16 %v3847
        %v4137 = vunpack.c.l.b16 %v3848
        %v4138 = vunpack.c.h.b16 %v3848
        %v4139 = vunpack.c.l.b16 %v3849
        %v4140 = vunpack.c.h.b16 %v3849
        %v4141 = vunpack.c.l.b16 %v3850
        %v4142 = vunpack.c.h.b16 %v3850
        %v4143 = vunpack.c.l.b16 %v3851
        %v4144 = vunpack.c.h.b16 %v3851
        %v4145 = vunpack.c.l.b16 %v3852
        %v4146 = vunpack.c.h.b16 %v3852
        %v4147 = vunpack.c.l.b16 %v3853
        %v4148 = vunpack.c.h.b16 %v3853
        %v4149 = vunpack.c.l.b16 %v3854
        %v4150 = vunpack.c.h.b16 %v3854
        %v4151 = vunpack.c.l.b16 %v3855
        %v4152 = vunpack.c.h.b16 %v3855
        %v4153 = vunpack.c.l.b16 %v3856
        %v4154 = vunpack.c.h.b16 %v3856
        %v4155 = vunpack.c.l.b16 %v3857
        %v4156 = vunpack.c.h.b16 %v3857
        %v4157 = vunpack.c.l.b16 %v3858
        %v4158 = vunpack.c.h.b16 %v3858
        %v4159 = vunpack.c.l.b16 %v3859
        %v4160 = vunpack.c.h.b16 %v3859
        %v4161 = vunpack.c.l.b16 %v3860
        %v4162 = vunpack.c.h.b16 %v3860
        %v4163 = vunpack.c.l.b16 %v3861
        %v4164 = vunpack.c.h.b16 %v3861
        %v4165 = vunpack.c.l.b16 %v3862
        %v4166 = vunpack.c.h.b16 %v3862
        %v4167 = vunpack.c.l.b16 %v3863
        %v4168 = vunpack.c.h.b16 %v3863
        %v4169 = vunpack.c.l.b16 %v3864
        %v4170 = vunpack.c.h.b16 %v3864
        %v4171 = vunpack.c.l.b16 %v3865
        %v4172 = vunpack.c.h.b16 %v3865
        %v4173 = vunpack.c.l.b16 %v3866
        %v4174 = vunpack.c.h.b16 %v3866
        %v4175 = vunpack.c.l.b16 %v3867
        %v4176 = vunpack.c.h.b16 %v3867
        %v4177 = vunpack.c.l.b16 %v3868
        %v4178 = vunpack.c.h.b16 %v3868
        %v4179 = vunpack.c.l.b16 %v3869
        %v4180 = vunpack.c.h.b16 %v3869
        %v4181 = vunpack.c.l.b16 %v3870
        %v4182 = vunpack.c.h.b16 %v3870
        %v4183 = vunpack.c.l.b16 %v3871
        %v4184 = vunpack.c.h.b16 %v3871
        %v4185 = vunpack.c.l.b16 %v3872
        %v4186 = vunpack.c.h.b16 %v3872
        %v4187 = vunpack.c.l.b16 %v3873
        %v4188 = vunpack.c.h.b16 %v3873
        %v4189 = vunpack.c.l.b16 %v3874
        %v4190 = vunpack.c.h.b16 %v3874
        %v4191 = vunpack.c.l.b16 %v3875
        %v4192 = vunpack.c.h.b16 %v3875
        %v4193 = vunpack.c.l.b16 %v3876
        %v4194 = vunpack.c.h.b16 %v3876
        %v4195 = vunpack.c.l.b16 %v3877
        %v4196 = vunpack.c.h.b16 %v3877
        %v4197 = vunpack.c.l.b16 %v3878
        %v4198 = vunpack.c.h.b16 %v3878
        %v4199 = vunpack.c.l.b16 %v3879
        %v4200 = vunpack.c.h.b16 %v3879
        %v4201 = vunpack.c.l.b16 %v3880
        %v4202 = vunpack.c.h.b16 %v3880
        %v4203 = vunpack.c.l.b16 %v3881
        %v4204 = vunpack.c.h.b16 %v3881
        %v4205 = vunpack.c.l.b16 %v3882
        %v4206 = vunpack.c.h.b16 %v3882
        %v4207 = vunpack.c.l.b16 %v3883
        %v4208 = vunpack.c.h.b16 %v3883
        %v4209 = vunpack.c.l.b16 %v3884
        %v4210 = vunpack.c.h.b16 %v3884
        %v4211 = vunpack.c.l.b16 %v3885
        %v4212 = vunpack.c.h.b16 %v3885
        %v4213 = vunpack.c.l.b16 %v3886
        %v4214 = vunpack.c.h.b16 %v3886
        %v4215 = vunpack.c.l.b16 %v3887
        %v4216 = vunpack.c.h.b16 %v3887
        %v4217 = vunpack.c.l.b16 %v3888
        %v4218 = vunpack.c.h.b16 %v3888
        %v4219 = vunpack.c.l.b16 %v3889
        %v4220 = vunpack.c.h.b16 %v3889
        %v4221 = vunpack.c.l.b16 %v3890
        %v4222 = vunpack.c.h.b16 %v3890
        %v4223 = vunpack.c.l.b16 %v3891
        %v4224 = vunpack.c.h.b16 %v3891
        %v4225 = vunpack.c.l.b16 %v3892
        %v4226 = vunpack.c.h.b16 %v3892
        %v4227 = vunpack.c.l.b16 %v3893
        %v4228 = vunpack.c.h.b16 %v3893
        %v4229 = vunpack.c.l.b16 %v3894
        %v4230 = vunpack.c.h.b16 %v3894
        %v4231 = vunpack.c.l.b16 %v3895
        %v4232 = vunpack.c.h.b16 %v3895
        %v4233 = vunpack.c.l.b16 %v3896
        %v4234 = vunpack.c.h.b16 %v3896
        %v4235 = vunpack.c.l.b16 %v3897
        %v4236 = vunpack.c.h.b16 %v3897
        %v4237 = vunpack.c.l.b16 %v3898
        %v4238 = vunpack.c.h.b16 %v3898
        %v4239 = vunpack.c.l.b16 %v3899
        %v4240 = vunpack.c.h.b16 %v3899
        %v4241 = vunpack.c.l.b16 %v3900
        %v4242 = vunpack.c.h.b16 %v3900
        %v4243 = vunpack.c.l.b16 %v3901
        %v4244 = vunpack.c.h.b16 %v3901
        %v4245 = vunpack.c.l.b16 %v3902
        %v4246 = vunpack.c.h.b16 %v3902
        %v4247 = vunpack.c.l.b16 %v3903
        %v4248 = vunpack.c.h.b16 %v3903
        %v4249 = vunpack.c.l.b16 %v3904
        %v4250 = vunpack.c.h.b16 %v3904
        %v4251 = vunpack.c.l.b16 %v3905
        %v4252 = vunpack.c.h.b16 %v3905
        %v4253 = vunpack.c.l.b16 %v3906
        %v4254 = vunpack.c.h.b16 %v3906
        %v4255 = vunpack.c.l.b16 %v3907
        %v4256 = vunpack.c.h.b16 %v3907
        %v4257 = vunpack.c.l.b16 %v3908
        %v4258 = vunpack.c.h.b16 %v3908
        %v4259 = vunpack.c.l.b16 %v3909
        %v4260 = vunpack.c.h.b16 %v3909
        %v4261 = vunpack.c.l.b16 %v3910
        %v4262 = vunpack.c.h.b16 %v3910
        %v4263 = vunpack.c.l.b16 %v3911
        %v4264 = vunpack.c.h.b16 %v3911
        %v4265 = vunpack.c.l.b16 %v3912
        %v4266 = vunpack.c.h.b16 %v3912
        %v4267 = vunpack.c.l.b16 %v3913
        %v4268 = vunpack.c.h.b16 %v3913
        %v4269 = vunpack.c.l.b16 %v3914
        %v4270 = vunpack.c.h.b16 %v3914
        %v4271 = vunpack.c.l.b16 %v3915
        %v4272 = vunpack.c.h.b16 %v3915
        %v4273 = vunpack.c.l.b16 %v3916
        %v4274 = vunpack.c.h.b16 %v3916
        %v4275 = vunpack.c.l.b16 %v3917
        %v4276 = vunpack.c.h.b16 %v3917
        %v4277 = vunpack.c.l.b16 %v3918
        %v4278 = vunpack.c.h.b16 %v3918
        %v4279 = vunpack.c.l.b16 %v3919
        %v4280 = vunpack.c.h.b16 %v3919
        %v4281 = vunpack.c.l.b16 %v3920
        %v4282 = vunpack.c.h.b16 %v3920
        %v4283 = vunpack.c.l.b16 %v3921
        %v4284 = vunpack.c.h.b16 %v3921
        %v4285 = vunpack.c.l.b16 %v3922
        %v4286 = vunpack.c.h.b16 %v3922
        %v4287 = vunpack.c.l.b16 %v3923
        %v4288 = vunpack.c.h.b16 %v3923
        %v4289 = vunpack.c.l.b16 %v3924
        %v4290 = vunpack.c.h.b16 %v3924
        %v4291 = vunpack.c.l.b16 %v3925
        %v4292 = vunpack.c.h.b16 %v3925
        %v4293 = vunpack.c.l.b16 %v3926
        %v4294 = vunpack.c.h.b16 %v3926
        %v4295 = vunpack.c.l.b16 %v3927
        %v4296 = vunpack.c.h.b16 %v3927
        %v4297 = vunpack.c.l.b16 %v3928
        %v4298 = vunpack.c.h.b16 %v3928
        %v4299 = vunpack.c.l.b16 %v3929
        %v4300 = vunpack.c.h.b16 %v3929
        %v4301 = vunpack.c.l.b16 %v3930
        %v4302 = vunpack.c.h.b16 %v3930
        %v4303 = vunpack.c.l.b16 %v3931
        %v4304 = vunpack.c.h.b16 %v3931
        %v4305 = vunpack.c.l.b16 %v3932
        %v4306 = vunpack.c.h.b16 %v3932
        %v4307 = vunpack.c.l.b16 %v3933
        %v4308 = vunpack.c.h.b16 %v3933
        %v4309 = vunpack.c.l.b16 %v3934
        %v4310 = vunpack.c.h.b16 %v3934
        %v4311 = vunpack.c.l.b16 %v3935
        %v4312 = vunpack.c.h.b16 %v3935
        %v4313 = vunpack.c.l.b16 %v3936
        %v4314 = vunpack.c.h.b16 %v3936
        %v4315 = vunpack.c.l.b16 %v3937
        %v4316 = vunpack.c.h.b16 %v3937
        %v4317 = vunpack.c.l.b16 %v3938
        %v4318 = vunpack.c.h.b16 %v3938
        %v4319 = vunpack.c.l.b16 %v3939
        %v4320 = vunpack.c.h.b16 %v3939
        %v4321 = vunpack.c.l.b16 %v3940
        %v4322 = vunpack.c.h.b16 %v3940
        %v4323 = vunpack.c.l.b16 %v3941
        %v4324 = vunpack.c.h.b16 %v3941
        %v4325 = vunpack.c.l.b16 %v3942
        %v4326 = vunpack.c.h.b16 %v3942
        %v4327 = vunpack.c.l.b16 %v3943
        %v4328 = vunpack.c.h.b16 %v3943
        %v4329 = vunpack.c.l.b16 %v3944
        %v4330 = vunpack.c.h.b16 %v3944
        %v4331 = vunpack.c.l.b16 %v3945
        %v4332 = vunpack.c.h.b16 %v3945
        %v4333 = vunpack.c.l.b16 %v3946
        %v4334 = vunpack.c.h.b16 %v3946
        %v4335 = vunpack.c.l.b16 %v3947
        %v4336 = vunpack.c.h.b16 %v3947
        %v4337 = vunpack.c.l.b16 %v3948
        %v4338 = vunpack.c.h.b16 %v3948
        %v4339 = vunpack.c.l.b16 %v3949
        %v4340 = vunpack.c.h.b16 %v3949
        %v4341 = vunpack.c.l.b16 %v3950
        %v4342 = vunpack.c.h.b16 %v3950
        %v4343 = vunpack.c.l.b16 %v3951
        %v4344 = vunpack.c.h.b16 %v3951
        %v4345 = vunpack.c.l.b16 %v3952
        %v4346 = vunpack.c.h.b16 %v3952
        %v4347 = vunpack.c.l.b16 %v3953
        %v4348 = vunpack.c.h.b16 %v3953
        %v4349 = vunpack.c.l.b16 %v3954
        %v4350 = vunpack.c.h.b16 %v3954
        %v4351 = vunpack.c.l.b16 %v3955
        %v4352 = vunpack.c.h.b16 %v3955
        %v4353 = vunpack.c.l.b16 %v3956
        %v4354 = vunpack.c.h.b16 %v3956
        %v4355 = vunpack.c.l.b16 %v3957
        %v4356 = vunpack.c.h.b16 %v3957
        %v4357 = vunpack.c.l.b16 %v3958
        %v4358 = vunpack.c.h.b16 %v3958
        %v4359 = vunpack.c.l.b16 %v3959
        %v4360 = vunpack.c.h.b16 %v3959
        %v4361 = vunpack.c.l.b16 %v3960
        %v4362 = vunpack.c.h.b16 %v3960
        %v4363 = vunpack.c.l.b16 %v3961
        %v4364 = vunpack.c.h.b16 %v3961
        %v4365 = vunpack.c.l.b16 %v3962
        %v4366 = vunpack.c.h.b16 %v3962
        %v4367 = vunpack.c.l.b16 %v3963
        %v4368 = vunpack.c.h.b16 %v3963
        %v4369 = vunpack.c.l.b16 %v3964
        %v4370 = vunpack.c.h.b16 %v3964
        %v4371 = vpack.c.b16 %v4119, %v4115
        %v4372 = vpack.c.b16 %v4120, %v4116
        %v4373 = vpack.c.b16 %v4121, %v4117
        %v4374 = vpack.c.b16 %v4122, %v4118
        %v4375 = vpack.c.b16 %v4127, %v4123
        %v4376 = vpack.c.b16 %v4128, %v4124
        %v4377 = vpack.c.b16 %v4129, %v4125
        %v4378 = vpack.c.b16 %v4130, %v4126
        %v4379 = vpack.c.b16 %v4135, %v4131
        %v4380 = vpack.c.b16 %v4136, %v4132
        %v4381 = vpack.c.b16 %v4137, %v4133
        %v4382 = vpack.c.b16 %v4138, %v4134
        %v4383 = vpack.c.b16 %v4143, %v4139
        %v4384 = vpack.c.b16 %v4144, %v4140
        %v4385 = vpack.c.b16 %v4145, %v4141
        %v4386 = vpack.c.b16 %v4146, %v4142
        %v4387 = vpack.c.b16 %v4151, %v4147
        %v4388 = vpack.c.b16 %v4152, %v4148
        %v4389 = vpack.c.b16 %v4153, %v4149
        %v4390 = vpack.c.b16 %v4154, %v4150
        %v4391 = vpack.c.b16 %v4159, %v4155
        %v4392 = vpack.c.b16 %v4160, %v4156
        %v4393 = vpack.c.b16 %v4161, %v4157
        %v4394 = vpack.c.b16 %v4162, %v4158
        %v4395 = vpack.c.b16 %v4167, %v4163
        %v4396 = vpack.c.b16 %v4168, %v4164
        %v4397 = vpack.c.b16 %v4169, %v4165
        %v4398 = vpack.c.b16 %v4170, %v4166
        %v4399 = vpack.c.b16 %v4175, %v4171
        %v4400 = vpack.c.b16 %v4176, %v4172
        %v4401 = vpack.c.b16 %v4177, %v4173
        %v4402 = vpack.c.b16 %v4178, %v4174
        %v4403 = vpack.c.b16 %v4183, %v4179
        %v4404 = vpack.c.b16 %v4184, %v4180
        %v4405 = vpack.c.b16 %v4185, %v4181
        %v4406 = vpack.c.b16 %v4186, %v4182
        %v4407 = vpack.c.b16 %v4191, %v4187
        %v4408 = vpack.c.b16 %v4192, %v4188
        %v4409 = vpack.c.b16 %v4193, %v4189
        %v4410 = vpack.c.b16 %v4194, %v4190
        %v4411 = vpack.c.b16 %v4199, %v4195
        %v4412 = vpack.c.b16 %v4200, %v4196
        %v4413 = vpack.c.b16 %v4201, %v4197
        %v4414 = vpack.c.b16 %v4202, %v4198
        %v4415 = vpack.c.b16 %v4207, %v4203
        %v4416 = vpack.c.b16 %v4208, %v4204
        %v4417 = vpack.c.b16 %v4209, %v4205
        %v4418 = vpack.c.b16 %v4210, %v4206
        %v4419 = vpack.c.b16 %v4215, %v4211
        %v4420 = vpack.c.b16 %v4216, %v4212
        %v4421 = vpack.c.b16 %v4217, %v4213
        %v4422 = vpack.c.b16 %v4218, %v4214
        %v4423 = vpack.c.b16 %v4223, %v4219
        %v4424 = vpack.c.b16 %v4224, %v4220
        %v4425 = vpack.c.b16 %v4225, %v4221
        %v4426 = vpack.c.b16 %v4226, %v4222
        %v4427 = vpack.c.b16 %v4231, %v4227
        %v4428 = vpack.c.b16 %v4232, %v4228
        %v4429 = vpack.c.b16 %v4233, %v4229
        %v4430 = vpack.c.b16 %v4234, %v4230
        %v4431 = vpack.c.b16 %v4239, %v4235
        %v4432 = vpack.c.b16 %v4240, %v4236
        %v4433 = vpack.c.b16 %v4241, %v4237
        %v4434 = vpack.c.b16 %v4242, %v4238
        %v4435 = vpack.c.b16 %v4247, %v4243
        %v4436 = vpack.c.b16 %v4248, %v4244
        %v4437 = vpack.c.b16 %v4249, %v4245
        %v4438 = vpack.c.b16 %v4250, %v4246
        %v4439 = vpack.c.b16 %v4255, %v4251
        %v4440 = vpack.c.b16 %v4256, %v4252
        %v4441 = vpack.c.b16 %v4257, %v4253
        %v4442 = vpack.c.b16 %v4258, %v4254
        %v4443 = vpack.c.b16 %v4263, %v4259
        %v4444 = vpack.c.b16 %v4264, %v4260
        %v4445 = vpack.c.b16 %v4265, %v4261
        %v4446 = vpack.c.b16 %v4266, %v4262
        %v4447 = vpack.c.b16 %v4271, %v4267
        %v4448 = vpack.c.b16 %v4272, %v4268
        %v4449 = vpack.c.b16 %v4273, %v4269
        %v4450 = vpack.c.b16 %v4274, %v4270
        %v4451 = vpack.c.b16 %v4279, %v4275
        %v4452 = vpack.c.b16 %v4280, %v4276
        %v4453 = vpack.c.b16 %v4281, %v4277
        %v4454 = vpack.c.b16 %v4282, %v4278
        %v4455 = vpack.c.b16 %v4287, %v4283
        %v4456 = vpack.c.b16 %v4288, %v4284
        %v4457 = vpack.c.b16 %v4289, %v4285
        %v4458 = vpack.c.b16 %v4290, %v4286
        %v4459 = vpack.c.b16 %v4295, %v4291
        %v4460 = vpack.c.b16 %v4296, %v4292
        %v4461 = vpack.c.b16 %v4297, %v4293
        %v4462 = vpack.c.b16 %v4298, %v4294
        %v4463 = vpack.c.b16 %v4303, %v4299
        %v4464 = vpack.c.b16 %v4304, %v4300
        %v4465 = vpack.c.b16 %v4305, %v4301
        %v4466 = vpack.c.b16 %v4306, %v4302
        %v4467 = vpack.c.b16 %v4311, %v4307
        %v4468 = vpack.c.b16 %v4312, %v4308
        %v4469 = vpack.c.b16 %v4313, %v4309
        %v4470 = vpack.c.b16 %v4314, %v4310
        %v4471 = vpack.c.b16 %v4319, %v4315
        %v4472 = vpack.c.b16 %v4320, %v4316
        %v4473 = vpack.c.b16 %v4321, %v4317
        %v4474 = vpack.c.b16 %v4322, %v4318
        %v4475 = vpack.c.b16 %v4327, %v4323
        %v4476 = vpack.c.b16 %v4328, %v4324
        %v4477 = vpack.c.b16 %v4329, %v4325
        %v4478 = vpack.c.b16 %v4330, %v4326
        %v4479 = vpack.c.b16 %v4335, %v4331
        %v4480 = vpack.c.b16 %v4336, %v4332
        %v4481 = vpack.c.b16 %v4337, %v4333
        %v4482 = vpack.c.b16 %v4338, %v4334
        %v4483 = vpack.c.b16 %v4343, %v4339
        %v4484 = vpack.c.b16 %v4344, %v4340
        %v4485 = vpack.c.b16 %v4345, %v4341
        %v4486 = vpack.c.b16 %v4346, %v4342
        %v4487 = vpack.c.b16 %v4351, %v4347
        %v4488 = vpack.c.b16 %v4352, %v4348
        %v4489 = vpack.c.b16 %v4353, %v4349
        %v4490 = vpack.c.b16 %v4354, %v4350
        %v4491 = vpack.c.b16 %v4359, %v4355
        %v4492 = vpack.c.b16 %v4360, %v4356
        %v4493 = vpack.c.b16 %v4361, %v4357
        %v4494 = vpack.c.b16 %v4362, %v4358
        %v4495 = vpack.c.b16 %v4367, %v4363
        %v4496 = vpack.c.b16 %v4368, %v4364
        %v4497 = vpack.c.b16 %v4369, %v4365
        %v4498 = vpack.c.b16 %v4370, %v4366
        %4627 = vmatprep.subr.bf16.mxu0 %v4400
        %4628 = vmatpush1.bf16.msra.mxu0 %v4399
        %4629 = vmatprep.subr.bf16.mxu0 %v4396
        %4630 = vmatpush1.bf16.msra.mxu0 %v4395
        %4631 = vmatprep.subr.bf16.mxu0 %v4392
        %4632 = vmatpush1.bf16.msra.mxu0 %v4391
        %4633 = vmatprep.subr.bf16.mxu0 %v4388
        %4634 = vmatpush1.bf16.msra.mxu0 %v4387
        %4635 = vmatprep.subr.bf16.mxu0 %v4384
        %4636 = vmatpush1.bf16.msra.mxu0 %v4383
        %4637 = vmatprep.subr.bf16.mxu0 %v4380
        %4638 = vmatpush1.bf16.msra.mxu0 %v4379
        %4639 = vmatprep.subr.bf16.mxu0 %v4376
        %4640 = vmatpush1.bf16.msra.mxu0 %v4375
        %4641 = vmatprep.subr.bf16.mxu0 %v4372
        %4642 = vmatpush1.bf16.msra.mxu0 %v4371
        %4643 = vmatprep.subr.bf16.mxu0 %v4432
        %4644 = vmatpush2.bf16.msra.mxu0 %v4431
        %4645 = vmatprep.subr.bf16.mxu0 %v4428
        %4646 = vmatpush2.bf16.msra.mxu0 %v4427
        %4647 = vmatprep.subr.bf16.mxu0 %v4424
        %4648 = vmatpush2.bf16.msra.mxu0 %v4423
        %4649 = vmatprep.subr.bf16.mxu0 %v4420
        %4650 = vmatpush2.bf16.msra.mxu0 %v4419
        %4651 = vmatprep.subr.bf16.mxu0 %v4416
        %4652 = vmatpush2.bf16.msra.mxu0 %v4415
        %4653 = vmatprep.subr.bf16.mxu0 %v4412
        %4654 = vmatpush2.bf16.msra.mxu0 %v4411
        %4655 = vmatprep.subr.bf16.mxu0 %v4408
        %4656 = vmatpush2.bf16.msra.mxu0 %v4407
        %4657 = vmatprep.subr.bf16.mxu0 %v4404
        %4658 = vmatpush2.bf16.msra.mxu0 %v4403
        %4659 = vmatprep.mubr.bf16.mxu0 %v3568
        %4660 = vmatmul.mubr.bf16.gmra.mxu0 %v3434
        %v4661 = vpop.f32.mrf.mxu0
        %v4662 = vadd.f32 %v3970, %v4661
        %v4663 = vpop.f32.mrf.mxu0
        %v4664 = vadd.f32 %v3974, %v4663
        %v4665 = vpop.f32.mrf.mxu0
        %v4666 = vadd.f32 %v3970, %v4665
        %v4667 = vpop.f32.mrf.mxu0
        %v4668 = vadd.f32 %v3974, %v4667
        %4669 = vdwg.mxu0
        %4670 = vmatprep.subr.bf16.mxu0 %v4464
        %4671 = vmatpush1.bf16.msra.mxu0 %v4463
        %4672 = vmatprep.subr.bf16.mxu0 %v4460
        %4673 = vmatpush1.bf16.msra.mxu0 %v4459
        %4674 = vmatprep.subr.bf16.mxu0 %v4456
        %4675 = vmatpush1.bf16.msra.mxu0 %v4455
        %4676 = vmatprep.subr.bf16.mxu0 %v4452
        %4677 = vmatpush1.bf16.msra.mxu0 %v4451
        %4678 = vmatprep.subr.bf16.mxu0 %v4448
        %4679 = vmatpush1.bf16.msra.mxu0 %v4447
        %4680 = vmatprep.subr.bf16.mxu0 %v4444
        %4681 = vmatpush1.bf16.msra.mxu0 %v4443
        %4682 = vmatprep.subr.bf16.mxu0 %v4440
        %4683 = vmatpush1.bf16.msra.mxu0 %v4439
        %4684 = vmatprep.subr.bf16.mxu0 %v4436
        %4685 = vmatpush1.bf16.msra.mxu0 %v4435
        %4686 = vmatprep.subr.bf16.mxu0 %v4496
        %4687 = vmatpush2.bf16.msra.mxu0 %v4495
        %4688 = vmatprep.subr.bf16.mxu0 %v4492
        %4689 = vmatpush2.bf16.msra.mxu0 %v4491
        %4690 = vmatprep.subr.bf16.mxu0 %v4488
        %4691 = vmatpush2.bf16.msra.mxu0 %v4487
        %4692 = vmatprep.subr.bf16.mxu0 %v4484
        %4693 = vmatpush2.bf16.msra.mxu0 %v4483
        %4694 = vmatprep.subr.bf16.mxu0 %v4480
        %4695 = vmatpush2.bf16.msra.mxu0 %v4479
        %4696 = vmatprep.subr.bf16.mxu0 %v4476
        %4697 = vmatpush2.bf16.msra.mxu0 %v4475
        %4698 = vmatprep.subr.bf16.mxu0 %v4472
        %4699 = vmatpush2.bf16.msra.mxu0 %v4471
        %4700 = vmatprep.subr.bf16.mxu0 %v4468
        %4701 = vmatpush2.bf16.msra.mxu0 %v4467
        %4702 = vmatprep.mubr.bf16.mxu0 %v3836
        %4703 = vmatmul.mubr.bf16.gmra.mxu0 %v3702
        %v4704 = vpop.f32.mrf.mxu0
        %v4705 = vadd.f32 %v4662, %v4704
        %v4706 = vpop.f32.mrf.mxu0
        %v4707 = vadd.f32 %v4664, %v4706
        %v4708 = vpop.f32.mrf.mxu0
        %v4709 = vadd.f32 %v4666, %v4708
        %v4710 = vpop.f32.mrf.mxu0
        %v4711 = vadd.f32 %v4668, %v4710
        %4712 = vdwg.mxu0
        %4713 = vmatprep.subr.bf16.mxu0 %v4402
        %4714 = vmatpush1.bf16.msra.mxu0 %v4401
        %4715 = vmatprep.subr.bf16.mxu0 %v4398
        %4716 = vmatpush1.bf16.msra.mxu0 %v4397
        %4717 = vmatprep.subr.bf16.mxu0 %v4394
        %4718 = vmatpush1.bf16.msra.mxu0 %v4393
        %4719 = vmatprep.subr.bf16.mxu0 %v4390
        %4720 = vmatpush1.bf16.msra.mxu0 %v4389
        %4721 = vmatprep.subr.bf16.mxu0 %v4386
        %4722 = vmatpush1.bf16.msra.mxu0 %v4385
        %4723 = vmatprep.subr.bf16.mxu0 %v4382
        %4724 = vmatpush1.bf16.msra.mxu0 %v4381
        %4725 = vmatprep.subr.bf16.mxu0 %v4378
        %4726 = vmatpush1.bf16.msra.mxu0 %v4377
        %4727 = vmatprep.subr.bf16.mxu0 %v4374
        %4728 = vmatpush1.bf16.msra.mxu0 %v4373
        %4729 = vmatprep.subr.bf16.mxu0 %v4434
        %4730 = vmatpush2.bf16.msra.mxu0 %v4433
        %4731 = vmatprep.subr.bf16.mxu0 %v4430
        %4732 = vmatpush2.bf16.msra.mxu0 %v4429
        %4733 = vmatprep.subr.bf16.mxu0 %v4426
        %4734 = vmatpush2.bf16.msra.mxu0 %v4425
        %4735 = vmatprep.subr.bf16.mxu0 %v4422
        %4736 = vmatpush2.bf16.msra.mxu0 %v4421
        %4737 = vmatprep.subr.bf16.mxu0 %v4418
        %4738 = vmatpush2.bf16.msra.mxu0 %v4417
        %4739 = vmatprep.subr.bf16.mxu0 %v4414
        %4740 = vmatpush2.bf16.msra.mxu0 %v4413
        %4741 = vmatprep.subr.bf16.mxu0 %v4410
        %4742 = vmatpush2.bf16.msra.mxu0 %v4409
        %4743 = vmatprep.subr.bf16.mxu0 %v4406
        %4744 = vmatpush2.bf16.msra.mxu0 %v4405
        %4745 = vmatprep.mubr.bf16.mxu0 %v3568
        %4746 = vmatmul.mubr.bf16.gmra.mxu0 %v3434
        %v4747 = vpop.f32.mrf.mxu0
        %v4748 = vadd.f32 %v3978, %v4747
        %v4749 = vpop.f32.mrf.mxu0
        %v4750 = vadd.f32 %v3982, %v4749
        %v4751 = vpop.f32.mrf.mxu0
        %v4752 = vadd.f32 %v3978, %v4751
        %v4753 = vpop.f32.mrf.mxu0
        %v4754 = vadd.f32 %v3982, %v4753
        %4755 = vdwg.mxu0
        %4756 = vmatprep.subr.bf16.mxu0 %v4466
        %4757 = vmatpush1.bf16.msra.mxu0 %v4465
        %4758 = vmatprep.subr.bf16.mxu0 %v4462
        %4759 = vmatpush1.bf16.msra.mxu0 %v4461
        %4760 = vmatprep.subr.bf16.mxu0 %v4458
        %4761 = vmatpush1.bf16.msra.mxu0 %v4457
        %4762 = vmatprep.subr.bf16.mxu0 %v4454
        %4763 = vmatpush1.bf16.msra.mxu0 %v4453
        %4764 = vmatprep.subr.bf16.mxu0 %v4450
        %4765 = vmatpush1.bf16.msra.mxu0 %v4449
        %4766 = vmatprep.subr.bf16.mxu0 %v4446
        %4767 = vmatpush1.bf16.msra.mxu0 %v4445
        %4768 = vmatprep.subr.bf16.mxu0 %v4442
        %4769 = vmatpush1.bf16.msra.mxu0 %v4441
        %4770 = vmatprep.subr.bf16.mxu0 %v4438
        %4771 = vmatpush1.bf16.msra.mxu0 %v4437
        %4772 = vmatprep.subr.bf16.mxu0 %v4498
        %4773 = vmatpush2.bf16.msra.mxu0 %v4497
        %4774 = vmatprep.subr.bf16.mxu0 %v4494
        %4775 = vmatpush2.bf16.msra.mxu0 %v4493
        %4776 = vmatprep.subr.bf16.mxu0 %v4490
        %4777 = vmatpush2.bf16.msra.mxu0 %v4489
        %4778 = vmatprep.subr.bf16.mxu0 %v4486
        %4779 = vmatpush2.bf16.msra.mxu0 %v4485
        %4780 = vmatprep.subr.bf16.mxu0 %v4482
        %4781 = vmatpush2.bf16.msra.mxu0 %v4481
        %4782 = vmatprep.subr.bf16.mxu0 %v4478
        %4783 = vmatpush2.bf16.msra.mxu0 %v4477
        %4784 = vmatprep.subr.bf16.mxu0 %v4474
        %4785 = vmatpush2.bf16.msra.mxu0 %v4473
        %4786 = vmatprep.subr.bf16.mxu0 %v4470
        %4787 = vmatpush2.bf16.msra.mxu0 %v4469
        %4788 = vmatprep.mubr.bf16.mxu0 %v3836
        %4789 = vmatmul.mubr.bf16.gmra.mxu0 %v3702
        %v4790 = vpop.f32.mrf.mxu0
        %v4791 = vadd.f32 %v4748, %v4790
        %v4792 = vpop.f32.mrf.mxu0
        %v4793 = vadd.f32 %v4750, %v4792
        %v4794 = vpop.f32.mrf.mxu0
        %v4795 = vadd.f32 %v4752, %v4794
        %v4796 = vpop.f32.mrf.mxu0
        %v4797 = vadd.f32 %v4754, %v4796
        %4798 = vdwg.mxu0
        %4799 = vst [vmem:[%s379] sm:$0xff] %v4705
        %4800 = vst [vmem:[%s379 + $0x8] sm:$0xff] %v4707
        %4801 = vst [vmem:[%s379 + $0x10] sm:$0xff] %v4791
        %4802 = vst [vmem:[%s379 + $0x18] sm:$0xff] %v4793
        %4803 = vst [vmem:[%s379 + $0x20] sm:$0xff] %v4709
        %4804 = vst [vmem:[%s379 + $0x28] sm:$0xff] %v4711
        %4805 = vst [vmem:[%s379 + $0x30] sm:$0xff] %v4795
        %4806 = vst [vmem:[%s379 + $0x38] sm:$0xff] %v4797
        %s4807 = sand.u32 %s187, 1
        %s4808 = scalar_lea.sflag [#allocation4], %s4807
        %s4809 = sand.u32 %s187, 1
        %s4810 = smul.addr %s4809, 64
        %s4811 = scalar_lea.vmem [#allocation14], %s4810
        // Predicated region
        $region77: #{tpu_custom_call.1} parent=47 // pred_check
          %p4812 = pneg %p197
        $region78: #{tpu_custom_call.1} parent=47 // pred_check_branch
          %4814 = sbr.rel (%p4812) target = $region80
        $region79: #{tpu_custom_call.1} parent=47 // pred_region
          %s4816 = ssub.s32 1024, 1024
          %4817 = vsyncadd %s4808, %s4816
          %s4818 = smul.addr %s27, 8
          %s4819 = smul.addr %s4818, 128
          %s4820 = scalar_lea.hbm %s7, %s4819
          %s4821 = sshll.u32 %s4811, 4
          %s4822 = int_to_ptr.vmem [resolvable:$true] %s4821
          %4827 = dma.vmem_to_hbm [thread:$0]  %s4822, 1024, %s4820, %s4808, 512, 512, 32
        $region80: #{tpu_custom_call.1} parent=47 // pred_fallthru
          _
      $region48: #{tpu_custom_call.1} parent=5 // pred_fallthru
        _
      %p4828 = scmp.le.s32.totalorder 2, %s22
      // Predicated region
      $region81: #{tpu_custom_call.1} parent=5 // pred_check
        %p4829 = pneg %p4828
      $region82: #{tpu_custom_call.1} parent=5 // pred_check_branch
        %4831 = sbr.rel (%p4829) target = $region84
      $region83: #{tpu_custom_call.1} parent=5 // pred_region
        %s4832 = ssub.s32 %s22, 2
        // Predicated region
        $region85: #{tpu_custom_call.1} parent=83 // pred_check
          %p4833 = pneg %p203
        $region86: #{tpu_custom_call.1} parent=83 // pred_check_branch
          %4835 = sbr.rel (%p4833) target = $region88
        $region87: #{tpu_custom_call.1} parent=83 // pred_region
          %s4836 = sand.u32 %s188, 1
          %s4837 = scalar_lea.sflag [#allocation4], %s4836
          %s4838 = sand.u32 %s188, 1
          %s4839 = smul.addr %s4838, 64
          %s4840 = scalar_lea.vmem [#allocation14], %s4839
          %4841 = dma.done %s4837, 1024
        $region88: #{tpu_custom_call.1} parent=83 // pred_fallthru
          _
      $region84: #{tpu_custom_call.1} parent=5 // pred_fallthru
        _
    $region6: #{tpu_custom_call.1} parent=1 // loop_footer
      %s26 = sadd.s32 1, %s22
    $region7: #{tpu_custom_call.1} parent=1 // loop_footer_branch
      %21 = sbr.rel target = $region3
    $region8: #{tpu_custom_call.1} parent=1 // loop_exit
      _
    %4842 = vsyncpa [#allocation3], 1
    %s4843 = scalar_lea.sflag [#allocation3], 1
    %4844 = vsyncpa %s4843, 1
    %4845 = vsyncpa [#allocation6], 1
    %4846 = vsyncpa [#allocation9], 1
    %4847 = vsyncpa [#allocation12], 1
    %4848 = vsyncpa [#allocation4], 1
    %s4849 = scalar_lea.sflag [#allocation4], 1
    %4850 = vsyncpa %s4849, 1

</llo_original>
